<compile_context>
chip_gen: v7x
topology: tpu7x:2x2x1
jax: 0.10.0
libtpu: 0.0.40
codegen_flags: <defaults>
</compile_context>

<pallas_src>
import functools

import jax
import jax.numpy as jnp
from jax.experimental import pallas as pl
from jax.experimental.pallas import tpu as pltpu


def _round_up(x, m):
    return ((x + m - 1) // m) * m


def _pick_tile(total, candidates):
    for c in candidates:
        if c <= total and total % c == 0:
            return c
    return total


# ---------------------------------------------------------------------------
# Kernel 1: the serial LSTM recurrence (both layers), T_CHUNK timesteps / grid step.
# ---------------------------------------------------------------------------
def _lstm_recurrence_kernel(xp_ref, whh0_ref, wih1_ref, whh1_ref, b1_ref,
                            h1_out_ref,
                            h0_sc, c0_sc, h1_sc, c1_sc,
                            *, hidden, t_chunk):
    c = pl.program_id(0)

    # PyTorch nn.LSTM default: zero initial hidden/cell state.
    @pl.when(c == 0)
    def _():
        h0_sc[...] = jnp.zeros_like(h0_sc)
        c0_sc[...] = jnp.zeros_like(c0_sc)
        h1_sc[...] = jnp.zeros_like(h1_sc)
        c1_sc[...] = jnp.zeros_like(c1_sc)

    # Hoist weight loads out of the timestep loop.
    whh0 = whh0_ref[...]
    wih1 = wih1_ref[...]
    whh1 = whh1_ref[...]
    b1 = b1_ref[...]

    def gates_to_hc(gates, c_prev):
        # PyTorch gate order [i, f, g, o]; each gate is a lane-aligned `hidden`-wide slab.
        i = jax.nn.sigmoid(gates[:, 0 * hidden:1 * hidden])
        f = jax.nn.sigmoid(gates[:, 1 * hidden:2 * hidden])
        g = jnp.tanh(gates[:, 2 * hidden:3 * hidden])
        o = jax.nn.sigmoid(gates[:, 3 * hidden:4 * hidden])
        c_new = f * c_prev + i * g
        h_new = o * jnp.tanh(c_new)
        return h_new, c_new

    def step(tt, carry):
        h0, c0, h1, c1 = carry
        # Layer 0: input projection (x @ W_ih0 + b0) was precomputed outside the kernel.
        g0 = xp_ref[tt] + jnp.dot(h0, whh0, preferred_element_type=jnp.float32)
        h0, c0 = gates_to_hc(g0, c0)
        # Layer 1 (dropout=0.0 between layers -> nothing to do).
        g1 = (jnp.dot(h0, wih1, preferred_element_type=jnp.float32)
              + jnp.dot(h1, whh1, preferred_element_type=jnp.float32)
              + b1)
        h1, c1 = gates_to_hc(g1, c1)
        h1_out_ref[tt] = h1
        return (h0, c0, h1, c1)

    carry = (h0_sc[...], c0_sc[...], h1_sc[...], c1_sc[...])
    carry = jax.lax.fori_loop(0, t_chunk, step, carry, unroll=True)
    h0_sc[...], c0_sc[...], h1_sc[...], c1_sc[...] = carry


# ---------------------------------------------------------------------------
# Kernel 2: decoder GEMM over all S*B rows (fully parallel tiled matmul).
# ---------------------------------------------------------------------------
def _decoder_kernel(h_ref, w_ref, b_ref, o_ref):
    o_ref[...] = (jnp.dot(h_ref[...], w_ref[...], preferred_element_type=jnp.float32)
                  + b_ref[...])


# ---------------------------------------------------------------------------
# Wrapper
# ---------------------------------------------------------------------------
def text_generation_forward(tokens, params, *, vocab, hidden):
    """tokens: (seq, batch) int32. Returns logits (seq, batch, vocab) float32."""
    S, B = tokens.shape
    wih0, whh0, b0, wih1, whh1, b1, wdec, bdec = params

    H = hidden
    Hp = _round_up(max(H, 128), 128)       # lane-aligned hidden (each gate a full-vreg slab)
    Bp = _round_up(max(B, 8), 8)           # sublane-aligned batch
    Vp = _round_up(max(vocab, 128), 128)   # lane-aligned vocab for the decoder output

    # --- Pad parameters (gate-wise along the 4H axis). Zero padding keeps padded hidden
    #     units identically zero, so results match the unpadded computation exactly.
    def pad_gate_cols(w):  # (..., 4H) -> (..., 4Hp)
        w4 = w.reshape(*w.shape[:-1], 4, H)
        w4 = jnp.pad(w4, [(0, 0)] * (w4.ndim - 1) + [(0, Hp - H)])
        return w4.reshape(*w.shape[:-1], 4 * Hp)

    wih0_p = pad_gate_cols(wih0)                                        # (V, 4Hp)
    whh0_p = jnp.pad(pad_gate_cols(whh0), ((0, Hp - H), (0, 0)))        # (Hp, 4Hp)
    b0_p = pad_gate_cols(b0)                                            # (1, 4Hp)
    wih1_p = jnp.pad(pad_gate_cols(wih1), ((0, Hp - H), (0, 0)))        # (Hp, 4Hp)
    whh1_p = jnp.pad(pad_gate_cols(whh1), ((0, Hp - H), (0, 0)))        # (Hp, 4Hp)
    b1_p = pad_gate_cols(b1)                                            # (1, 4Hp)
    wdec_p = jnp.pad(wdec, ((0, Hp - H), (0, Vp - vocab)))              # (Hp, Vp)
    bdec_p = jnp.pad(bdec, ((0, 0), (0, Vp - vocab)))                   # (1, Vp)

    # --- Hoisted layer-0 input projection: one_hot(x) @ W_ih0 + b0  ==  W_ih0[tokens] + b0.
    #     This removes the one-hot tensor and half the per-step matmul work from the
    #     serial critical path.
    x_proj = jnp.take(wih0_p, tokens.reshape(-1), axis=0).reshape(S, B, 4 * Hp) + b0_p
    x_proj = jnp.pad(x_proj, ((0, 0), (0, Bp - B), (0, 0)))             # (S, Bp, 4Hp)

    # --- Chunk multiple timesteps per grid iteration to amortize per-step grid overhead.
    t_chunk = 1
    for cand in (32, 16, 8, 4, 2, 1):
        if S % cand == 0:
            t_chunk = cand
            break

    rec_kernel = functools.partial(_lstm_recurrence_kernel, hidden=Hp, t_chunk=t_chunk)

    h1_all = pl.pallas_call(
        rec_kernel,
        out_shape=jax.ShapeDtypeStruct((S, Bp, Hp), jnp.float32),
        grid=(S // t_chunk,),
        in_specs=[
            pl.BlockSpec((t_chunk, Bp, 4 * Hp), lambda c: (c, 0, 0)),   # x_proj chunk
            pl.BlockSpec(whh0_p.shape, lambda c: (0, 0)),               # resident weights
            pl.BlockSpec(wih1_p.shape, lambda c: (0, 0)),
            pl.BlockSpec(whh1_p.shape, lambda c: (0, 0)),
            pl.BlockSpec(b1_p.shape, lambda c: (0, 0)),
        ],
        out_specs=pl.BlockSpec((t_chunk, Bp, Hp), lambda c: (c, 0, 0)),
        scratch_shapes=[
            pltpu.VMEM((Bp, Hp), jnp.float32),  # h layer0
            pltpu.VMEM((Bp, Hp), jnp.float32),  # c layer0
            pltpu.VMEM((Bp, Hp), jnp.float32),  # h layer1
            pltpu.VMEM((Bp, Hp), jnp.float32),  # c layer1
        ],
        compiler_params=pltpu.CompilerParams(
            # Time carries state -> must stay sequential; do NOT mark "parallel".
            dimension_semantics=("arbitrary",),
            vmem_limit_bytes=64 * 1024 * 1024,
        ),
    )(x_proj, whh0_p, wih1_p, whh1_p, b1_p)

    # --- Decoder as a large parallel GEMM over all S*Bp rows.
    M = S * Bp
    h_rows = h1_all.reshape(M, Hp)
    tm = _pick_tile(M, (512, 256, 128, 64, 32, 16, 8))
    tn = _pick_tile(Vp, (512, 256, 128))
    # TODO(synk): for very large hidden/vocab, also tile the K (hidden) axis of this GEMM.

    logits_p = pl.pallas_call(
        _decoder_kernel,
        out_shape=jax.ShapeDtypeStruct((M, Vp), jnp.float32),
        grid=(M // tm, Vp // tn),
        in_specs=[
            pl.BlockSpec((tm, Hp), lambda i, j: (i, 0)),
            pl.BlockSpec((Hp, tn), lambda i, j: (0, j)),
            pl.BlockSpec((1, tn), lambda i, j: (0, j)),
        ],
        out_specs=pl.BlockSpec((tm, tn), lambda i, j: (i, j)),
        compiler_params=pltpu.CompilerParams(
            dimension_semantics=("parallel", "parallel"),
            vmem_limit_bytes=64 * 1024 * 1024,
        ),
    )(h_rows, wdec_p, bdec_p)

    logits = logits_p.reshape(S, Bp, Vp)[:, :B, :vocab]
    return logits


# ---------------------------------------------------------------------------
# Parameter init (PyTorch-compatible shapes, stored transposed) and pure-JAX reference.
# ---------------------------------------------------------------------------
def init_params(key, *, vocab, hidden):
    ks = jax.random.split(key, 10)
    bound = 1.0 / jnp.sqrt(hidden)
    u = lambda k, shape: jax.random.uniform(k, shape, jnp.float32, -bound, bound)

    wih0 = u(ks[0], (vocab, 4 * hidden))      # weight_ih_l0.T
    whh0 = u(ks[1], (hidden, 4 * hidden))     # weight_hh_l0.T
    b0 = u(ks[2], (1, 4 * hidden)) + u(ks[3], (1, 4 * hidden))   # bias_ih_l0 + bias_hh_l0
    wih1 = u(ks[4], (hidden, 4 * hidden))     # weight_ih_l1.T
    whh1 = u(ks[5], (hidden, 4 * hidden))     # weight_hh_l1.T
    b1 = u(ks[6], (1, 4 * hidden)) + u(ks[7], (1, 4 * hidden))
    wdec = u(ks[8], (hidden, vocab))          # decoder.weight.T
    bdec = u(ks[9], (1, vocab))               # decoder.bias
    return (wih0, whh0, b0, wih1, whh1, b1, wdec, bdec)


def reference_forward(tokens, params, *, vocab, hidden):
    (wih0, whh0, b0, wih1, whh1, b1, wdec, bdec) = params
    S, B = tokens.shape
    x = jax.nn.one_hot(tokens, vocab, dtype=jnp.float32)

    def cell(x_t, h, c, wih, whh, b):
        g = x_t @ wih + h @ whh + b
        i = jax.nn.sigmoid(g[:, 0 * hidden:1 * hidden])
        f = jax.nn.sigmoid(g[:, 1 * hidden:2 * hidden])
        gg = jnp.tanh(g[:, 2 * hidden:3 * hidden])
        o = jax.nn.sigmoid(g[:, 3 * hidden:4 * hidden])
        c_new = f * c + i * gg
        return o * jnp.tanh(c_new), c_new

    def step(carry, x_t):
        h0, c0, h1, c1 = carry
        h0, c0 = cell(x_t, h0, c0, wih0, whh0, b0)
        h1, c1 = cell(h0, h1, c1, wih1, whh1, b1)
        return (h0, c0, h1, c1), h1 @ wdec + bdec

    z = jnp.zeros((B, hidden), jnp.float32)
    _, outs = jax.lax.scan(step, (z, z, z, z), x)
    return outs


if __name__ == "__main__":
    # Small shapes consistent with the module: seq=8, batch=4, vocab=32, lstm_num_hidden=32.
    SEQ, BATCH, VOCAB, HIDDEN = 8, 4, 32, 32

    key = jax.random.PRNGKey(0)
    k_tok, k_par = jax.random.split(key)
    tokens = jax.random.randint(k_tok, (SEQ, BATCH), 0, VOCAB, dtype=jnp.int32)
    params = init_params(k_par, vocab=VOCAB, hidden=HIDDEN)

    logits = text_generation_forward(tokens, params, vocab=VOCAB, hidden=HIDDEN)
    logits = jax.block_until_ready(logits)

    ref = reference_forward(tokens, params, vocab=VOCAB, hidden=HIDDEN)
    assert logits.shape == (SEQ, BATCH, VOCAB)
    assert jnp.allclose(logits, ref, atol=1e-4, rtol=1e-4), "mismatch vs pure-JAX reference"

    print("KERNEL_OK")
</pallas_src>

<mosaic_0001>
module attributes {stable_mosaic.version = 11 : i64} {
  func.func @_lstm_recurrence_kernel(%arg0: i32, %arg1: memref<8x8x512xf32, #tpu.memory_space<vmem>>, %arg2: memref<128x512xf32, #tpu.memory_space<vmem>>, %arg3: memref<128x512xf32, #tpu.memory_space<vmem>>, %arg4: memref<128x512xf32, #tpu.memory_space<vmem>>, %arg5: memref<1x512xf32, #tpu.memory_space<vmem>>, %arg6: memref<8x8x128xf32, #tpu.memory_space<vmem>>, %arg7: memref<8x128xf32, #tpu.memory_space<vmem>>, %arg8: memref<8x128xf32, #tpu.memory_space<vmem>>, %arg9: memref<8x128xf32, #tpu.memory_space<vmem>>, %arg10: memref<8x128xf32, #tpu.memory_space<vmem>>) attributes {dimension_semantics = [#tpu.dimension_semantics<arbitrary>], iteration_bounds = array<i64: 1>, scalar_prefetch = 0 : i64, scratch_operands = 4 : i64, tpu.core_type = #tpu.core_type<tc>, window_params = [{transform_indices = @transform_0, window_bounds = array<i64: 8, 8, 512>}, {pipeline_mode = #tpu.pipeline_mode<synchronous>, transform_indices = @transform_1, window_bounds = array<i64: 128, 512>}, {pipeline_mode = #tpu.pipeline_mode<synchronous>, transform_indices = @transform_2, window_bounds = array<i64: 128, 512>}, {pipeline_mode = #tpu.pipeline_mode<synchronous>, transform_indices = @transform_3, window_bounds = array<i64: 128, 512>}, {pipeline_mode = #tpu.pipeline_mode<synchronous>, transform_indices = @transform_4, window_bounds = array<i64: 1, 512>}, {transform_indices = @transform_5, window_bounds = array<i64: 8, 8, 128>}]} {
    %c0_i32 = arith.constant 0 : i32
    %0 = arith.cmpi eq, %arg0, %c0_i32 : i32
    %1 = arith.extui %0 : i1 to i32
    %c0_i32_0 = arith.constant 0 : i32
    %2 = arith.cmpi ne, %1, %c0_i32_0 : i32
    scf.if %2 {
      %cst_128 = arith.constant 0.000000e+00 : f32
      %527 = vector.broadcast %cst_128 : f32 to vector<8x128xf32>
      %c0_129 = arith.constant 0 : index
      %c0_130 = arith.constant 0 : index
      %528 = vector.load %arg7[%c0_129, %c0_130] : memref<8x128xf32, #tpu.memory_space<vmem>>, vector<8x128xf32>
      tpu.vector_store %arg7[%c0_129, %c0_130], %527 {strides = array<i32>} : memref<8x128xf32, #tpu.memory_space<vmem>>, vector<8x128xf32>,
      %cst_131 = arith.constant 0.000000e+00 : f32
      %529 = vector.broadcast %cst_131 : f32 to vector<8x128xf32>
      %c0_132 = arith.constant 0 : index
      %c0_133 = arith.constant 0 : index
      %530 = vector.load %arg8[%c0_132, %c0_133] : memref<8x128xf32, #tpu.memory_space<vmem>>, vector<8x128xf32>
      tpu.vector_store %arg8[%c0_132, %c0_133], %529 {strides = array<i32>} : memref<8x128xf32, #tpu.memory_space<vmem>>, vector<8x128xf32>,
      %cst_134 = arith.constant 0.000000e+00 : f32
      %531 = vector.broadcast %cst_134 : f32 to vector<8x128xf32>
      %c0_135 = arith.constant 0 : index
      %c0_136 = arith.constant 0 : index
      %532 = vector.load %arg9[%c0_135, %c0_136] : memref<8x128xf32, #tpu.memory_space<vmem>>, vector<8x128xf32>
      tpu.vector_store %arg9[%c0_135, %c0_136], %531 {strides = array<i32>} : memref<8x128xf32, #tpu.memory_space<vmem>>, vector<8x128xf32>,
      %cst_137 = arith.constant 0.000000e+00 : f32
      %533 = vector.broadcast %cst_137 : f32 to vector<8x128xf32>
      %c0_138 = arith.constant 0 : index
      %c0_139 = arith.constant 0 : index
      %534 = vector.load %arg10[%c0_138, %c0_139] : memref<8x128xf32, #tpu.memory_space<vmem>>, vector<8x128xf32>
      tpu.vector_store %arg10[%c0_138, %c0_139], %533 {strides = array<i32>} : memref<8x128xf32, #tpu.memory_space<vmem>>, vector<8x128xf32>,
    } else {
    }
    %c0 = arith.constant 0 : index
    %c0_1 = arith.constant 0 : index
    %3 = vector.load %arg2[%c0, %c0_1] : memref<128x512xf32, #tpu.memory_space<vmem>>, vector<128x512xf32>
    %c0_2 = arith.constant 0 : index
    %c0_3 = arith.constant 0 : index
    %4 = vector.load %arg3[%c0_2, %c0_3] : memref<128x512xf32, #tpu.memory_space<vmem>>, vector<128x512xf32>
    %c0_4 = arith.constant 0 : index
    %c0_5 = arith.constant 0 : index
    %5 = vector.load %arg4[%c0_4, %c0_5] : memref<128x512xf32, #tpu.memory_space<vmem>>, vector<128x512xf32>
    %c0_6 = arith.constant 0 : index
    %c0_7 = arith.constant 0 : index
    %6 = vector.load %arg5[%c0_6, %c0_7] : memref<1x512xf32, #tpu.memory_space<vmem>>, vector<1x512xf32>
    %c0_8 = arith.constant 0 : index
    %c0_9 = arith.constant 0 : index
    %7 = vector.load %arg7[%c0_8, %c0_9] : memref<8x128xf32, #tpu.memory_space<vmem>>, vector<8x128xf32>
    %c0_10 = arith.constant 0 : index
    %c0_11 = arith.constant 0 : index
    %8 = vector.load %arg8[%c0_10, %c0_11] : memref<8x128xf32, #tpu.memory_space<vmem>>, vector<8x128xf32>
    %c0_12 = arith.constant 0 : index
    %c0_13 = arith.constant 0 : index
    %9 = vector.load %arg9[%c0_12, %c0_13] : memref<8x128xf32, #tpu.memory_space<vmem>>, vector<8x128xf32>
    %c0_14 = arith.constant 0 : index
    %c0_15 = arith.constant 0 : index
    %10 = vector.load %arg10[%c0_14, %c0_15] : memref<8x128xf32, #tpu.memory_space<vmem>>, vector<8x128xf32>
    %c0_i32_16 = arith.constant 0 : i32
    %11 = arith.index_cast %c0_i32_16 : i32 to index
    %c0_17 = arith.constant 0 : index
    %c0_18 = arith.constant 0 : index
    %12 = vector.load %arg1[%11, %c0_17, %c0_18] : memref<8x8x512xf32, #tpu.memory_space<vmem>>, vector<1x8x512xf32>
    %13 = vector.shape_cast %12 : vector<1x8x512xf32> to vector<8x512xf32>
    %cst = arith.constant dense<0.000000e+00> : vector<8x512xf32>
    %14 = tpu.matmul %7, %3, %cst {dimension_numbers = #tpu.dot_dimension_numbers<[1], [0], [0], [1], [0, 0, 1, 1], [], []>} : vector<8x128xf32>, vector<128x512xf32>, vector<8x512xf32> -> vector<8x512xf32>
    %15 = arith.addf %13, %14 : vector<8x512xf32>
    %16 = vector.extract_strided_slice %15 {offsets = [0, 0], sizes = [8, 128], strides = [1, 1]} : vector<8x512xf32> to vector<8x128xf32>
    %17 = arith.negf %16 : vector<8x128xf32>
    %18 = math.exp %17 : vector<8x128xf32>
    %cst_19 = arith.constant 1.000000e+00 : f32
    %19 = vector.broadcast %cst_19 : f32 to vector<8x128xf32>
    %20 = arith.addf %19, %18 : vector<8x128xf32>
    %21 = arith.divf %19, %20 : vector<8x128xf32>
    %22 = vector.extract_strided_slice %15 {offsets = [0, 128], sizes = [8, 128], strides = [1, 1]} : vector<8x512xf32> to vector<8x128xf32>
    %23 = arith.negf %22 : vector<8x128xf32>
    %24 = math.exp %23 : vector<8x128xf32>
    %cst_20 = arith.constant 1.000000e+00 : f32
    %25 = vector.broadcast %cst_20 : f32 to vector<8x128xf32>
    %26 = arith.addf %25, %24 : vector<8x128xf32>
    %27 = arith.divf %25, %26 : vector<8x128xf32>
    %28 = vector.extract_strided_slice %15 {offsets = [0, 256], sizes = [8, 128], strides = [1, 1]} : vector<8x512xf32> to vector<8x128xf32>
    %29 = math.tanh %28 : vector<8x128xf32>
    %30 = vector.extract_strided_slice %15 {offsets = [0, 384], sizes = [8, 128], strides = [1, 1]} : vector<8x512xf32> to vector<8x128xf32>
    %31 = arith.negf %30 : vector<8x128xf32>
    %32 = math.exp %31 : vector<8x128xf32>
    %cst_21 = arith.constant 1.000000e+00 : f32
    %33 = vector.broadcast %cst_21 : f32 to vector<8x128xf32>
    %34 = arith.addf %33, %32 : vector<8x128xf32>
    %35 = arith.divf %33, %34 : vector<8x128xf32>
    %36 = arith.mulf %27, %8 : vector<8x128xf32>
    %37 = arith.mulf %21, %29 : vector<8x128xf32>
    %38 = arith.addf %36, %37 : vector<8x128xf32>
    %39 = math.tanh %38 : vector<8x128xf32>
    %40 = arith.mulf %35, %39 : vector<8x128xf32>
    %cst_22 = arith.constant dense<0.000000e+00> : vector<8x512xf32>
    %41 = tpu.matmul %40, %4, %cst_22 {dimension_numbers = #tpu.dot_dimension_numbers<[1], [0], [0], [1], [0, 0, 1, 1], [], []>} : vector<8x128xf32>, vector<128x512xf32>, vector<8x512xf32> -> vector<8x512xf32>
    %cst_23 = arith.constant dense<0.000000e+00> : vector<8x512xf32>
    %42 = tpu.matmul %9, %5, %cst_23 {dimension_numbers = #tpu.dot_dimension_numbers<[1], [0], [0], [1], [0, 0, 1, 1], [], []>} : vector<8x128xf32>, vector<128x512xf32>, vector<8x512xf32> -> vector<8x512xf32>
    %43 = arith.addf %41, %42 : vector<8x512xf32>
    %44 = vector.broadcast %6 : vector<1x512xf32> to vector<8x512xf32>
    %45 = arith.addf %43, %44 : vector<8x512xf32>
    %46 = vector.extract_strided_slice %45 {offsets = [0, 0], sizes = [8, 128], strides = [1, 1]} : vector<8x512xf32> to vector<8x128xf32>
    %47 = arith.negf %46 : vector<8x128xf32>
    %48 = math.exp %47 : vector<8x128xf32>
    %cst_24 = arith.constant 1.000000e+00 : f32
    %49 = vector.broadcast %cst_24 : f32 to vector<8x128xf32>
    %50 = arith.addf %49, %48 : vector<8x128xf32>
    %51 = arith.divf %49, %50 : vector<8x128xf32>
    %52 = vector.extract_strided_slice %45 {offsets = [0, 128], sizes = [8, 128], strides = [1, 1]} : vector<8x512xf32> to vector<8x128xf32>
    %53 = arith.negf %52 : vector<8x128xf32>
    %54 = math.exp %53 : vector<8x128xf32>
    %cst_25 = arith.constant 1.000000e+00 : f32
    %55 = vector.broadcast %cst_25 : f32 to vector<8x128xf32>
    %56 = arith.addf %55, %54 : vector<8x128xf32>
    %57 = arith.divf %55, %56 : vector<8x128xf32>
    %58 = vector.extract_strided_slice %45 {offsets = [0, 256], sizes = [8, 128], strides = [1, 1]} : vector<8x512xf32> to vector<8x128xf32>
    %59 = math.tanh %58 : vector<8x128xf32>
    %60 = vector.extract_strided_slice %45 {offsets = [0, 384], sizes = [8, 128], strides = [1, 1]} : vector<8x512xf32> to vector<8x128xf32>
    %61 = arith.negf %60 : vector<8x128xf32>
    %62 = math.exp %61 : vector<8x128xf32>
    %cst_26 = arith.constant 1.000000e+00 : f32
    %63 = vector.broadcast %cst_26 : f32 to vector<8x128xf32>
    %64 = arith.addf %63, %62 : vector<8x128xf32>
    %65 = arith.divf %63, %64 : vector<8x128xf32>
    %66 = arith.mulf %57, %10 : vector<8x128xf32>
    %67 = arith.mulf %51, %59 : vector<8x128xf32>
    %68 = arith.addf %66, %67 : vector<8x128xf32>
    %69 = math.tanh %68 : vector<8x128xf32>
    %70 = arith.mulf %65, %69 : vector<8x128xf32>
    %71 = arith.index_cast %c0_i32_16 : i32 to index
    %c0_27 = arith.constant 0 : index
    %c0_28 = arith.constant 0 : index
    %72 = vector.load %arg6[%71, %c0_27, %c0_28] : memref<8x8x128xf32, #tpu.memory_space<vmem>>, vector<1x8x128xf32>
    %73 = vector.shape_cast %72 : vector<1x8x128xf32> to vector<8x128xf32>
    %74 = vector.shape_cast %70 : vector<8x128xf32> to vector<1x8x128xf32>
    tpu.vector_store %arg6[%71, %c0_27, %c0_28], %74 {strides = array<i32>} : memref<8x8x128xf32, #tpu.memory_space<vmem>>, vector<1x8x128xf32>,
    %c1_i32 = arith.constant 1 : i32
    %75 = arith.index_cast %c1_i32 : i32 to index
    %c0_29 = arith.constant 0 : index
    %c0_30 = arith.constant 0 : index
    %76 = vector.load %arg1[%75, %c0_29, %c0_30] : memref<8x8x512xf32, #tpu.memory_space<vmem>>, vector<1x8x512xf32>
    %77 = vector.shape_cast %76 : vector<1x8x512xf32> to vector<8x512xf32>
    %cst_31 = arith.constant dense<0.000000e+00> : vector<8x512xf32>
    %78 = tpu.matmul %40, %3, %cst_31 {dimension_numbers = #tpu.dot_dimension_numbers<[1], [0], [0], [1], [0, 0, 1, 1], [], []>} : vector<8x128xf32>, vector<128x512xf32>, vector<8x512xf32> -> vector<8x512xf32>
    %79 = arith.addf %77, %78 : vector<8x512xf32>
    %80 = vector.extract_strided_slice %79 {offsets = [0, 0], sizes = [8, 128], strides = [1, 1]} : vector<8x512xf32> to vector<8x128xf32>
    %81 = arith.negf %80 : vector<8x128xf32>
    %82 = math.exp %81 : vector<8x128xf32>
    %cst_32 = arith.constant 1.000000e+00 : f32
    %83 = vector.broadcast %cst_32 : f32 to vector<8x128xf32>
    %84 = arith.addf %83, %82 : vector<8x128xf32>
    %85 = arith.divf %83, %84 : vector<8x128xf32>
    %86 = vector.extract_strided_slice %79 {offsets = [0, 128], sizes = [8, 128], strides = [1, 1]} : vector<8x512xf32> to vector<8x128xf32>
    %87 = arith.negf %86 : vector<8x128xf32>
    %88 = math.exp %87 : vector<8x128xf32>
    %cst_33 = arith.constant 1.000000e+00 : f32
    %89 = vector.broadcast %cst_33 : f32 to vector<8x128xf32>
    %90 = arith.addf %89, %88 : vector<8x128xf32>
    %91 = arith.divf %89, %90 : vector<8x128xf32>
    %92 = vector.extract_strided_slice %79 {offsets = [0, 256], sizes = [8, 128], strides = [1, 1]} : vector<8x512xf32> to vector<8x128xf32>
    %93 = math.tanh %92 : vector<8x128xf32>
    %94 = vector.extract_strided_slice %79 {offsets = [0, 384], sizes = [8, 128], strides = [1, 1]} : vector<8x512xf32> to vector<8x128xf32>
    %95 = arith.negf %94 : vector<8x128xf32>
    %96 = math.exp %95 : vector<8x128xf32>
    %cst_34 = arith.constant 1.000000e+00 : f32
    %97 = vector.broadcast %cst_34 : f32 to vector<8x128xf32>
    %98 = arith.addf %97, %96 : vector<8x128xf32>
    %99 = arith.divf %97, %98 : vector<8x128xf32>
    %100 = arith.mulf %91, %38 : vector<8x128xf32>
    %101 = arith.mulf %85, %93 : vector<8x128xf32>
    %102 = arith.addf %100, %101 : vector<8x128xf32>
    %103 = math.tanh %102 : vector<8x128xf32>
    %104 = arith.mulf %99, %103 : vector<8x128xf32>
    %cst_35 = arith.constant dense<0.000000e+00> : vector<8x512xf32>
    %105 = tpu.matmul %104, %4, %cst_35 {dimension_numbers = #tpu.dot_dimension_numbers<[1], [0], [0], [1], [0, 0, 1, 1], [], []>} : vector<8x128xf32>, vector<128x512xf32>, vector<8x512xf32> -> vector<8x512xf32>
    %cst_36 = arith.constant dense<0.000000e+00> : vector<8x512xf32>
    %106 = tpu.matmul %70, %5, %cst_36 {dimension_numbers = #tpu.dot_dimension_numbers<[1], [0], [0], [1], [0, 0, 1, 1], [], []>} : vector<8x128xf32>, vector<128x512xf32>, vector<8x512xf32> -> vector<8x512xf32>
    %107 = arith.addf %105, %106 : vector<8x512xf32>
    %108 = vector.broadcast %6 : vector<1x512xf32> to vector<8x512xf32>
    %109 = arith.addf %107, %108 : vector<8x512xf32>
    %110 = vector.extract_strided_slice %109 {offsets = [0, 0], sizes = [8, 128], strides = [1, 1]} : vector<8x512xf32> to vector<8x128xf32>
    %111 = arith.negf %110 : vector<8x128xf32>
    %112 = math.exp %111 : vector<8x128xf32>
    %cst_37 = arith.constant 1.000000e+00 : f32
    %113 = vector.broadcast %cst_37 : f32 to vector<8x128xf32>
    %114 = arith.addf %113, %112 : vector<8x128xf32>
    %115 = arith.divf %113, %114 : vector<8x128xf32>
    %116 = vector.extract_strided_slice %109 {offsets = [0, 128], sizes = [8, 128], strides = [1, 1]} : vector<8x512xf32> to vector<8x128xf32>
    %117 = arith.negf %116 : vector<8x128xf32>
    %118 = math.exp %117 : vector<8x128xf32>
    %cst_38 = arith.constant 1.000000e+00 : f32
    %119 = vector.broadcast %cst_38 : f32 to vector<8x128xf32>
    %120 = arith.addf %119, %118 : vector<8x128xf32>
    %121 = arith.divf %119, %120 : vector<8x128xf32>
    %122 = vector.extract_strided_slice %109 {offsets = [0, 256], sizes = [8, 128], strides = [1, 1]} : vector<8x512xf32> to vector<8x128xf32>
    %123 = math.tanh %122 : vector<8x128xf32>
    %124 = vector.extract_strided_slice %109 {offsets = [0, 384], sizes = [8, 128], strides = [1, 1]} : vector<8x512xf32> to vector<8x128xf32>
    %125 = arith.negf %124 : vector<8x128xf32>
    %126 = math.exp %125 : vector<8x128xf32>
    %cst_39 = arith.constant 1.000000e+00 : f32
    %127 = vector.broadcast %cst_39 : f32 to vector<8x128xf32>
    %128 = arith.addf %127, %126 : vector<8x128xf32>
    %129 = arith.divf %127, %128 : vector<8x128xf32>
    %130 = arith.mulf %121, %68 : vector<8x128xf32>
    %131 = arith.mulf %115, %123 : vector<8x128xf32>
    %132 = arith.addf %130, %131 : vector<8x128xf32>
    %133 = math.tanh %132 : vector<8x128xf32>
    %134 = arith.mulf %129, %133 : vector<8x128xf32>
    %135 = arith.index_cast %c1_i32 : i32 to index
    %c0_40 = arith.constant 0 : index
    %c0_41 = arith.constant 0 : index
    %136 = vector.load %arg6[%135, %c0_40, %c0_41] : memref<8x8x128xf32, #tpu.memory_space<vmem>>, vector<1x8x128xf32>
    %137 = vector.shape_cast %136 : vector<1x8x128xf32> to vector<8x128xf32>
    %138 = vector.shape_cast %134 : vector<8x128xf32> to vector<1x8x128xf32>
    tpu.vector_store %arg6[%135, %c0_40, %c0_41], %138 {strides = array<i32>} : memref<8x8x128xf32, #tpu.memory_space<vmem>>, vector<1x8x128xf32>,
    %c2_i32 = arith.constant 2 : i32
    %139 = arith.index_cast %c2_i32 : i32 to index
    %c0_42 = arith.constant 0 : index
    %c0_43 = arith.constant 0 : index
    %140 = vector.load %arg1[%139, %c0_42, %c0_43] : memref<8x8x512xf32, #tpu.memory_space<vmem>>, vector<1x8x512xf32>
    %141 = vector.shape_cast %140 : vector<1x8x512xf32> to vector<8x512xf32>
    %cst_44 = arith.constant dense<0.000000e+00> : vector<8x512xf32>
    %142 = tpu.matmul %104, %3, %cst_44 {dimension_numbers = #tpu.dot_dimension_numbers<[1], [0], [0], [1], [0, 0, 1, 1], [], []>} : vector<8x128xf32>, vector<128x512xf32>, vector<8x512xf32> -> vector<8x512xf32>
    %143 = arith.addf %141, %142 : vector<8x512xf32>
    %144 = vector.extract_strided_slice %143 {offsets = [0, 0], sizes = [8, 128], strides = [1, 1]} : vector<8x512xf32> to vector<8x128xf32>
    %145 = arith.negf %144 : vector<8x128xf32>
    %146 = math.exp %145 : vector<8x128xf32>
    %cst_45 = arith.constant 1.000000e+00 : f32
    %147 = vector.broadcast %cst_45 : f32 to vector<8x128xf32>
    %148 = arith.addf %147, %146 : vector<8x128xf32>
    %149 = arith.divf %147, %148 : vector<8x128xf32>
    %150 = vector.extract_strided_slice %143 {offsets = [0, 128], sizes = [8, 128], strides = [1, 1]} : vector<8x512xf32> to vector<8x128xf32>
    %151 = arith.negf %150 : vector<8x128xf32>
    %152 = math.exp %151 : vector<8x128xf32>
    %cst_46 = arith.constant 1.000000e+00 : f32
    %153 = vector.broadcast %cst_46 : f32 to vector<8x128xf32>
    %154 = arith.addf %153, %152 : vector<8x128xf32>
    %155 = arith.divf %153, %154 : vector<8x128xf32>
    %156 = vector.extract_strided_slice %143 {offsets = [0, 256], sizes = [8, 128], strides = [1, 1]} : vector<8x512xf32> to vector<8x128xf32>
    %157 = math.tanh %156 : vector<8x128xf32>
    %158 = vector.extract_strided_slice %143 {offsets = [0, 384], sizes = [8, 128], strides = [1, 1]} : vector<8x512xf32> to vector<8x128xf32>
    %159 = arith.negf %158 : vector<8x128xf32>
    %160 = math.exp %159 : vector<8x128xf32>
    %cst_47 = arith.constant 1.000000e+00 : f32
    %161 = vector.broadcast %cst_47 : f32 to vector<8x128xf32>
    %162 = arith.addf %161, %160 : vector<8x128xf32>
    %163 = arith.divf %161, %162 : vector<8x128xf32>
    %164 = arith.mulf %155, %102 : vector<8x128xf32>
    %165 = arith.mulf %149, %157 : vector<8x128xf32>
    %166 = arith.addf %164, %165 : vector<8x128xf32>
    %167 = math.tanh %166 : vector<8x128xf32>
    %168 = arith.mulf %163, %167 : vector<8x128xf32>
    %cst_48 = arith.constant dense<0.000000e+00> : vector<8x512xf32>
    %169 = tpu.matmul %168, %4, %cst_48 {dimension_numbers = #tpu.dot_dimension_numbers<[1], [0], [0], [1], [0, 0, 1, 1], [], []>} : vector<8x128xf32>, vector<128x512xf32>, vector<8x512xf32> -> vector<8x512xf32>
    %cst_49 = arith.constant dense<0.000000e+00> : vector<8x512xf32>
    %170 = tpu.matmul %134, %5, %cst_49 {dimension_numbers = #tpu.dot_dimension_numbers<[1], [0], [0], [1], [0, 0, 1, 1], [], []>} : vector<8x128xf32>, vector<128x512xf32>, vector<8x512xf32> -> vector<8x512xf32>
    %171 = arith.addf %169, %170 : vector<8x512xf32>
    %172 = vector.broadcast %6 : vector<1x512xf32> to vector<8x512xf32>
    %173 = arith.addf %171, %172 : vector<8x512xf32>
    %174 = vector.extract_strided_slice %173 {offsets = [0, 0], sizes = [8, 128], strides = [1, 1]} : vector<8x512xf32> to vector<8x128xf32>
    %175 = arith.negf %174 : vector<8x128xf32>
    %176 = math.exp %175 : vector<8x128xf32>
    %cst_50 = arith.constant 1.000000e+00 : f32
    %177 = vector.broadcast %cst_50 : f32 to vector<8x128xf32>
    %178 = arith.addf %177, %176 : vector<8x128xf32>
    %179 = arith.divf %177, %178 : vector<8x128xf32>
    %180 = vector.extract_strided_slice %173 {offsets = [0, 128], sizes = [8, 128], strides = [1, 1]} : vector<8x512xf32> to vector<8x128xf32>
    %181 = arith.negf %180 : vector<8x128xf32>
    %182 = math.exp %181 : vector<8x128xf32>
    %cst_51 = arith.constant 1.000000e+00 : f32
    %183 = vector.broadcast %cst_51 : f32 to vector<8x128xf32>
    %184 = arith.addf %183, %182 : vector<8x128xf32>
    %185 = arith.divf %183, %184 : vector<8x128xf32>
    %186 = vector.extract_strided_slice %173 {offsets = [0, 256], sizes = [8, 128], strides = [1, 1]} : vector<8x512xf32> to vector<8x128xf32>
    %187 = math.tanh %186 : vector<8x128xf32>
    %188 = vector.extract_strided_slice %173 {offsets = [0, 384], sizes = [8, 128], strides = [1, 1]} : vector<8x512xf32> to vector<8x128xf32>
    %189 = arith.negf %188 : vector<8x128xf32>
    %190 = math.exp %189 : vector<8x128xf32>
    %cst_52 = arith.constant 1.000000e+00 : f32
    %191 = vector.broadcast %cst_52 : f32 to vector<8x128xf32>
    %192 = arith.addf %191, %190 : vector<8x128xf32>
    %193 = arith.divf %191, %192 : vector<8x128xf32>
    %194 = arith.mulf %185, %132 : vector<8x128xf32>
    %195 = arith.mulf %179, %187 : vector<8x128xf32>
    %196 = arith.addf %194, %195 : vector<8x128xf32>
    %197 = math.tanh %196 : vector<8x128xf32>
    %198 = arith.mulf %193, %197 : vector<8x128xf32>
    %199 = arith.index_cast %c2_i32 : i32 to index
    %c0_53 = arith.constant 0 : index
    %c0_54 = arith.constant 0 : index
    %200 = vector.load %arg6[%199, %c0_53, %c0_54] : memref<8x8x128xf32, #tpu.memory_space<vmem>>, vector<1x8x128xf32>
    %201 = vector.shape_cast %200 : vector<1x8x128xf32> to vector<8x128xf32>
    %202 = vector.shape_cast %198 : vector<8x128xf32> to vector<1x8x128xf32>
    tpu.vector_store %arg6[%199, %c0_53, %c0_54], %202 {strides = array<i32>} : memref<8x8x128xf32, #tpu.memory_space<vmem>>, vector<1x8x128xf32>,
    %c3_i32 = arith.constant 3 : i32
    %203 = arith.index_cast %c3_i32 : i32 to index
    %c0_55 = arith.constant 0 : index
    %c0_56 = arith.constant 0 : index
    %204 = vector.load %arg1[%203, %c0_55, %c0_56] : memref<8x8x512xf32, #tpu.memory_space<vmem>>, vector<1x8x512xf32>
    %205 = vector.shape_cast %204 : vector<1x8x512xf32> to vector<8x512xf32>
    %cst_57 = arith.constant dense<0.000000e+00> : vector<8x512xf32>
    %206 = tpu.matmul %168, %3, %cst_57 {dimension_numbers = #tpu.dot_dimension_numbers<[1], [0], [0], [1], [0, 0, 1, 1], [], []>} : vector<8x128xf32>, vector<128x512xf32>, vector<8x512xf32> -> vector<8x512xf32>
    %207 = arith.addf %205, %206 : vector<8x512xf32>
    %208 = vector.extract_strided_slice %207 {offsets = [0, 0], sizes = [8, 128], strides = [1, 1]} : vector<8x512xf32> to vector<8x128xf32>
    %209 = arith.negf %208 : vector<8x128xf32>
    %210 = math.exp %209 : vector<8x128xf32>
    %cst_58 = arith.constant 1.000000e+00 : f32
    %211 = vector.broadcast %cst_58 : f32 to vector<8x128xf32>
    %212 = arith.addf %211, %210 : vector<8x128xf32>
    %213 = arith.divf %211, %212 : vector<8x128xf32>
    %214 = vector.extract_strided_slice %207 {offsets = [0, 128], sizes = [8, 128], strides = [1, 1]} : vector<8x512xf32> to vector<8x128xf32>
    %215 = arith.negf %214 : vector<8x128xf32>
    %216 = math.exp %215 : vector<8x128xf32>
    %cst_59 = arith.constant 1.000000e+00 : f32
    %217 = vector.broadcast %cst_59 : f32 to vector<8x128xf32>
    %218 = arith.addf %217, %216 : vector<8x128xf32>
    %219 = arith.divf %217, %218 : vector<8x128xf32>
    %220 = vector.extract_strided_slice %207 {offsets = [0, 256], sizes = [8, 128], strides = [1, 1]} : vector<8x512xf32> to vector<8x128xf32>
    %221 = math.tanh %220 : vector<8x128xf32>
    %222 = vector.extract_strided_slice %207 {offsets = [0, 384], sizes = [8, 128], strides = [1, 1]} : vector<8x512xf32> to vector<8x128xf32>
    %223 = arith.negf %222 : vector<8x128xf32>
    %224 = math.exp %223 : vector<8x128xf32>
    %cst_60 = arith.constant 1.000000e+00 : f32
    %225 = vector.broadcast %cst_60 : f32 to vector<8x128xf32>
    %226 = arith.addf %225, %224 : vector<8x128xf32>
    %227 = arith.divf %225, %226 : vector<8x128xf32>
    %228 = arith.mulf %219, %166 : vector<8x128xf32>
    %229 = arith.mulf %213, %221 : vector<8x128xf32>
    %230 = arith.addf %228, %229 : vector<8x128xf32>
    %231 = math.tanh %230 : vector<8x128xf32>
    %232 = arith.mulf %227, %231 : vector<8x128xf32>
    %cst_61 = arith.constant dense<0.000000e+00> : vector<8x512xf32>
    %233 = tpu.matmul %232, %4, %cst_61 {dimension_numbers = #tpu.dot_dimension_numbers<[1], [0], [0], [1], [0, 0, 1, 1], [], []>} : vector<8x128xf32>, vector<128x512xf32>, vector<8x512xf32> -> vector<8x512xf32>
    %cst_62 = arith.constant dense<0.000000e+00> : vector<8x512xf32>
    %234 = tpu.matmul %198, %5, %cst_62 {dimension_numbers = #tpu.dot_dimension_numbers<[1], [0], [0], [1], [0, 0, 1, 1], [], []>} : vector<8x128xf32>, vector<128x512xf32>, vector<8x512xf32> -> vector<8x512xf32>
    %235 = arith.addf %233, %234 : vector<8x512xf32>
    %236 = vector.broadcast %6 : vector<1x512xf32> to vector<8x512xf32>
    %237 = arith.addf %235, %236 : vector<8x512xf32>
    %238 = vector.extract_strided_slice %237 {offsets = [0, 0], sizes = [8, 128], strides = [1, 1]} : vector<8x512xf32> to vector<8x128xf32>
    %239 = arith.negf %238 : vector<8x128xf32>
    %240 = math.exp %239 : vector<8x128xf32>
    %cst_63 = arith.constant 1.000000e+00 : f32
    %241 = vector.broadcast %cst_63 : f32 to vector<8x128xf32>
    %242 = arith.addf %241, %240 : vector<8x128xf32>
    %243 = arith.divf %241, %242 : vector<8x128xf32>
    %244 = vector.extract_strided_slice %237 {offsets = [0, 128], sizes = [8, 128], strides = [1, 1]} : vector<8x512xf32> to vector<8x128xf32>
    %245 = arith.negf %244 : vector<8x128xf32>
    %246 = math.exp %245 : vector<8x128xf32>
    %cst_64 = arith.constant 1.000000e+00 : f32
    %247 = vector.broadcast %cst_64 : f32 to vector<8x128xf32>
    %248 = arith.addf %247, %246 : vector<8x128xf32>
    %249 = arith.divf %247, %248 : vector<8x128xf32>
    %250 = vector.extract_strided_slice %237 {offsets = [0, 256], sizes = [8, 128], strides = [1, 1]} : vector<8x512xf32> to vector<8x128xf32>
    %251 = math.tanh %250 : vector<8x128xf32>
    %252 = vector.extract_strided_slice %237 {offsets = [0, 384], sizes = [8, 128], strides = [1, 1]} : vector<8x512xf32> to vector<8x128xf32>
    %253 = arith.negf %252 : vector<8x128xf32>
    %254 = math.exp %253 : vector<8x128xf32>
    %cst_65 = arith.constant 1.000000e+00 : f32
    %255 = vector.broadcast %cst_65 : f32 to vector<8x128xf32>
    %256 = arith.addf %255, %254 : vector<8x128xf32>
    %257 = arith.divf %255, %256 : vector<8x128xf32>
    %258 = arith.mulf %249, %196 : vector<8x128xf32>
    %259 = arith.mulf %243, %251 : vector<8x128xf32>
    %260 = arith.addf %258, %259 : vector<8x128xf32>
    %261 = math.tanh %260 : vector<8x128xf32>
    %262 = arith.mulf %257, %261 : vector<8x128xf32>
    %263 = arith.index_cast %c3_i32 : i32 to index
    %c0_66 = arith.constant 0 : index
    %c0_67 = arith.constant 0 : index
    %264 = vector.load %arg6[%263, %c0_66, %c0_67] : memref<8x8x128xf32, #tpu.memory_space<vmem>>, vector<1x8x128xf32>
    %265 = vector.shape_cast %264 : vector<1x8x128xf32> to vector<8x128xf32>
    %266 = vector.shape_cast %262 : vector<8x128xf32> to vector<1x8x128xf32>
    tpu.vector_store %arg6[%263, %c0_66, %c0_67], %266 {strides = array<i32>} : memref<8x8x128xf32, #tpu.memory_space<vmem>>, vector<1x8x128xf32>,
    %c4_i32 = arith.constant 4 : i32
    %267 = arith.index_cast %c4_i32 : i32 to index
    %c0_68 = arith.constant 0 : index
    %c0_69 = arith.constant 0 : index
    %268 = vector.load %arg1[%267, %c0_68, %c0_69] : memref<8x8x512xf32, #tpu.memory_space<vmem>>, vector<1x8x512xf32>
    %269 = vector.shape_cast %268 : vector<1x8x512xf32> to vector<8x512xf32>
    %cst_70 = arith.constant dense<0.000000e+00> : vector<8x512xf32>
    %270 = tpu.matmul %232, %3, %cst_70 {dimension_numbers = #tpu.dot_dimension_numbers<[1], [0], [0], [1], [0, 0, 1, 1], [], []>} : vector<8x128xf32>, vector<128x512xf32>, vector<8x512xf32> -> vector<8x512xf32>
    %271 = arith.addf %269, %270 : vector<8x512xf32>
    %272 = vector.extract_strided_slice %271 {offsets = [0, 0], sizes = [8, 128], strides = [1, 1]} : vector<8x512xf32> to vector<8x128xf32>
    %273 = arith.negf %272 : vector<8x128xf32>
    %274 = math.exp %273 : vector<8x128xf32>
    %cst_71 = arith.constant 1.000000e+00 : f32
    %275 = vector.broadcast %cst_71 : f32 to vector<8x128xf32>
    %276 = arith.addf %275, %274 : vector<8x128xf32>
    %277 = arith.divf %275, %276 : vector<8x128xf32>
    %278 = vector.extract_strided_slice %271 {offsets = [0, 128], sizes = [8, 128], strides = [1, 1]} : vector<8x512xf32> to vector<8x128xf32>
    %279 = arith.negf %278 : vector<8x128xf32>
    %280 = math.exp %279 : vector<8x128xf32>
    %cst_72 = arith.constant 1.000000e+00 : f32
    %281 = vector.broadcast %cst_72 : f32 to vector<8x128xf32>
    %282 = arith.addf %281, %280 : vector<8x128xf32>
    %283 = arith.divf %281, %282 : vector<8x128xf32>
    %284 = vector.extract_strided_slice %271 {offsets = [0, 256], sizes = [8, 128], strides = [1, 1]} : vector<8x512xf32> to vector<8x128xf32>
    %285 = math.tanh %284 : vector<8x128xf32>
    %286 = vector.extract_strided_slice %271 {offsets = [0, 384], sizes = [8, 128], strides = [1, 1]} : vector<8x512xf32> to vector<8x128xf32>
    %287 = arith.negf %286 : vector<8x128xf32>
    %288 = math.exp %287 : vector<8x128xf32>
    %cst_73 = arith.constant 1.000000e+00 : f32
    %289 = vector.broadcast %cst_73 : f32 to vector<8x128xf32>
    %290 = arith.addf %289, %288 : vector<8x128xf32>
    %291 = arith.divf %289, %290 : vector<8x128xf32>
    %292 = arith.mulf %283, %230 : vector<8x128xf32>
    %293 = arith.mulf %277, %285 : vector<8x128xf32>
    %294 = arith.addf %292, %293 : vector<8x128xf32>
    %295 = math.tanh %294 : vector<8x128xf32>
    %296 = arith.mulf %291, %295 : vector<8x128xf32>
    %cst_74 = arith.constant dense<0.000000e+00> : vector<8x512xf32>
    %297 = tpu.matmul %296, %4, %cst_74 {dimension_numbers = #tpu.dot_dimension_numbers<[1], [0], [0], [1], [0, 0, 1, 1], [], []>} : vector<8x128xf32>, vector<128x512xf32>, vector<8x512xf32> -> vector<8x512xf32>
    %cst_75 = arith.constant dense<0.000000e+00> : vector<8x512xf32>
    %298 = tpu.matmul %262, %5, %cst_75 {dimension_numbers = #tpu.dot_dimension_numbers<[1], [0], [0], [1], [0, 0, 1, 1], [], []>} : vector<8x128xf32>, vector<128x512xf32>, vector<8x512xf32> -> vector<8x512xf32>
    %299 = arith.addf %297, %298 : vector<8x512xf32>
    %300 = vector.broadcast %6 : vector<1x512xf32> to vector<8x512xf32>
    %301 = arith.addf %299, %300 : vector<8x512xf32>
    %302 = vector.extract_strided_slice %301 {offsets = [0, 0], sizes = [8, 128], strides = [1, 1]} : vector<8x512xf32> to vector<8x128xf32>
    %303 = arith.negf %302 : vector<8x128xf32>
    %304 = math.exp %303 : vector<8x128xf32>
    %cst_76 = arith.constant 1.000000e+00 : f32
    %305 = vector.broadcast %cst_76 : f32 to vector<8x128xf32>
    %306 = arith.addf %305, %304 : vector<8x128xf32>
    %307 = arith.divf %305, %306 : vector<8x128xf32>
    %308 = vector.extract_strided_slice %301 {offsets = [0, 128], sizes = [8, 128], strides = [1, 1]} : vector<8x512xf32> to vector<8x128xf32>
    %309 = arith.negf %308 : vector<8x128xf32>
    %310 = math.exp %309 : vector<8x128xf32>
    %cst_77 = arith.constant 1.000000e+00 : f32
    %311 = vector.broadcast %cst_77 : f32 to vector<8x128xf32>
    %312 = arith.addf %311, %310 : vector<8x128xf32>
    %313 = arith.divf %311, %312 : vector<8x128xf32>
    %314 = vector.extract_strided_slice %301 {offsets = [0, 256], sizes = [8, 128], strides = [1, 1]} : vector<8x512xf32> to vector<8x128xf32>
    %315 = math.tanh %314 : vector<8x128xf32>
    %316 = vector.extract_strided_slice %301 {offsets = [0, 384], sizes = [8, 128], strides = [1, 1]} : vector<8x512xf32> to vector<8x128xf32>
    %317 = arith.negf %316 : vector<8x128xf32>
    %318 = math.exp %317 : vector<8x128xf32>
    %cst_78 = arith.constant 1.000000e+00 : f32
    %319 = vector.broadcast %cst_78 : f32 to vector<8x128xf32>
    %320 = arith.addf %319, %318 : vector<8x128xf32>
    %321 = arith.divf %319, %320 : vector<8x128xf32>
    %322 = arith.mulf %313, %260 : vector<8x128xf32>
    %323 = arith.mulf %307, %315 : vector<8x128xf32>
    %324 = arith.addf %322, %323 : vector<8x128xf32>
    %325 = math.tanh %324 : vector<8x128xf32>
    %326 = arith.mulf %321, %325 : vector<8x128xf32>
    %327 = arith.index_cast %c4_i32 : i32 to index
    %c0_79 = arith.constant 0 : index
    %c0_80 = arith.constant 0 : index
    %328 = vector.load %arg6[%327, %c0_79, %c0_80] : memref<8x8x128xf32, #tpu.memory_space<vmem>>, vector<1x8x128xf32>
    %329 = vector.shape_cast %328 : vector<1x8x128xf32> to vector<8x128xf32>
    %330 = vector.shape_cast %326 : vector<8x128xf32> to vector<1x8x128xf32>
    tpu.vector_store %arg6[%327, %c0_79, %c0_80], %330 {strides = array<i32>} : memref<8x8x128xf32, #tpu.memory_space<vmem>>, vector<1x8x128xf32>,
    %c5_i32 = arith.constant 5 : i32
    %331 = arith.index_cast %c5_i32 : i32 to index
    %c0_81 = arith.constant 0 : index
    %c0_82 = arith.constant 0 : index
    %332 = vector.load %arg1[%331, %c0_81, %c0_82] : memref<8x8x512xf32, #tpu.memory_space<vmem>>, vector<1x8x512xf32>
    %333 = vector.shape_cast %332 : vector<1x8x512xf32> to vector<8x512xf32>
    %cst_83 = arith.constant dense<0.000000e+00> : vector<8x512xf32>
    %334 = tpu.matmul %296, %3, %cst_83 {dimension_numbers = #tpu.dot_dimension_numbers<[1], [0], [0], [1], [0, 0, 1, 1], [], []>} : vector<8x128xf32>, vector<128x512xf32>, vector<8x512xf32> -> vector<8x512xf32>
    %335 = arith.addf %333, %334 : vector<8x512xf32>
    %336 = vector.extract_strided_slice %335 {offsets = [0, 0], sizes = [8, 128], strides = [1, 1]} : vector<8x512xf32> to vector<8x128xf32>
    %337 = arith.negf %336 : vector<8x128xf32>
    %338 = math.exp %337 : vector<8x128xf32>
    %cst_84 = arith.constant 1.000000e+00 : f32
    %339 = vector.broadcast %cst_84 : f32 to vector<8x128xf32>
    %340 = arith.addf %339, %338 : vector<8x128xf32>
    %341 = arith.divf %339, %340 : vector<8x128xf32>
    %342 = vector.extract_strided_slice %335 {offsets = [0, 128], sizes = [8, 128], strides = [1, 1]} : vector<8x512xf32> to vector<8x128xf32>
    %343 = arith.negf %342 : vector<8x128xf32>
    %344 = math.exp %343 : vector<8x128xf32>
    %cst_85 = arith.constant 1.000000e+00 : f32
    %345 = vector.broadcast %cst_85 : f32 to vector<8x128xf32>
    %346 = arith.addf %345, %344 : vector<8x128xf32>
    %347 = arith.divf %345, %346 : vector<8x128xf32>
    %348 = vector.extract_strided_slice %335 {offsets = [0, 256], sizes = [8, 128], strides = [1, 1]} : vector<8x512xf32> to vector<8x128xf32>
    %349 = math.tanh %348 : vector<8x128xf32>
    %350 = vector.extract_strided_slice %335 {offsets = [0, 384], sizes = [8, 128], strides = [1, 1]} : vector<8x512xf32> to vector<8x128xf32>
    %351 = arith.negf %350 : vector<8x128xf32>
    %352 = math.exp %351 : vector<8x128xf32>
    %cst_86 = arith.constant 1.000000e+00 : f32
    %353 = vector.broadcast %cst_86 : f32 to vector<8x128xf32>
    %354 = arith.addf %353, %352 : vector<8x128xf32>
    %355 = arith.divf %353, %354 : vector<8x128xf32>
    %356 = arith.mulf %347, %294 : vector<8x128xf32>
    %357 = arith.mulf %341, %349 : vector<8x128xf32>
    %358 = arith.addf %356, %357 : vector<8x128xf32>
    %359 = math.tanh %358 : vector<8x128xf32>
    %360 = arith.mulf %355, %359 : vector<8x128xf32>
    %cst_87 = arith.constant dense<0.000000e+00> : vector<8x512xf32>
    %361 = tpu.matmul %360, %4, %cst_87 {dimension_numbers = #tpu.dot_dimension_numbers<[1], [0], [0], [1], [0, 0, 1, 1], [], []>} : vector<8x128xf32>, vector<128x512xf32>, vector<8x512xf32> -> vector<8x512xf32>
    %cst_88 = arith.constant dense<0.000000e+00> : vector<8x512xf32>
    %362 = tpu.matmul %326, %5, %cst_88 {dimension_numbers = #tpu.dot_dimension_numbers<[1], [0], [0], [1], [0, 0, 1, 1], [], []>} : vector<8x128xf32>, vector<128x512xf32>, vector<8x512xf32> -> vector<8x512xf32>
    %363 = arith.addf %361, %362 : vector<8x512xf32>
    %364 = vector.broadcast %6 : vector<1x512xf32> to vector<8x512xf32>
    %365 = arith.addf %363, %364 : vector<8x512xf32>
    %366 = vector.extract_strided_slice %365 {offsets = [0, 0], sizes = [8, 128], strides = [1, 1]} : vector<8x512xf32> to vector<8x128xf32>
    %367 = arith.negf %366 : vector<8x128xf32>
    %368 = math.exp %367 : vector<8x128xf32>
    %cst_89 = arith.constant 1.000000e+00 : f32
    %369 = vector.broadcast %cst_89 : f32 to vector<8x128xf32>
    %370 = arith.addf %369, %368 : vector<8x128xf32>
    %371 = arith.divf %369, %370 : vector<8x128xf32>
    %372 = vector.extract_strided_slice %365 {offsets = [0, 128], sizes = [8, 128], strides = [1, 1]} : vector<8x512xf32> to vector<8x128xf32>
    %373 = arith.negf %372 : vector<8x128xf32>
    %374 = math.exp %373 : vector<8x128xf32>
    %cst_90 = arith.constant 1.000000e+00 : f32
    %375 = vector.broadcast %cst_90 : f32 to vector<8x128xf32>
    %376 = arith.addf %375, %374 : vector<8x128xf32>
    %377 = arith.divf %375, %376 : vector<8x128xf32>
    %378 = vector.extract_strided_slice %365 {offsets = [0, 256], sizes = [8, 128], strides = [1, 1]} : vector<8x512xf32> to vector<8x128xf32>
    %379 = math.tanh %378 : vector<8x128xf32>
    %380 = vector.extract_strided_slice %365 {offsets = [0, 384], sizes = [8, 128], strides = [1, 1]} : vector<8x512xf32> to vector<8x128xf32>
    %381 = arith.negf %380 : vector<8x128xf32>
    %382 = math.exp %381 : vector<8x128xf32>
    %cst_91 = arith.constant 1.000000e+00 : f32
    %383 = vector.broadcast %cst_91 : f32 to vector<8x128xf32>
    %384 = arith.addf %383, %382 : vector<8x128xf32>
    %385 = arith.divf %383, %384 : vector<8x128xf32>
    %386 = arith.mulf %377, %324 : vector<8x128xf32>
    %387 = arith.mulf %371, %379 : vector<8x128xf32>
    %388 = arith.addf %386, %387 : vector<8x128xf32>
    %389 = math.tanh %388 : vector<8x128xf32>
    %390 = arith.mulf %385, %389 : vector<8x128xf32>
    %391 = arith.index_cast %c5_i32 : i32 to index
    %c0_92 = arith.constant 0 : index
    %c0_93 = arith.constant 0 : index
    %392 = vector.load %arg6[%391, %c0_92, %c0_93] : memref<8x8x128xf32, #tpu.memory_space<vmem>>, vector<1x8x128xf32>
    %393 = vector.shape_cast %392 : vector<1x8x128xf32> to vector<8x128xf32>
    %394 = vector.shape_cast %390 : vector<8x128xf32> to vector<1x8x128xf32>
    tpu.vector_store %arg6[%391, %c0_92, %c0_93], %394 {strides = array<i32>} : memref<8x8x128xf32, #tpu.memory_space<vmem>>, vector<1x8x128xf32>,
    %c6_i32 = arith.constant 6 : i32
    %395 = arith.index_cast %c6_i32 : i32 to index
    %c0_94 = arith.constant 0 : index
    %c0_95 = arith.constant 0 : index
    %396 = vector.load %arg1[%395, %c0_94, %c0_95] : memref<8x8x512xf32, #tpu.memory_space<vmem>>, vector<1x8x512xf32>
    %397 = vector.shape_cast %396 : vector<1x8x512xf32> to vector<8x512xf32>
    %cst_96 = arith.constant dense<0.000000e+00> : vector<8x512xf32>
    %398 = tpu.matmul %360, %3, %cst_96 {dimension_numbers = #tpu.dot_dimension_numbers<[1], [0], [0], [1], [0, 0, 1, 1], [], []>} : vector<8x128xf32>, vector<128x512xf32>, vector<8x512xf32> -> vector<8x512xf32>
    %399 = arith.addf %397, %398 : vector<8x512xf32>
    %400 = vector.extract_strided_slice %399 {offsets = [0, 0], sizes = [8, 128], strides = [1, 1]} : vector<8x512xf32> to vector<8x128xf32>
    %401 = arith.negf %400 : vector<8x128xf32>
    %402 = math.exp %401 : vector<8x128xf32>
    %cst_97 = arith.constant 1.000000e+00 : f32
    %403 = vector.broadcast %cst_97 : f32 to vector<8x128xf32>
    %404 = arith.addf %403, %402 : vector<8x128xf32>
    %405 = arith.divf %403, %404 : vector<8x128xf32>
    %406 = vector.extract_strided_slice %399 {offsets = [0, 128], sizes = [8, 128], strides = [1, 1]} : vector<8x512xf32> to vector<8x128xf32>
    %407 = arith.negf %406 : vector<8x128xf32>
    %408 = math.exp %407 : vector<8x128xf32>
    %cst_98 = arith.constant 1.000000e+00 : f32
    %409 = vector.broadcast %cst_98 : f32 to vector<8x128xf32>
    %410 = arith.addf %409, %408 : vector<8x128xf32>
    %411 = arith.divf %409, %410 : vector<8x128xf32>
    %412 = vector.extract_strided_slice %399 {offsets = [0, 256], sizes = [8, 128], strides = [1, 1]} : vector<8x512xf32> to vector<8x128xf32>
    %413 = math.tanh %412 : vector<8x128xf32>
    %414 = vector.extract_strided_slice %399 {offsets = [0, 384], sizes = [8, 128], strides = [1, 1]} : vector<8x512xf32> to vector<8x128xf32>
    %415 = arith.negf %414 : vector<8x128xf32>
    %416 = math.exp %415 : vector<8x128xf32>
    %cst_99 = arith.constant 1.000000e+00 : f32
    %417 = vector.broadcast %cst_99 : f32 to vector<8x128xf32>
    %418 = arith.addf %417, %416 : vector<8x128xf32>
    %419 = arith.divf %417, %418 : vector<8x128xf32>
    %420 = arith.mulf %411, %358 : vector<8x128xf32>
    %421 = arith.mulf %405, %413 : vector<8x128xf32>
    %422 = arith.addf %420, %421 : vector<8x128xf32>
    %423 = math.tanh %422 : vector<8x128xf32>
    %424 = arith.mulf %419, %423 : vector<8x128xf32>
    %cst_100 = arith.constant dense<0.000000e+00> : vector<8x512xf32>
    %425 = tpu.matmul %424, %4, %cst_100 {dimension_numbers = #tpu.dot_dimension_numbers<[1], [0], [0], [1], [0, 0, 1, 1], [], []>} : vector<8x128xf32>, vector<128x512xf32>, vector<8x512xf32> -> vector<8x512xf32>
    %cst_101 = arith.constant dense<0.000000e+00> : vector<8x512xf32>
    %426 = tpu.matmul %390, %5, %cst_101 {dimension_numbers = #tpu.dot_dimension_numbers<[1], [0], [0], [1], [0, 0, 1, 1], [], []>} : vector<8x128xf32>, vector<128x512xf32>, vector<8x512xf32> -> vector<8x512xf32>
    %427 = arith.addf %425, %426 : vector<8x512xf32>
    %428 = vector.broadcast %6 : vector<1x512xf32> to vector<8x512xf32>
    %429 = arith.addf %427, %428 : vector<8x512xf32>
    %430 = vector.extract_strided_slice %429 {offsets = [0, 0], sizes = [8, 128], strides = [1, 1]} : vector<8x512xf32> to vector<8x128xf32>
    %431 = arith.negf %430 : vector<8x128xf32>
    %432 = math.exp %431 : vector<8x128xf32>
    %cst_102 = arith.constant 1.000000e+00 : f32
    %433 = vector.broadcast %cst_102 : f32 to vector<8x128xf32>
    %434 = arith.addf %433, %432 : vector<8x128xf32>
    %435 = arith.divf %433, %434 : vector<8x128xf32>
    %436 = vector.extract_strided_slice %429 {offsets = [0, 128], sizes = [8, 128], strides = [1, 1]} : vector<8x512xf32> to vector<8x128xf32>
    %437 = arith.negf %436 : vector<8x128xf32>
    %438 = math.exp %437 : vector<8x128xf32>
    %cst_103 = arith.constant 1.000000e+00 : f32
    %439 = vector.broadcast %cst_103 : f32 to vector<8x128xf32>
    %440 = arith.addf %439, %438 : vector<8x128xf32>
    %441 = arith.divf %439, %440 : vector<8x128xf32>
    %442 = vector.extract_strided_slice %429 {offsets = [0, 256], sizes = [8, 128], strides = [1, 1]} : vector<8x512xf32> to vector<8x128xf32>
    %443 = math.tanh %442 : vector<8x128xf32>
    %444 = vector.extract_strided_slice %429 {offsets = [0, 384], sizes = [8, 128], strides = [1, 1]} : vector<8x512xf32> to vector<8x128xf32>
    %445 = arith.negf %444 : vector<8x128xf32>
    %446 = math.exp %445 : vector<8x128xf32>
    %cst_104 = arith.constant 1.000000e+00 : f32
    %447 = vector.broadcast %cst_104 : f32 to vector<8x128xf32>
    %448 = arith.addf %447, %446 : vector<8x128xf32>
    %449 = arith.divf %447, %448 : vector<8x128xf32>
    %450 = arith.mulf %441, %388 : vector<8x128xf32>
    %451 = arith.mulf %435, %443 : vector<8x128xf32>
    %452 = arith.addf %450, %451 : vector<8x128xf32>
    %453 = math.tanh %452 : vector<8x128xf32>
    %454 = arith.mulf %449, %453 : vector<8x128xf32>
    %455 = arith.index_cast %c6_i32 : i32 to index
    %c0_105 = arith.constant 0 : index
    %c0_106 = arith.constant 0 : index
    %456 = vector.load %arg6[%455, %c0_105, %c0_106] : memref<8x8x128xf32, #tpu.memory_space<vmem>>, vector<1x8x128xf32>
    %457 = vector.shape_cast %456 : vector<1x8x128xf32> to vector<8x128xf32>
    %458 = vector.shape_cast %454 : vector<8x128xf32> to vector<1x8x128xf32>
    tpu.vector_store %arg6[%455, %c0_105, %c0_106], %458 {strides = array<i32>} : memref<8x8x128xf32, #tpu.memory_space<vmem>>, vector<1x8x128xf32>,
    %c7_i32 = arith.constant 7 : i32
    %459 = arith.index_cast %c7_i32 : i32 to index
    %c0_107 = arith.constant 0 : index
    %c0_108 = arith.constant 0 : index
    %460 = vector.load %arg1[%459, %c0_107, %c0_108] : memref<8x8x512xf32, #tpu.memory_space<vmem>>, vector<1x8x512xf32>
    %461 = vector.shape_cast %460 : vector<1x8x512xf32> to vector<8x512xf32>
    %cst_109 = arith.constant dense<0.000000e+00> : vector<8x512xf32>
    %462 = tpu.matmul %424, %3, %cst_109 {dimension_numbers = #tpu.dot_dimension_numbers<[1], [0], [0], [1], [0, 0, 1, 1], [], []>} : vector<8x128xf32>, vector<128x512xf32>, vector<8x512xf32> -> vector<8x512xf32>
    %463 = arith.addf %461, %462 : vector<8x512xf32>
    %464 = vector.extract_strided_slice %463 {offsets = [0, 0], sizes = [8, 128], strides = [1, 1]} : vector<8x512xf32> to vector<8x128xf32>
    %465 = arith.negf %464 : vector<8x128xf32>
    %466 = math.exp %465 : vector<8x128xf32>
    %cst_110 = arith.constant 1.000000e+00 : f32
    %467 = vector.broadcast %cst_110 : f32 to vector<8x128xf32>
    %468 = arith.addf %467, %466 : vector<8x128xf32>
    %469 = arith.divf %467, %468 : vector<8x128xf32>
    %470 = vector.extract_strided_slice %463 {offsets = [0, 128], sizes = [8, 128], strides = [1, 1]} : vector<8x512xf32> to vector<8x128xf32>
    %471 = arith.negf %470 : vector<8x128xf32>
    %472 = math.exp %471 : vector<8x128xf32>
    %cst_111 = arith.constant 1.000000e+00 : f32
    %473 = vector.broadcast %cst_111 : f32 to vector<8x128xf32>
    %474 = arith.addf %473, %472 : vector<8x128xf32>
    %475 = arith.divf %473, %474 : vector<8x128xf32>
    %476 = vector.extract_strided_slice %463 {offsets = [0, 256], sizes = [8, 128], strides = [1, 1]} : vector<8x512xf32> to vector<8x128xf32>
    %477 = math.tanh %476 : vector<8x128xf32>
    %478 = vector.extract_strided_slice %463 {offsets = [0, 384], sizes = [8, 128], strides = [1, 1]} : vector<8x512xf32> to vector<8x128xf32>
    %479 = arith.negf %478 : vector<8x128xf32>
    %480 = math.exp %479 : vector<8x128xf32>
    %cst_112 = arith.constant 1.000000e+00 : f32
    %481 = vector.broadcast %cst_112 : f32 to vector<8x128xf32>
    %482 = arith.addf %481, %480 : vector<8x128xf32>
    %483 = arith.divf %481, %482 : vector<8x128xf32>
    %484 = arith.mulf %475, %422 : vector<8x128xf32>
    %485 = arith.mulf %469, %477 : vector<8x128xf32>
    %486 = arith.addf %484, %485 : vector<8x128xf32>
    %487 = math.tanh %486 : vector<8x128xf32>
    %488 = arith.mulf %483, %487 : vector<8x128xf32>
    %cst_113 = arith.constant dense<0.000000e+00> : vector<8x512xf32>
    %489 = tpu.matmul %488, %4, %cst_113 {dimension_numbers = #tpu.dot_dimension_numbers<[1], [0], [0], [1], [0, 0, 1, 1], [], []>} : vector<8x128xf32>, vector<128x512xf32>, vector<8x512xf32> -> vector<8x512xf32>
    %cst_114 = arith.constant dense<0.000000e+00> : vector<8x512xf32>
    %490 = tpu.matmul %454, %5, %cst_114 {dimension_numbers = #tpu.dot_dimension_numbers<[1], [0], [0], [1], [0, 0, 1, 1], [], []>} : vector<8x128xf32>, vector<128x512xf32>, vector<8x512xf32> -> vector<8x512xf32>
    %491 = arith.addf %489, %490 : vector<8x512xf32>
    %492 = vector.broadcast %6 : vector<1x512xf32> to vector<8x512xf32>
    %493 = arith.addf %491, %492 : vector<8x512xf32>
    %494 = vector.extract_strided_slice %493 {offsets = [0, 0], sizes = [8, 128], strides = [1, 1]} : vector<8x512xf32> to vector<8x128xf32>
    %495 = arith.negf %494 : vector<8x128xf32>
    %496 = math.exp %495 : vector<8x128xf32>
    %cst_115 = arith.constant 1.000000e+00 : f32
    %497 = vector.broadcast %cst_115 : f32 to vector<8x128xf32>
    %498 = arith.addf %497, %496 : vector<8x128xf32>
    %499 = arith.divf %497, %498 : vector<8x128xf32>
    %500 = vector.extract_strided_slice %493 {offsets = [0, 128], sizes = [8, 128], strides = [1, 1]} : vector<8x512xf32> to vector<8x128xf32>
    %501 = arith.negf %500 : vector<8x128xf32>
    %502 = math.exp %501 : vector<8x128xf32>
    %cst_116 = arith.constant 1.000000e+00 : f32
    %503 = vector.broadcast %cst_116 : f32 to vector<8x128xf32>
    %504 = arith.addf %503, %502 : vector<8x128xf32>
    %505 = arith.divf %503, %504 : vector<8x128xf32>
    %506 = vector.extract_strided_slice %493 {offsets = [0, 256], sizes = [8, 128], strides = [1, 1]} : vector<8x512xf32> to vector<8x128xf32>
    %507 = math.tanh %506 : vector<8x128xf32>
    %508 = vector.extract_strided_slice %493 {offsets = [0, 384], sizes = [8, 128], strides = [1, 1]} : vector<8x512xf32> to vector<8x128xf32>
    %509 = arith.negf %508 : vector<8x128xf32>
    %510 = math.exp %509 : vector<8x128xf32>
    %cst_117 = arith.constant 1.000000e+00 : f32
    %511 = vector.broadcast %cst_117 : f32 to vector<8x128xf32>
    %512 = arith.addf %511, %510 : vector<8x128xf32>
    %513 = arith.divf %511, %512 : vector<8x128xf32>
    %514 = arith.mulf %505, %452 : vector<8x128xf32>
    %515 = arith.mulf %499, %507 : vector<8x128xf32>
    %516 = arith.addf %514, %515 : vector<8x128xf32>
    %517 = math.tanh %516 : vector<8x128xf32>
    %518 = arith.mulf %513, %517 : vector<8x128xf32>
    %519 = arith.index_cast %c7_i32 : i32 to index
    %c0_118 = arith.constant 0 : index
    %c0_119 = arith.constant 0 : index
    %520 = vector.load %arg6[%519, %c0_118, %c0_119] : memref<8x8x128xf32, #tpu.memory_space<vmem>>, vector<1x8x128xf32>
    %521 = vector.shape_cast %520 : vector<1x8x128xf32> to vector<8x128xf32>
    %522 = vector.shape_cast %518 : vector<8x128xf32> to vector<1x8x128xf32>
    tpu.vector_store %arg6[%519, %c0_118, %c0_119], %522 {strides = array<i32>} : memref<8x8x128xf32, #tpu.memory_space<vmem>>, vector<1x8x128xf32>,
    %c8_i32 = arith.constant 8 : i32
    %c0_120 = arith.constant 0 : index
    %c0_121 = arith.constant 0 : index
    %523 = vector.load %arg7[%c0_120, %c0_121] : memref<8x128xf32, #tpu.memory_space<vmem>>, vector<8x128xf32>
    tpu.vector_store %arg7[%c0_120, %c0_121], %488 {strides = array<i32>} : memref<8x128xf32, #tpu.memory_space<vmem>>, vector<8x128xf32>,
    %c0_122 = arith.constant 0 : index
    %c0_123 = arith.constant 0 : index
    %524 = vector.load %arg8[%c0_122, %c0_123] : memref<8x128xf32, #tpu.memory_space<vmem>>, vector<8x128xf32>
    tpu.vector_store %arg8[%c0_122, %c0_123], %486 {strides = array<i32>} : memref<8x128xf32, #tpu.memory_space<vmem>>, vector<8x128xf32>,
    %c0_124 = arith.constant 0 : index
    %c0_125 = arith.constant 0 : index
    %525 = vector.load %arg9[%c0_124, %c0_125] : memref<8x128xf32, #tpu.memory_space<vmem>>, vector<8x128xf32>
    tpu.vector_store %arg9[%c0_124, %c0_125], %518 {strides = array<i32>} : memref<8x128xf32, #tpu.memory_space<vmem>>, vector<8x128xf32>,
    %c0_126 = arith.constant 0 : index
    %c0_127 = arith.constant 0 : index
    %526 = vector.load %arg10[%c0_126, %c0_127] : memref<8x128xf32, #tpu.memory_space<vmem>>, vector<8x128xf32>
    tpu.vector_store %arg10[%c0_126, %c0_127], %516 {strides = array<i32>} : memref<8x128xf32, #tpu.memory_space<vmem>>, vector<8x128xf32>,
    return
  }
  func.func @transform_0(%arg0: i32) -> (i32, i32, i32) {
    %c0_i32 = arith.constant 0 : i32
    %c0_i32_0 = arith.constant 0 : i32
    %c0_i32_1 = arith.constant 0 : i32
    return %arg0, %c0_i32, %c0_i32_0 : i32, i32, i32
  }
  func.func @transform_1(%arg0: i32) -> (i32, i32) {
    %c0_i32 = arith.constant 0 : i32
    %c0_i32_0 = arith.constant 0 : i32
    %c0_i32_1 = arith.constant 0 : i32
    return %c0_i32, %c0_i32_0 : i32, i32
  }
  func.func @transform_2(%arg0: i32) -> (i32, i32) {
    %c0_i32 = arith.constant 0 : i32
    %c0_i32_0 = arith.constant 0 : i32
    %c0_i32_1 = arith.constant 0 : i32
    return %c0_i32, %c0_i32_0 : i32, i32
  }
  func.func @transform_3(%arg0: i32) -> (i32, i32) {
    %c0_i32 = arith.constant 0 : i32
    %c0_i32_0 = arith.constant 0 : i32
    %c0_i32_1 = arith.constant 0 : i32
    return %c0_i32, %c0_i32_0 : i32, i32
  }
  func.func @transform_4(%arg0: i32) -> (i32, i32) {
    %c0_i32 = arith.constant 0 : i32
    %c0_i32_0 = arith.constant 0 : i32
    %c0_i32_1 = arith.constant 0 : i32
    return %c0_i32, %c0_i32_0 : i32, i32
  }
  func.func @transform_5(%arg0: i32) -> (i32, i32, i32) {
    %c0_i32 = arith.constant 0 : i32
    %c0_i32_0 = arith.constant 0 : i32
    %c0_i32_1 = arith.constant 0 : i32
    return %arg0, %c0_i32, %c0_i32_0 : i32, i32, i32
  }
}

</mosaic_0001>

<llo_original>
// kernel: tpu_custom_call.1
$region0: #{tpu_custom_call.1}
  #allocation0 [shape = 'u32[]', space=smem, size = 0x4, offset = 0x4, fixed_abs, tag = 'smem constant byte address 0x4 - core index']
  #allocation1 [shape = 'u32[144,128]{1,0:T(1,128)}', space=vmem, size = 0x12000, scoped, tag = 'internal scratch']
  #allocation2 [shape = 'f32[8,128]{1,0:T(8,128)}', space=vmem, size = 0x1000, scoped, tag = 'scratch operand']
  #allocation3 [shape = 'f32[8,128]{1,0:T(8,128)}', space=vmem, size = 0x1000, scoped, tag = 'scratch operand']
  #allocation4 [shape = 'f32[8,128]{1,0:T(8,128)}', space=vmem, size = 0x1000, scoped, tag = 'scratch operand']
  #allocation5 [shape = 'f32[8,128]{1,0:T(8,128)}', space=vmem, size = 0x1000, scoped, tag = 'scratch operand']
  %s0 = inlined_call_operand.hbm [shape: f32[8,8,512], index: 0, kind: input, shape index: {}]
  %s1 = inlined_call_operand.hbm [shape: f32[128,512], index: 1, kind: input, shape index: {}]
  %s2 = inlined_call_operand.hbm [shape: f32[128,512], index: 2, kind: input, shape index: {}]
  %s3 = inlined_call_operand.hbm [shape: f32[128,512], index: 3, kind: input, shape index: {}]
  %s4 = inlined_call_operand.hbm [shape: f32[1,512], index: 4, kind: input, shape index: {}]
  %s5 = inlined_call_operand.hbm [shape: f32[8,8,128], index: 5, kind: output, shape index: {}]
  %s6 = sld [smem:[#allocation0]]
  $region54: #{tpu_custom_call.1} parent=0
    _
  %s8 = ssub.s32 1, %s6
  %s9 = scalar_select 0, %s8, %s6
  $region1: #{tpu_custom_call.1} parent=0
    #allocation6 [shape = 'u8[131072]{0}', space=vmem, size = 0x20000, scoped, tag = 'input window, operand 0, single buffered']
    #allocation7 [shape = 's32[1]{0}', space=sflag, size = 0x4, scoped, tag = 'scoped memory for tpu_custom_call.1']
    #allocation8 [shape = 's32[1]{0}', space=sflag, size = 0x4, scoped, tag = 'scoped memory for tpu_custom_call.1']
    #allocation9 [shape = 'u8[262144]{0}', space=vmem, size = 0x40000, scoped, tag = 'input window, operand 1, single buffered']
    #allocation10 [shape = 's32[1]{0}', space=sflag, size = 0x4, scoped, tag = 'scoped memory for tpu_custom_call.1']
    #allocation11 [shape = 'u8[262144]{0}', space=vmem, size = 0x40000, scoped, tag = 'input window, operand 2, single buffered']
    #allocation12 [shape = 'u8[262144]{0}', space=vmem, size = 0x40000, scoped, tag = 'input window, operand 3, single buffered']
    #allocation13 [shape = 's32[1]{0}', space=sflag, size = 0x4, scoped, tag = 'scoped memory for tpu_custom_call.1']
    #allocation14 [shape = 'u8[2048]{0}', space=vmem, size = 0x800, scoped, tag = 'input window, operand 4, single buffered']
    #allocation15 [shape = 'u8[32768]{0}', space=vmem, size = 0x8000, scoped, tag = 'output window, operand 0, single buffered']
    %10 = vsyncpa [#allocation7], 0
    %11 = vsyncpa [#allocation10], 0
    %12 = vsyncpa [#allocation13], 0
    %13 = vsyncpa [#allocation8], 0
    // Predicated region
    $region2: #{tpu_custom_call.1} parent=1 // pred_check
      _
    $region3: #{tpu_custom_call.1} parent=1 // pred_check_branch
      %15 = sbr.rel (0) target = $region5
    $region4: #{tpu_custom_call.1} parent=1 // pred_region
      %s17 = ssub.s32 4096, 4096
      %18 = vsyncadd [#allocation7], %s17
      %s19 = sshll.u32 [#allocation6], 4
      %s20 = int_to_ptr.vmem [resolvable:$true] %s19
      %25 = dma.hbm_to_vmem [thread:$0]  %s0, 4096, %s20, [#allocation7], 512, 512, 32
    $region5: #{tpu_custom_call.1} parent=1 // pred_fallthru
      _
    // Predicated region
    $region6: #{tpu_custom_call.1} parent=1 // pred_check
      _
    $region7: #{tpu_custom_call.1} parent=1 // pred_check_branch
      %27 = sbr.rel (0) target = $region9
    $region8: #{tpu_custom_call.1} parent=1 // pred_region
      %s29 = ssub.s32 8192, 8192
      %30 = vsyncadd [#allocation10], %s29
      %s31 = sshll.u32 [#allocation9], 4
      %s32 = int_to_ptr.vmem [resolvable:$true] %s31
      %37 = dma.hbm_to_vmem [thread:$0]  %s1, 8192, %s32, [#allocation10], 512, 512, 32
    $region9: #{tpu_custom_call.1} parent=1 // pred_fallthru
      _
    // Predicated region
    $region10: #{tpu_custom_call.1} parent=1 // pred_check
      _
    $region11: #{tpu_custom_call.1} parent=1 // pred_check_branch
      %39 = sbr.rel (0) target = $region13
    $region12: #{tpu_custom_call.1} parent=1 // pred_region
      %s41 = ssub.s32 8192, 8192
      %42 = vsyncadd [#allocation10], %s41
      %s43 = sshll.u32 [#allocation11], 4
      %s44 = int_to_ptr.vmem [resolvable:$true] %s43
      %49 = dma.hbm_to_vmem [thread:$0]  %s2, 8192, %s44, [#allocation10], 512, 512, 32
    $region13: #{tpu_custom_call.1} parent=1 // pred_fallthru
      _
    // Predicated region
    $region14: #{tpu_custom_call.1} parent=1 // pred_check
      _
    $region15: #{tpu_custom_call.1} parent=1 // pred_check_branch
      %51 = sbr.rel (0) target = $region17
    $region16: #{tpu_custom_call.1} parent=1 // pred_region
      %s53 = ssub.s32 8192, 8192
      %54 = vsyncadd [#allocation13], %s53
      %s55 = sshll.u32 [#allocation12], 4
      %s56 = int_to_ptr.vmem [resolvable:$true] %s55
      %61 = dma.hbm_to_vmem [thread:$0]  %s3, 8192, %s56, [#allocation13], 512, 512, 32
    $region17: #{tpu_custom_call.1} parent=1 // pred_fallthru
      _
    // Predicated region
    $region18: #{tpu_custom_call.1} parent=1 // pred_check
      _
    $region19: #{tpu_custom_call.1} parent=1 // pred_check_branch
      %63 = sbr.rel (0) target = $region21
    $region20: #{tpu_custom_call.1} parent=1 // pred_region
      %s65 = ssub.s32 64, 64
      %66 = vsyncadd [#allocation13], %s65
      %s68 = sshll.u32 [#allocation14], 4
      %s69 = int_to_ptr.vmem [resolvable:$true] %s68
      %71 = dma.hbm_to_vmem [thread:$0]  %s4, 64, %s69, [#allocation13]
    $region21: #{tpu_custom_call.1} parent=1 // pred_fallthru
      _
    // Predicated region
    $region22: #{tpu_custom_call.1} parent=1 // pred_check
      _
    $region23: #{tpu_custom_call.1} parent=1 // pred_check_branch
      %73 = sbr.rel (0) target = $region25
    $region24: #{tpu_custom_call.1} parent=1 // pred_region
      %74 = dma.done [#allocation7], 4096
    $region25: #{tpu_custom_call.1} parent=1 // pred_fallthru
      _
    // Predicated region
    $region26: #{tpu_custom_call.1} parent=1 // pred_check
      _
    $region27: #{tpu_custom_call.1} parent=1 // pred_check_branch
      %76 = sbr.rel (0) target = $region29
    $region28: #{tpu_custom_call.1} parent=1 // pred_region
      %77 = dma.done [#allocation10], 8192
    $region29: #{tpu_custom_call.1} parent=1 // pred_fallthru
      _
    // Predicated region
    $region30: #{tpu_custom_call.1} parent=1 // pred_check
      _
    $region31: #{tpu_custom_call.1} parent=1 // pred_check_branch
      %79 = sbr.rel (0) target = $region33
    $region32: #{tpu_custom_call.1} parent=1 // pred_region
      %80 = dma.done [#allocation10], 8192
    $region33: #{tpu_custom_call.1} parent=1 // pred_fallthru
      _
    // Predicated region
    $region34: #{tpu_custom_call.1} parent=1 // pred_check
      _
    $region35: #{tpu_custom_call.1} parent=1 // pred_check_branch
      %82 = sbr.rel (0) target = $region37
    $region36: #{tpu_custom_call.1} parent=1 // pred_region
      %83 = dma.done [#allocation13], 8192
    $region37: #{tpu_custom_call.1} parent=1 // pred_fallthru
      _
    // Predicated region
    $region38: #{tpu_custom_call.1} parent=1 // pred_check
      _
    $region39: #{tpu_custom_call.1} parent=1 // pred_check_branch
      %85 = sbr.rel (0) target = $region41
    $region40: #{tpu_custom_call.1} parent=1 // pred_region
      %86 = dma.done [#allocation13], 64
    $region41: #{tpu_custom_call.1} parent=1 // pred_fallthru
      _
    %p87 = scmp.eq.s32.totalorder 0, 0
    // Predicated region
    $region42: #{tpu_custom_call.1} parent=1 // pred_check
      %p88 = pneg %p87
    $region43: #{tpu_custom_call.1} parent=1 // pred_check_branch
      %90 = sbr.rel (%p88) target = $region45
    $region44: #{tpu_custom_call.1} parent=1 // pred_region
      %91 = vst [vmem:[#allocation2] sm:$0xff] 0.0
      %92 = vst [vmem:[#allocation3] sm:$0xff] 0.0
      %93 = vst [vmem:[#allocation4] sm:$0xff] 0.0
      %94 = vst [vmem:[#allocation5] sm:$0xff] 0.0
    $region45: #{tpu_custom_call.1} parent=1 // pred_fallthru
      _
    %v95 = vld [vmem:[#allocation9] sm:$0xff]
    %v96 = vld [vmem:[#allocation9 + $0x8] sm:$0xff]
    %v97 = vld [vmem:[#allocation9 + $0x10] sm:$0xff]
    %v98 = vld [vmem:[#allocation9 + $0x18] sm:$0xff]
    %v99 = vld [vmem:[#allocation9 + $0x20] sm:$0xff]
    %v100 = vld [vmem:[#allocation9 + $0x28] sm:$0xff]
    %v101 = vld [vmem:[#allocation9 + $0x30] sm:$0xff]
    %v102 = vld [vmem:[#allocation9 + $0x38] sm:$0xff]
    %v103 = vld [vmem:[#allocation9 + $0x40] sm:$0xff]
    %v104 = vld [vmem:[#allocation9 + $0x48] sm:$0xff]
    %v105 = vld [vmem:[#allocation9 + $0x50] sm:$0xff]
    %v106 = vld [vmem:[#allocation9 + $0x58] sm:$0xff]
    %v107 = vld [vmem:[#allocation9 + $0x60] sm:$0xff]
    %v108 = vld [vmem:[#allocation9 + $0x68] sm:$0xff]
    %v109 = vld [vmem:[#allocation9 + $0x70] sm:$0xff]
    %v110 = vld [vmem:[#allocation9 + $0x78] sm:$0xff]
    %v111 = vld [vmem:[#allocation9 + $0x80] sm:$0xff]
    %v112 = vld [vmem:[#allocation9 + $0x88] sm:$0xff]
    %v113 = vld [vmem:[#allocation9 + $0x90] sm:$0xff]
    %v114 = vld [vmem:[#allocation9 + $0x98] sm:$0xff]
    %v115 = vld [vmem:[#allocation9 + $0xa0] sm:$0xff]
    %v116 = vld [vmem:[#allocation9 + $0xa8] sm:$0xff]
    %v117 = vld [vmem:[#allocation9 + $0xb0] sm:$0xff]
    %v118 = vld [vmem:[#allocation9 + $0xb8] sm:$0xff]
    %v119 = vld [vmem:[#allocation9 + $0xc0] sm:$0xff]
    %v120 = vld [vmem:[#allocation9 + $0xc8] sm:$0xff]
    %v121 = vld [vmem:[#allocation9 + $0xd0] sm:$0xff]
    %v122 = vld [vmem:[#allocation9 + $0xd8] sm:$0xff]
    %v123 = vld [vmem:[#allocation9 + $0xe0] sm:$0xff]
    %v124 = vld [vmem:[#allocation9 + $0xe8] sm:$0xff]
    %v125 = vld [vmem:[#allocation9 + $0xf0] sm:$0xff]
    %v126 = vld [vmem:[#allocation9 + $0xf8] sm:$0xff]
    %v127 = vld [vmem:[#allocation9 + $0x100] sm:$0xff]
    %v128 = vld [vmem:[#allocation9 + $0x108] sm:$0xff]
    %v129 = vld [vmem:[#allocation9 + $0x110] sm:$0xff]
    %v130 = vld [vmem:[#allocation9 + $0x118] sm:$0xff]
    %v131 = vld [vmem:[#allocation9 + $0x120] sm:$0xff]
    %v132 = vld [vmem:[#allocation9 + $0x128] sm:$0xff]
    %v133 = vld [vmem:[#allocation9 + $0x130] sm:$0xff]
    %v134 = vld [vmem:[#allocation9 + $0x138] sm:$0xff]
    %v135 = vld [vmem:[#allocation9 + $0x140] sm:$0xff]
    %v136 = vld [vmem:[#allocation9 + $0x148] sm:$0xff]
    %v137 = vld [vmem:[#allocation9 + $0x150] sm:$0xff]
    %v138 = vld [vmem:[#allocation9 + $0x158] sm:$0xff]
    %v139 = vld [vmem:[#allocation9 + $0x160] sm:$0xff]
    %v140 = vld [vmem:[#allocation9 + $0x168] sm:$0xff]
    %v141 = vld [vmem:[#allocation9 + $0x170] sm:$0xff]
    %v142 = vld [vmem:[#allocation9 + $0x178] sm:$0xff]
    %v143 = vld [vmem:[#allocation9 + $0x180] sm:$0xff]
    %v144 = vld [vmem:[#allocation9 + $0x188] sm:$0xff]
    %v145 = vld [vmem:[#allocation9 + $0x190] sm:$0xff]
    %v146 = vld [vmem:[#allocation9 + $0x198] sm:$0xff]
    %v147 = vld [vmem:[#allocation9 + $0x1a0] sm:$0xff]
    %v148 = vld [vmem:[#allocation9 + $0x1a8] sm:$0xff]
    %v149 = vld [vmem:[#allocation9 + $0x1b0] sm:$0xff]
    %v150 = vld [vmem:[#allocation9 + $0x1b8] sm:$0xff]
    %v151 = vld [vmem:[#allocation9 + $0x1c0] sm:$0xff]
    %v152 = vld [vmem:[#allocation9 + $0x1c8] sm:$0xff]
    %v153 = vld [vmem:[#allocation9 + $0x1d0] sm:$0xff]
    %v154 = vld [vmem:[#allocation9 + $0x1d8] sm:$0xff]
    %v155 = vld [vmem:[#allocation9 + $0x1e0] sm:$0xff]
    %v156 = vld [vmem:[#allocation9 + $0x1e8] sm:$0xff]
    %v157 = vld [vmem:[#allocation9 + $0x1f0] sm:$0xff]
    %v158 = vld [vmem:[#allocation9 + $0x1f8] sm:$0xff]
    %v159 = vld [vmem:[#allocation11] sm:$0xff]
    %v160 = vld [vmem:[#allocation11 + $0x8] sm:$0xff]
    %v161 = vld [vmem:[#allocation11 + $0x10] sm:$0xff]
    %v162 = vld [vmem:[#allocation11 + $0x18] sm:$0xff]
    %v163 = vld [vmem:[#allocation11 + $0x20] sm:$0xff]
    %v164 = vld [vmem:[#allocation11 + $0x28] sm:$0xff]
    %v165 = vld [vmem:[#allocation11 + $0x30] sm:$0xff]
    %v166 = vld [vmem:[#allocation11 + $0x38] sm:$0xff]
    %v167 = vld [vmem:[#allocation11 + $0x40] sm:$0xff]
    %v168 = vld [vmem:[#allocation11 + $0x48] sm:$0xff]
    %v169 = vld [vmem:[#allocation11 + $0x50] sm:$0xff]
    %v170 = vld [vmem:[#allocation11 + $0x58] sm:$0xff]
    %v171 = vld [vmem:[#allocation11 + $0x60] sm:$0xff]
    %v172 = vld [vmem:[#allocation11 + $0x68] sm:$0xff]
    %v173 = vld [vmem:[#allocation11 + $0x70] sm:$0xff]
    %v174 = vld [vmem:[#allocation11 + $0x78] sm:$0xff]
    %v175 = vld [vmem:[#allocation11 + $0x80] sm:$0xff]
    %v176 = vld [vmem:[#allocation11 + $0x88] sm:$0xff]
    %v177 = vld [vmem:[#allocation11 + $0x90] sm:$0xff]
    %v178 = vld [vmem:[#allocation11 + $0x98] sm:$0xff]
    %v179 = vld [vmem:[#allocation11 + $0xa0] sm:$0xff]
    %v180 = vld [vmem:[#allocation11 + $0xa8] sm:$0xff]
    %v181 = vld [vmem:[#allocation11 + $0xb0] sm:$0xff]
    %v182 = vld [vmem:[#allocation11 + $0xb8] sm:$0xff]
    %v183 = vld [vmem:[#allocation11 + $0xc0] sm:$0xff]
    %v184 = vld [vmem:[#allocation11 + $0xc8] sm:$0xff]
    %v185 = vld [vmem:[#allocation11 + $0xd0] sm:$0xff]
    %v186 = vld [vmem:[#allocation11 + $0xd8] sm:$0xff]
    %v187 = vld [vmem:[#allocation11 + $0xe0] sm:$0xff]
    %v188 = vld [vmem:[#allocation11 + $0xe8] sm:$0xff]
    %v189 = vld [vmem:[#allocation11 + $0xf0] sm:$0xff]
    %v190 = vld [vmem:[#allocation11 + $0xf8] sm:$0xff]
    %v191 = vld [vmem:[#allocation11 + $0x100] sm:$0xff]
    %v192 = vld [vmem:[#allocation11 + $0x108] sm:$0xff]
    %v193 = vld [vmem:[#allocation11 + $0x110] sm:$0xff]
    %v194 = vld [vmem:[#allocation11 + $0x118] sm:$0xff]
    %v195 = vld [vmem:[#allocation11 + $0x120] sm:$0xff]
    %v196 = vld [vmem:[#allocation11 + $0x128] sm:$0xff]
    %v197 = vld [vmem:[#allocation11 + $0x130] sm:$0xff]
    %v198 = vld [vmem:[#allocation11 + $0x138] sm:$0xff]
    %v199 = vld [vmem:[#allocation11 + $0x140] sm:$0xff]
    %v200 = vld [vmem:[#allocation11 + $0x148] sm:$0xff]
    %v201 = vld [vmem:[#allocation11 + $0x150] sm:$0xff]
    %v202 = vld [vmem:[#allocation11 + $0x158] sm:$0xff]
    %v203 = vld [vmem:[#allocation11 + $0x160] sm:$0xff]
    %v204 = vld [vmem:[#allocation11 + $0x168] sm:$0xff]
    %v205 = vld [vmem:[#allocation11 + $0x170] sm:$0xff]
    %v206 = vld [vmem:[#allocation11 + $0x178] sm:$0xff]
    %v207 = vld [vmem:[#allocation11 + $0x180] sm:$0xff]
    %v208 = vld [vmem:[#allocation11 + $0x188] sm:$0xff]
    %v209 = vld [vmem:[#allocation11 + $0x190] sm:$0xff]
    %v210 = vld [vmem:[#allocation11 + $0x198] sm:$0xff]
    %v211 = vld [vmem:[#allocation11 + $0x1a0] sm:$0xff]
    %v212 = vld [vmem:[#allocation11 + $0x1a8] sm:$0xff]
    %v213 = vld [vmem:[#allocation11 + $0x1b0] sm:$0xff]
    %v214 = vld [vmem:[#allocation11 + $0x1b8] sm:$0xff]
    %v215 = vld [vmem:[#allocation11 + $0x1c0] sm:$0xff]
    %v216 = vld [vmem:[#allocation11 + $0x1c8] sm:$0xff]
    %v217 = vld [vmem:[#allocation11 + $0x1d0] sm:$0xff]
    %v218 = vld [vmem:[#allocation11 + $0x1d8] sm:$0xff]
    %v219 = vld [vmem:[#allocation11 + $0x1e0] sm:$0xff]
    %v220 = vld [vmem:[#allocation11 + $0x1e8] sm:$0xff]
    %v221 = vld [vmem:[#allocation11 + $0x1f0] sm:$0xff]
    %v222 = vld [vmem:[#allocation11 + $0x1f8] sm:$0xff]
    %v223 = vld [vmem:[#allocation12] sm:$0xff]
    %v224 = vld [vmem:[#allocation12 + $0x8] sm:$0xff]
    %v225 = vld [vmem:[#allocation12 + $0x10] sm:$0xff]
    %v226 = vld [vmem:[#allocation12 + $0x18] sm:$0xff]
    %v227 = vld [vmem:[#allocation12 + $0x20] sm:$0xff]
    %v228 = vld [vmem:[#allocation12 + $0x28] sm:$0xff]
    %v229 = vld [vmem:[#allocation12 + $0x30] sm:$0xff]
    %v230 = vld [vmem:[#allocation12 + $0x38] sm:$0xff]
    %v231 = vld [vmem:[#allocation12 + $0x40] sm:$0xff]
    %v232 = vld [vmem:[#allocation12 + $0x48] sm:$0xff]
    %v233 = vld [vmem:[#allocation12 + $0x50] sm:$0xff]
    %v234 = vld [vmem:[#allocation12 + $0x58] sm:$0xff]
    %v235 = vld [vmem:[#allocation12 + $0x60] sm:$0xff]
    %v236 = vld [vmem:[#allocation12 + $0x68] sm:$0xff]
    %v237 = vld [vmem:[#allocation12 + $0x70] sm:$0xff]
    %v238 = vld [vmem:[#allocation12 + $0x78] sm:$0xff]
    %v239 = vld [vmem:[#allocation12 + $0x80] sm:$0xff]
    %v240 = vld [vmem:[#allocation12 + $0x88] sm:$0xff]
    %v241 = vld [vmem:[#allocation12 + $0x90] sm:$0xff]
    %v242 = vld [vmem:[#allocation12 + $0x98] sm:$0xff]
    %v243 = vld [vmem:[#allocation12 + $0xa0] sm:$0xff]
    %v244 = vld [vmem:[#allocation12 + $0xa8] sm:$0xff]
    %v245 = vld [vmem:[#allocation12 + $0xb0] sm:$0xff]
    %v246 = vld [vmem:[#allocation12 + $0xb8] sm:$0xff]
    %v247 = vld [vmem:[#allocation12 + $0xc0] sm:$0xff]
    %v248 = vld [vmem:[#allocation12 + $0xc8] sm:$0xff]
    %v249 = vld [vmem:[#allocation12 + $0xd0] sm:$0xff]
    %v250 = vld [vmem:[#allocation12 + $0xd8] sm:$0xff]
    %v251 = vld [vmem:[#allocation12 + $0xe0] sm:$0xff]
    %v252 = vld [vmem:[#allocation12 + $0xe8] sm:$0xff]
    %v253 = vld [vmem:[#allocation12 + $0xf0] sm:$0xff]
    %v254 = vld [vmem:[#allocation12 + $0xf8] sm:$0xff]
    %v255 = vld [vmem:[#allocation12 + $0x100] sm:$0xff]
    %v256 = vld [vmem:[#allocation12 + $0x108] sm:$0xff]
    %v257 = vld [vmem:[#allocation12 + $0x110] sm:$0xff]
    %v258 = vld [vmem:[#allocation12 + $0x118] sm:$0xff]
    %v259 = vld [vmem:[#allocation12 + $0x120] sm:$0xff]
    %v260 = vld [vmem:[#allocation12 + $0x128] sm:$0xff]
    %v261 = vld [vmem:[#allocation12 + $0x130] sm:$0xff]
    %v262 = vld [vmem:[#allocation12 + $0x138] sm:$0xff]
    %v263 = vld [vmem:[#allocation12 + $0x140] sm:$0xff]
    %v264 = vld [vmem:[#allocation12 + $0x148] sm:$0xff]
    %v265 = vld [vmem:[#allocation12 + $0x150] sm:$0xff]
    %v266 = vld [vmem:[#allocation12 + $0x158] sm:$0xff]
    %v267 = vld [vmem:[#allocation12 + $0x160] sm:$0xff]
    %v268 = vld [vmem:[#allocation12 + $0x168] sm:$0xff]
    %v269 = vld [vmem:[#allocation12 + $0x170] sm:$0xff]
    %v270 = vld [vmem:[#allocation12 + $0x178] sm:$0xff]
    %v271 = vld [vmem:[#allocation12 + $0x180] sm:$0xff]
    %v272 = vld [vmem:[#allocation12 + $0x188] sm:$0xff]
    %v273 = vld [vmem:[#allocation12 + $0x190] sm:$0xff]
    %v274 = vld [vmem:[#allocation12 + $0x198] sm:$0xff]
    %v275 = vld [vmem:[#allocation12 + $0x1a0] sm:$0xff]
    %v276 = vld [vmem:[#allocation12 + $0x1a8] sm:$0xff]
    %v277 = vld [vmem:[#allocation12 + $0x1b0] sm:$0xff]
    %v278 = vld [vmem:[#allocation12 + $0x1b8] sm:$0xff]
    %v279 = vld [vmem:[#allocation12 + $0x1c0] sm:$0xff]
    %v280 = vld [vmem:[#allocation12 + $0x1c8] sm:$0xff]
    %v281 = vld [vmem:[#allocation12 + $0x1d0] sm:$0xff]
    %v282 = vld [vmem:[#allocation12 + $0x1d8] sm:$0xff]
    %v283 = vld [vmem:[#allocation12 + $0x1e0] sm:$0xff]
    %v284 = vld [vmem:[#allocation12 + $0x1e8] sm:$0xff]
    %v285 = vld [vmem:[#allocation12 + $0x1f0] sm:$0xff]
    %v286 = vld [vmem:[#allocation12 + $0x1f8] sm:$0xff]
    %v287 = vld [vmem:[#allocation14] sm:$0xf]
    %v288 = vld [vmem:[#allocation2] sm:$0xff]
    %v289 = vld [vmem:[#allocation3] sm:$0xff]
    %v290 = vld [vmem:[#allocation4] sm:$0xff]
    %v291 = vld [vmem:[#allocation5] sm:$0xff]
    %v292 = vld [vmem:[#allocation6] sm:$0xff]
    %v293 = vld [vmem:[#allocation6 + $0x8] sm:$0xff]
    %v294 = vld [vmem:[#allocation6 + $0x10] sm:$0xff]
    %v295 = vld [vmem:[#allocation6 + $0x18] sm:$0xff]
    %296 = vmatprep.subr.mxu0 %v96
    %297 = vmatpush1.msra.mxu0 %v95
    %298 = vmatprep.subr.mxu0 %v100
    %299 = vmatpush1.msra.mxu0 %v99
    %300 = vmatprep.subr.mxu0 %v104
    %301 = vmatpush1.msra.mxu0 %v103
    %302 = vmatprep.subr.mxu0 %v108
    %303 = vmatpush1.msra.mxu0 %v107
    %304 = vmatprep.subr.mxu0 %v112
    %305 = vmatpush1.msra.mxu0 %v111
    %306 = vmatprep.subr.mxu0 %v116
    %307 = vmatpush1.msra.mxu0 %v115
    %308 = vmatprep.subr.mxu0 %v120
    %309 = vmatpush1.msra.mxu0 %v119
    %310 = vmatprep.subr.mxu0 %v124
    %311 = vmatpush1.msra.mxu0 %v123
    %312 = vmatprep.subr.mxu0 %v128
    %313 = vmatpush1.msra.mxu0 %v127
    %314 = vmatprep.subr.mxu0 %v132
    %315 = vmatpush1.msra.mxu0 %v131
    %316 = vmatprep.subr.mxu0 %v136
    %317 = vmatpush1.msra.mxu0 %v135
    %318 = vmatprep.subr.mxu0 %v140
    %319 = vmatpush1.msra.mxu0 %v139
    %320 = vmatprep.subr.mxu0 %v144
    %321 = vmatpush1.msra.mxu0 %v143
    %322 = vmatprep.subr.mxu0 %v148
    %323 = vmatpush1.msra.mxu0 %v147
    %324 = vmatprep.subr.mxu0 %v152
    %325 = vmatpush1.msra.mxu0 %v151
    %326 = vmatprep.subr.mxu0 %v156
    %327 = vmatpush1.msra.mxu0 %v155
    %328 = vmatprep.subr.mxu0 0.0
    %329 = vmatpush1.msra.mxu0 0.0
    %330 = vmatprep.subr.mxu0 0.0
    %331 = vmatpush1.msra.mxu0 0.0
    %332 = vmatprep.subr.mxu0 0.0
    %333 = vmatpush1.msra.mxu0 0.0
    %334 = vmatprep.subr.mxu0 0.0
    %335 = vmatpush1.msra.mxu0 0.0
    %336 = vmatprep.subr.mxu0 0.0
    %337 = vmatpush1.msra.mxu0 0.0
    %338 = vmatprep.subr.mxu0 0.0
    %339 = vmatpush1.msra.mxu0 0.0
    %340 = vmatprep.subr.mxu0 0.0
    %341 = vmatpush1.msra.mxu0 0.0
    %342 = vmatprep.subr.mxu0 0.0
    %343 = vmatpush1.msra.mxu0 0.0
    %344 = vmatprep.subr.mxu0 0.0
    %345 = vmatpush1.msra.mxu0 0.0
    %346 = vmatprep.subr.mxu0 0.0
    %347 = vmatpush1.msra.mxu0 0.0
    %348 = vmatprep.subr.mxu0 0.0
    %349 = vmatpush1.msra.mxu0 0.0
    %350 = vmatprep.subr.mxu0 0.0
    %351 = vmatpush1.msra.mxu0 0.0
    %352 = vmatprep.subr.mxu0 0.0
    %353 = vmatpush1.msra.mxu0 0.0
    %354 = vmatprep.subr.mxu0 0.0
    %355 = vmatpush1.msra.mxu0 0.0
    %356 = vmatprep.subr.mxu0 0.0
    %357 = vmatpush1.msra.mxu0 0.0
    %358 = vmatprep.subr.mxu0 0.0
    %359 = vmatpush1.msra.mxu0 0.0
    %360 = vmatprep.mubr.f32.mxu0 0.0
    %361 = vmatmul.mubr.f32.gmra.mrb[0].mxu0 %v288
    %v362 = vpop.f32.mrb[0].mxu0
    %v363 = vadd.f32 0.0, %v362
    %v364 = vpop.f32.mrb[0].mxu0
    %v365 = vadd.f32 0.0, %v364
    %366 = vdwg.mxu0
    %367 = vmatprep.subr.mxu0 %v98
    %368 = vmatpush1.msra.mxu0 %v97
    %369 = vmatprep.subr.mxu0 %v102
    %370 = vmatpush1.msra.mxu0 %v101
    %371 = vmatprep.subr.mxu0 %v106
    %372 = vmatpush1.msra.mxu0 %v105
    %373 = vmatprep.subr.mxu0 %v110
    %374 = vmatpush1.msra.mxu0 %v109
    %375 = vmatprep.subr.mxu0 %v114
    %376 = vmatpush1.msra.mxu0 %v113
    %377 = vmatprep.subr.mxu0 %v118
    %378 = vmatpush1.msra.mxu0 %v117
    %379 = vmatprep.subr.mxu0 %v122
    %380 = vmatpush1.msra.mxu0 %v121
    %381 = vmatprep.subr.mxu0 %v126
    %382 = vmatpush1.msra.mxu0 %v125
    %383 = vmatprep.subr.mxu0 %v130
    %384 = vmatpush1.msra.mxu0 %v129
    %385 = vmatprep.subr.mxu0 %v134
    %386 = vmatpush1.msra.mxu0 %v133
    %387 = vmatprep.subr.mxu0 %v138
    %388 = vmatpush1.msra.mxu0 %v137
    %389 = vmatprep.subr.mxu0 %v142
    %390 = vmatpush1.msra.mxu0 %v141
    %391 = vmatprep.subr.mxu0 %v146
    %392 = vmatpush1.msra.mxu0 %v145
    %393 = vmatprep.subr.mxu0 %v150
    %394 = vmatpush1.msra.mxu0 %v149
    %395 = vmatprep.subr.mxu0 %v154
    %396 = vmatpush1.msra.mxu0 %v153
    %397 = vmatprep.subr.mxu0 %v158
    %398 = vmatpush1.msra.mxu0 %v157
    %399 = vmatprep.subr.mxu0 0.0
    %400 = vmatpush1.msra.mxu0 0.0
    %401 = vmatprep.subr.mxu0 0.0
    %402 = vmatpush1.msra.mxu0 0.0
    %403 = vmatprep.subr.mxu0 0.0
    %404 = vmatpush1.msra.mxu0 0.0
    %405 = vmatprep.subr.mxu0 0.0
    %406 = vmatpush1.msra.mxu0 0.0
    %407 = vmatprep.subr.mxu0 0.0
    %408 = vmatpush1.msra.mxu0 0.0
    %409 = vmatprep.subr.mxu0 0.0
    %410 = vmatpush1.msra.mxu0 0.0
    %411 = vmatprep.subr.mxu0 0.0
    %412 = vmatpush1.msra.mxu0 0.0
    %413 = vmatprep.subr.mxu0 0.0
    %414 = vmatpush1.msra.mxu0 0.0
    %415 = vmatprep.subr.mxu0 0.0
    %416 = vmatpush1.msra.mxu0 0.0
    %417 = vmatprep.subr.mxu0 0.0
    %418 = vmatpush1.msra.mxu0 0.0
    %419 = vmatprep.subr.mxu0 0.0
    %420 = vmatpush1.msra.mxu0 0.0
    %421 = vmatprep.subr.mxu0 0.0
    %422 = vmatpush1.msra.mxu0 0.0
    %423 = vmatprep.subr.mxu0 0.0
    %424 = vmatpush1.msra.mxu0 0.0
    %425 = vmatprep.subr.mxu0 0.0
    %426 = vmatpush1.msra.mxu0 0.0
    %427 = vmatprep.subr.mxu0 0.0
    %428 = vmatpush1.msra.mxu0 0.0
    %429 = vmatprep.subr.mxu0 0.0
    %430 = vmatpush1.msra.mxu0 0.0
    %431 = vmatprep.mubr.f32.mxu0 0.0
    %432 = vmatmul.mubr.f32.gmra.mrb[0].mxu0 %v288
    %v433 = vpop.f32.mrb[0].mxu0
    %v434 = vadd.f32 0.0, %v433
    %v435 = vpop.f32.mrb[0].mxu0
    %v436 = vadd.f32 0.0, %v435
    %437 = vdwg.mxu0
    %v438 = vadd.f32 %v292, %v363
    %v439 = vadd.f32 %v293, %v365
    %v440 = vadd.f32 %v294, %v434
    %v441 = vadd.f32 %v295, %v436
    %v442 = vxor.u32 %v438, 2147483648
    %v443 = vmul.f32 %v442, 1.442695
    %v444 = vpow.pop %v443
    %v445 = vadd.f32 %v444, 1.0
    %v446 = vrcp.pop %v445
    %v447 = vmul.f32 1.0, %v446
    %v448 = vxor.u32 %v439, 2147483648
    %v449 = vmul.f32 %v448, 1.442695
    %v450 = vpow.pop %v449
    %v451 = vadd.f32 %v450, 1.0
    %v452 = vrcp.pop %v451
    %v453 = vmul.f32 1.0, %v452
    %v454 = vtanh.pop %v440
    %v455 = vxor.u32 %v441, 2147483648
    %v456 = vmul.f32 %v455, 1.442695
    %v457 = vpow.pop %v456
    %v458 = vadd.f32 %v457, 1.0
    %v459 = vrcp.pop %v458
    %v460 = vmul.f32 1.0, %v459
    %v461 = vmul.f32 %v453, %v289
    %v462 = vmul.f32 %v447, %v454
    %v463 = vadd.f32 %v461, %v462
    %v464 = vtanh.pop %v463
    %v465 = vmul.f32 %v460, %v464
    %466 = vmatprep.subr.mxu0 %v224
    %467 = vmatpush1.msra.mxu0 %v223
    %468 = vmatprep.subr.mxu0 %v228
    %469 = vmatpush1.msra.mxu0 %v227
    %470 = vmatprep.subr.mxu0 %v232
    %471 = vmatpush1.msra.mxu0 %v231
    %472 = vmatprep.subr.mxu0 %v236
    %473 = vmatpush1.msra.mxu0 %v235
    %474 = vmatprep.subr.mxu0 %v240
    %475 = vmatpush1.msra.mxu0 %v239
    %476 = vmatprep.subr.mxu0 %v244
    %477 = vmatpush1.msra.mxu0 %v243
    %478 = vmatprep.subr.mxu0 %v248
    %479 = vmatpush1.msra.mxu0 %v247
    %480 = vmatprep.subr.mxu0 %v252
    %481 = vmatpush1.msra.mxu0 %v251
    %482 = vmatprep.subr.mxu0 %v256
    %483 = vmatpush1.msra.mxu0 %v255
    %484 = vmatprep.subr.mxu0 %v260
    %485 = vmatpush1.msra.mxu0 %v259
    %486 = vmatprep.subr.mxu0 %v264
    %487 = vmatpush1.msra.mxu0 %v263
    %488 = vmatprep.subr.mxu0 %v268
    %489 = vmatpush1.msra.mxu0 %v267
    %490 = vmatprep.subr.mxu0 %v272
    %491 = vmatpush1.msra.mxu0 %v271
    %492 = vmatprep.subr.mxu0 %v276
    %493 = vmatpush1.msra.mxu0 %v275
    %494 = vmatprep.subr.mxu0 %v280
    %495 = vmatpush1.msra.mxu0 %v279
    %496 = vmatprep.subr.mxu0 %v284
    %497 = vmatpush1.msra.mxu0 %v283
    %498 = vmatprep.subr.mxu0 0.0
    %499 = vmatpush1.msra.mxu0 0.0
    %500 = vmatprep.subr.mxu0 0.0
    %501 = vmatpush1.msra.mxu0 0.0
    %502 = vmatprep.subr.mxu0 0.0
    %503 = vmatpush1.msra.mxu0 0.0
    %504 = vmatprep.subr.mxu0 0.0
    %505 = vmatpush1.msra.mxu0 0.0
    %506 = vmatprep.subr.mxu0 0.0
    %507 = vmatpush1.msra.mxu0 0.0
    %508 = vmatprep.subr.mxu0 0.0
    %509 = vmatpush1.msra.mxu0 0.0
    %510 = vmatprep.subr.mxu0 0.0
    %511 = vmatpush1.msra.mxu0 0.0
    %512 = vmatprep.subr.mxu0 0.0
    %513 = vmatpush1.msra.mxu0 0.0
    %514 = vmatprep.subr.mxu0 0.0
    %515 = vmatpush1.msra.mxu0 0.0
    %516 = vmatprep.subr.mxu0 0.0
    %517 = vmatpush1.msra.mxu0 0.0
    %518 = vmatprep.subr.mxu0 0.0
    %519 = vmatpush1.msra.mxu0 0.0
    %520 = vmatprep.subr.mxu0 0.0
    %521 = vmatpush1.msra.mxu0 0.0
    %522 = vmatprep.subr.mxu0 0.0
    %523 = vmatpush1.msra.mxu0 0.0
    %524 = vmatprep.subr.mxu0 0.0
    %525 = vmatpush1.msra.mxu0 0.0
    %526 = vmatprep.subr.mxu0 0.0
    %527 = vmatpush1.msra.mxu0 0.0
    %528 = vmatprep.subr.mxu0 0.0
    %529 = vmatpush1.msra.mxu0 0.0
    %530 = vmatprep.mubr.f32.mxu0 0.0
    %531 = vmatmul.mubr.f32.gmra.mrb[0].mxu0 %v290
    %v532 = vpop.f32.mrb[0].mxu0
    %v533 = vadd.f32 0.0, %v532
    %v534 = vpop.f32.mrb[0].mxu0
    %v535 = vadd.f32 0.0, %v534
    %536 = vdwg.mxu0
    %537 = vmatprep.subr.mxu0 %v226
    %538 = vmatpush1.msra.mxu0 %v225
    %539 = vmatprep.subr.mxu0 %v230
    %540 = vmatpush1.msra.mxu0 %v229
    %541 = vmatprep.subr.mxu0 %v234
    %542 = vmatpush1.msra.mxu0 %v233
    %543 = vmatprep.subr.mxu0 %v238
    %544 = vmatpush1.msra.mxu0 %v237
    %545 = vmatprep.subr.mxu0 %v242
    %546 = vmatpush1.msra.mxu0 %v241
    %547 = vmatprep.subr.mxu0 %v246
    %548 = vmatpush1.msra.mxu0 %v245
    %549 = vmatprep.subr.mxu0 %v250
    %550 = vmatpush1.msra.mxu0 %v249
    %551 = vmatprep.subr.mxu0 %v254
    %552 = vmatpush1.msra.mxu0 %v253
    %553 = vmatprep.subr.mxu0 %v258
    %554 = vmatpush1.msra.mxu0 %v257
    %555 = vmatprep.subr.mxu0 %v262
    %556 = vmatpush1.msra.mxu0 %v261
    %557 = vmatprep.subr.mxu0 %v266
    %558 = vmatpush1.msra.mxu0 %v265
    %559 = vmatprep.subr.mxu0 %v270
    %560 = vmatpush1.msra.mxu0 %v269
    %561 = vmatprep.subr.mxu0 %v274
    %562 = vmatpush1.msra.mxu0 %v273
    %563 = vmatprep.subr.mxu0 %v278
    %564 = vmatpush1.msra.mxu0 %v277
    %565 = vmatprep.subr.mxu0 %v282
    %566 = vmatpush1.msra.mxu0 %v281
    %567 = vmatprep.subr.mxu0 %v286
    %568 = vmatpush1.msra.mxu0 %v285
    %569 = vmatprep.subr.mxu0 0.0
    %570 = vmatpush1.msra.mxu0 0.0
    %571 = vmatprep.subr.mxu0 0.0
    %572 = vmatpush1.msra.mxu0 0.0
    %573 = vmatprep.subr.mxu0 0.0
    %574 = vmatpush1.msra.mxu0 0.0
    %575 = vmatprep.subr.mxu0 0.0
    %576 = vmatpush1.msra.mxu0 0.0
    %577 = vmatprep.subr.mxu0 0.0
    %578 = vmatpush1.msra.mxu0 0.0
    %579 = vmatprep.subr.mxu0 0.0
    %580 = vmatpush1.msra.mxu0 0.0
    %581 = vmatprep.subr.mxu0 0.0
    %582 = vmatpush1.msra.mxu0 0.0
    %583 = vmatprep.subr.mxu0 0.0
    %584 = vmatpush1.msra.mxu0 0.0
    %585 = vmatprep.subr.mxu0 0.0
    %586 = vmatpush1.msra.mxu0 0.0
    %587 = vmatprep.subr.mxu0 0.0
    %588 = vmatpush1.msra.mxu0 0.0
    %589 = vmatprep.subr.mxu0 0.0
    %590 = vmatpush1.msra.mxu0 0.0
    %591 = vmatprep.subr.mxu0 0.0
    %592 = vmatpush1.msra.mxu0 0.0
    %593 = vmatprep.subr.mxu0 0.0
    %594 = vmatpush1.msra.mxu0 0.0
    %595 = vmatprep.subr.mxu0 0.0
    %596 = vmatpush1.msra.mxu0 0.0
    %597 = vmatprep.subr.mxu0 0.0
    %598 = vmatpush1.msra.mxu0 0.0
    %599 = vmatprep.subr.mxu0 0.0
    %600 = vmatpush1.msra.mxu0 0.0
    %601 = vmatprep.mubr.f32.mxu0 0.0
    %602 = vmatmul.mubr.f32.gmra.mrb[0].mxu0 %v290
    %v603 = vpop.f32.mrb[0].mxu0
    %v604 = vadd.f32 0.0, %v603
    %v605 = vpop.f32.mrb[0].mxu0
    %v606 = vadd.f32 0.0, %v605
    %607 = vdwg.mxu0
    %608 = vmatprep.subr.mxu0 %v160
    %609 = vmatpush1.msra.mxu0 %v159
    %610 = vmatprep.subr.mxu0 %v164
    %611 = vmatpush1.msra.mxu0 %v163
    %612 = vmatprep.subr.mxu0 %v168
    %613 = vmatpush1.msra.mxu0 %v167
    %614 = vmatprep.subr.mxu0 %v172
    %615 = vmatpush1.msra.mxu0 %v171
    %616 = vmatprep.subr.mxu0 %v176
    %617 = vmatpush1.msra.mxu0 %v175
    %618 = vmatprep.subr.mxu0 %v180
    %619 = vmatpush1.msra.mxu0 %v179
    %620 = vmatprep.subr.mxu0 %v184
    %621 = vmatpush1.msra.mxu0 %v183
    %622 = vmatprep.subr.mxu0 %v188
    %623 = vmatpush1.msra.mxu0 %v187
    %624 = vmatprep.subr.mxu0 %v192
    %625 = vmatpush1.msra.mxu0 %v191
    %626 = vmatprep.subr.mxu0 %v196
    %627 = vmatpush1.msra.mxu0 %v195
    %628 = vmatprep.subr.mxu0 %v200
    %629 = vmatpush1.msra.mxu0 %v199
    %630 = vmatprep.subr.mxu0 %v204
    %631 = vmatpush1.msra.mxu0 %v203
    %632 = vmatprep.subr.mxu0 %v208
    %633 = vmatpush1.msra.mxu0 %v207
    %634 = vmatprep.subr.mxu0 %v212
    %635 = vmatpush1.msra.mxu0 %v211
    %636 = vmatprep.subr.mxu0 %v216
    %637 = vmatpush1.msra.mxu0 %v215
    %638 = vmatprep.subr.mxu0 %v220
    %639 = vmatpush1.msra.mxu0 %v219
    %640 = vmatprep.subr.mxu0 0.0
    %641 = vmatpush1.msra.mxu0 0.0
    %642 = vmatprep.subr.mxu0 0.0
    %643 = vmatpush1.msra.mxu0 0.0
    %644 = vmatprep.subr.mxu0 0.0
    %645 = vmatpush1.msra.mxu0 0.0
    %646 = vmatprep.subr.mxu0 0.0
    %647 = vmatpush1.msra.mxu0 0.0
    %648 = vmatprep.subr.mxu0 0.0
    %649 = vmatpush1.msra.mxu0 0.0
    %650 = vmatprep.subr.mxu0 0.0
    %651 = vmatpush1.msra.mxu0 0.0
    %652 = vmatprep.subr.mxu0 0.0
    %653 = vmatpush1.msra.mxu0 0.0
    %654 = vmatprep.subr.mxu0 0.0
    %655 = vmatpush1.msra.mxu0 0.0
    %656 = vmatprep.subr.mxu0 0.0
    %657 = vmatpush1.msra.mxu0 0.0
    %658 = vmatprep.subr.mxu0 0.0
    %659 = vmatpush1.msra.mxu0 0.0
    %660 = vmatprep.subr.mxu0 0.0
    %661 = vmatpush1.msra.mxu0 0.0
    %662 = vmatprep.subr.mxu0 0.0
    %663 = vmatpush1.msra.mxu0 0.0
    %664 = vmatprep.subr.mxu0 0.0
    %665 = vmatpush1.msra.mxu0 0.0
    %666 = vmatprep.subr.mxu0 0.0
    %667 = vmatpush1.msra.mxu0 0.0
    %668 = vmatprep.subr.mxu0 0.0
    %669 = vmatpush1.msra.mxu0 0.0
    %670 = vmatprep.subr.mxu0 0.0
    %671 = vmatpush1.msra.mxu0 0.0
    %672 = vmatprep.mubr.f32.mxu0 0.0
    %673 = vmatmul.mubr.f32.gmra.mrb[0].mxu0 %v465
    %v674 = vpop.f32.mrb[0].mxu0
    %v675 = vadd.f32 %v533, %v674
    %v676 = vpop.f32.mrb[0].mxu0
    %v677 = vadd.f32 %v535, %v676
    %678 = vdwg.mxu0
    %679 = vmatprep.subr.mxu0 %v162
    %680 = vmatpush1.msra.mxu0 %v161
    %681 = vmatprep.subr.mxu0 %v166
    %682 = vmatpush1.msra.mxu0 %v165
    %683 = vmatprep.subr.mxu0 %v170
    %684 = vmatpush1.msra.mxu0 %v169
    %685 = vmatprep.subr.mxu0 %v174
    %686 = vmatpush1.msra.mxu0 %v173
    %687 = vmatprep.subr.mxu0 %v178
    %688 = vmatpush1.msra.mxu0 %v177
    %689 = vmatprep.subr.mxu0 %v182
    %690 = vmatpush1.msra.mxu0 %v181
    %691 = vmatprep.subr.mxu0 %v186
    %692 = vmatpush1.msra.mxu0 %v185
    %693 = vmatprep.subr.mxu0 %v190
    %694 = vmatpush1.msra.mxu0 %v189
    %695 = vmatprep.subr.mxu0 %v194
    %696 = vmatpush1.msra.mxu0 %v193
    %697 = vmatprep.subr.mxu0 %v198
    %698 = vmatpush1.msra.mxu0 %v197
    %699 = vmatprep.subr.mxu0 %v202
    %700 = vmatpush1.msra.mxu0 %v201
    %701 = vmatprep.subr.mxu0 %v206
    %702 = vmatpush1.msra.mxu0 %v205
    %703 = vmatprep.subr.mxu0 %v210
    %704 = vmatpush1.msra.mxu0 %v209
    %705 = vmatprep.subr.mxu0 %v214
    %706 = vmatpush1.msra.mxu0 %v213
    %707 = vmatprep.subr.mxu0 %v218
    %708 = vmatpush1.msra.mxu0 %v217
    %709 = vmatprep.subr.mxu0 %v222
    %710 = vmatpush1.msra.mxu0 %v221
    %711 = vmatprep.subr.mxu0 0.0
    %712 = vmatpush1.msra.mxu0 0.0
    %713 = vmatprep.subr.mxu0 0.0
    %714 = vmatpush1.msra.mxu0 0.0
    %715 = vmatprep.subr.mxu0 0.0
    %716 = vmatpush1.msra.mxu0 0.0
    %717 = vmatprep.subr.mxu0 0.0
    %718 = vmatpush1.msra.mxu0 0.0
    %719 = vmatprep.subr.mxu0 0.0
    %720 = vmatpush1.msra.mxu0 0.0
    %721 = vmatprep.subr.mxu0 0.0
    %722 = vmatpush1.msra.mxu0 0.0
    %723 = vmatprep.subr.mxu0 0.0
    %724 = vmatpush1.msra.mxu0 0.0
    %725 = vmatprep.subr.mxu0 0.0
    %726 = vmatpush1.msra.mxu0 0.0
    %727 = vmatprep.subr.mxu0 0.0
    %728 = vmatpush1.msra.mxu0 0.0
    %729 = vmatprep.subr.mxu0 0.0
    %730 = vmatpush1.msra.mxu0 0.0
    %731 = vmatprep.subr.mxu0 0.0
    %732 = vmatpush1.msra.mxu0 0.0
    %733 = vmatprep.subr.mxu0 0.0
    %734 = vmatpush1.msra.mxu0 0.0
    %735 = vmatprep.subr.mxu0 0.0
    %736 = vmatpush1.msra.mxu0 0.0
    %737 = vmatprep.subr.mxu0 0.0
    %738 = vmatpush1.msra.mxu0 0.0
    %739 = vmatprep.subr.mxu0 0.0
    %740 = vmatpush1.msra.mxu0 0.0
    %741 = vmatprep.subr.mxu0 0.0
    %742 = vmatpush1.msra.mxu0 0.0
    %743 = vmatprep.mubr.f32.mxu0 0.0
    %744 = vmatmul.mubr.f32.gmra.mrb[0].mxu0 %v465
    %v745 = vpop.f32.mrb[0].mxu0
    %v746 = vadd.f32 %v604, %v745
    %v747 = vpop.f32.mrb[0].mxu0
    %v748 = vadd.f32 %v606, %v747
    %749 = vdwg.mxu0
    %v751 = vlaneseq
    %v752 = vshrl.u32 %v751, 7
    %v753 = vsub.s32 0, %v752
    %v754 = vrot.slane %v287, %v753
    %v755 = vlaneseq
    %v756 = vshrl.u32 %v755, 7
    %v757 = vsub.s32 1, %v756
    %v758 = vrot.slane %v287, %v757
    %v759 = vlaneseq
    %v760 = vshrl.u32 %v759, 7
    %v761 = vsub.s32 2, %v760
    %v762 = vrot.slane %v287, %v761
    %v763 = vlaneseq
    %v764 = vshrl.u32 %v763, 7
    %v765 = vsub.s32 3, %v764
    %v766 = vrot.slane %v287, %v765
    %v771 = vadd.f32 %v675, %v754
    %v772 = vadd.f32 %v677, %v758
    %v773 = vadd.f32 %v746, %v762
    %v774 = vadd.f32 %v748, %v766
    %v775 = vxor.u32 %v771, 2147483648
    %v776 = vmul.f32 %v775, 1.442695
    %v777 = vpow.pop %v776
    %v778 = vadd.f32 %v777, 1.0
    %v779 = vrcp.pop %v778
    %v780 = vmul.f32 1.0, %v779
    %v781 = vxor.u32 %v772, 2147483648
    %v782 = vmul.f32 %v781, 1.442695
    %v783 = vpow.pop %v782
    %v784 = vadd.f32 %v783, 1.0
    %v785 = vrcp.pop %v784
    %v786 = vmul.f32 1.0, %v785
    %v787 = vtanh.pop %v773
    %v788 = vxor.u32 %v774, 2147483648
    %v789 = vmul.f32 %v788, 1.442695
    %v790 = vpow.pop %v789
    %v791 = vadd.f32 %v790, 1.0
    %v792 = vrcp.pop %v791
    %v793 = vmul.f32 1.0, %v792
    %v794 = vmul.f32 %v786, %v291
    %v795 = vmul.f32 %v780, %v787
    %v796 = vadd.f32 %v794, %v795
    %v797 = vtanh.pop %v796
    %v798 = vmul.f32 %v793, %v797
    %799 = vst [vmem:[#allocation15] sm:$0xff] %v798
    %s800 = scalar_lea.vmem [#allocation6], 32
    %v801 = vld [vmem:[%s800] sm:$0xff]
    %v802 = vld [vmem:[%s800 + $0x8] sm:$0xff]
    %v803 = vld [vmem:[%s800 + $0x10] sm:$0xff]
    %v804 = vld [vmem:[%s800 + $0x18] sm:$0xff]
    %805 = vmatprep.subr.mxu0 %v96
    %806 = vmatpush1.msra.mxu0 %v95
    %807 = vmatprep.subr.mxu0 %v100
    %808 = vmatpush1.msra.mxu0 %v99
    %809 = vmatprep.subr.mxu0 %v104
    %810 = vmatpush1.msra.mxu0 %v103
    %811 = vmatprep.subr.mxu0 %v108
    %812 = vmatpush1.msra.mxu0 %v107
    %813 = vmatprep.subr.mxu0 %v112
    %814 = vmatpush1.msra.mxu0 %v111
    %815 = vmatprep.subr.mxu0 %v116
    %816 = vmatpush1.msra.mxu0 %v115
    %817 = vmatprep.subr.mxu0 %v120
    %818 = vmatpush1.msra.mxu0 %v119
    %819 = vmatprep.subr.mxu0 %v124
    %820 = vmatpush1.msra.mxu0 %v123
    %821 = vmatprep.subr.mxu0 %v128
    %822 = vmatpush1.msra.mxu0 %v127
    %823 = vmatprep.subr.mxu0 %v132
    %824 = vmatpush1.msra.mxu0 %v131
    %825 = vmatprep.subr.mxu0 %v136
    %826 = vmatpush1.msra.mxu0 %v135
    %827 = vmatprep.subr.mxu0 %v140
    %828 = vmatpush1.msra.mxu0 %v139
    %829 = vmatprep.subr.mxu0 %v144
    %830 = vmatpush1.msra.mxu0 %v143
    %831 = vmatprep.subr.mxu0 %v148
    %832 = vmatpush1.msra.mxu0 %v147
    %833 = vmatprep.subr.mxu0 %v152
    %834 = vmatpush1.msra.mxu0 %v151
    %835 = vmatprep.subr.mxu0 %v156
    %836 = vmatpush1.msra.mxu0 %v155
    %837 = vmatprep.subr.mxu0 0.0
    %838 = vmatpush1.msra.mxu0 0.0
    %839 = vmatprep.subr.mxu0 0.0
    %840 = vmatpush1.msra.mxu0 0.0
    %841 = vmatprep.subr.mxu0 0.0
    %842 = vmatpush1.msra.mxu0 0.0
    %843 = vmatprep.subr.mxu0 0.0
    %844 = vmatpush1.msra.mxu0 0.0
    %845 = vmatprep.subr.mxu0 0.0
    %846 = vmatpush1.msra.mxu0 0.0
    %847 = vmatprep.subr.mxu0 0.0
    %848 = vmatpush1.msra.mxu0 0.0
    %849 = vmatprep.subr.mxu0 0.0
    %850 = vmatpush1.msra.mxu0 0.0
    %851 = vmatprep.subr.mxu0 0.0
    %852 = vmatpush1.msra.mxu0 0.0
    %853 = vmatprep.subr.mxu0 0.0
    %854 = vmatpush1.msra.mxu0 0.0
    %855 = vmatprep.subr.mxu0 0.0
    %856 = vmatpush1.msra.mxu0 0.0
    %857 = vmatprep.subr.mxu0 0.0
    %858 = vmatpush1.msra.mxu0 0.0
    %859 = vmatprep.subr.mxu0 0.0
    %860 = vmatpush1.msra.mxu0 0.0
    %861 = vmatprep.subr.mxu0 0.0
    %862 = vmatpush1.msra.mxu0 0.0
    %863 = vmatprep.subr.mxu0 0.0
    %864 = vmatpush1.msra.mxu0 0.0
    %865 = vmatprep.subr.mxu0 0.0
    %866 = vmatpush1.msra.mxu0 0.0
    %867 = vmatprep.subr.mxu0 0.0
    %868 = vmatpush1.msra.mxu0 0.0
    %869 = vmatprep.mubr.f32.mxu0 0.0
    %870 = vmatmul.mubr.f32.gmra.mrb[0].mxu0 %v465
    %v871 = vpop.f32.mrb[0].mxu0
    %v872 = vadd.f32 0.0, %v871
    %v873 = vpop.f32.mrb[0].mxu0
    %v874 = vadd.f32 0.0, %v873
    %875 = vdwg.mxu0
    %876 = vmatprep.subr.mxu0 %v98
    %877 = vmatpush1.msra.mxu0 %v97
    %878 = vmatprep.subr.mxu0 %v102
    %879 = vmatpush1.msra.mxu0 %v101
    %880 = vmatprep.subr.mxu0 %v106
    %881 = vmatpush1.msra.mxu0 %v105
    %882 = vmatprep.subr.mxu0 %v110
    %883 = vmatpush1.msra.mxu0 %v109
    %884 = vmatprep.subr.mxu0 %v114
    %885 = vmatpush1.msra.mxu0 %v113
    %886 = vmatprep.subr.mxu0 %v118
    %887 = vmatpush1.msra.mxu0 %v117
    %888 = vmatprep.subr.mxu0 %v122
    %889 = vmatpush1.msra.mxu0 %v121
    %890 = vmatprep.subr.mxu0 %v126
    %891 = vmatpush1.msra.mxu0 %v125
    %892 = vmatprep.subr.mxu0 %v130
    %893 = vmatpush1.msra.mxu0 %v129
    %894 = vmatprep.subr.mxu0 %v134
    %895 = vmatpush1.msra.mxu0 %v133
    %896 = vmatprep.subr.mxu0 %v138
    %897 = vmatpush1.msra.mxu0 %v137
    %898 = vmatprep.subr.mxu0 %v142
    %899 = vmatpush1.msra.mxu0 %v141
    %900 = vmatprep.subr.mxu0 %v146
    %901 = vmatpush1.msra.mxu0 %v145
    %902 = vmatprep.subr.mxu0 %v150
    %903 = vmatpush1.msra.mxu0 %v149
    %904 = vmatprep.subr.mxu0 %v154
    %905 = vmatpush1.msra.mxu0 %v153
    %906 = vmatprep.subr.mxu0 %v158
    %907 = vmatpush1.msra.mxu0 %v157
    %908 = vmatprep.subr.mxu0 0.0
    %909 = vmatpush1.msra.mxu0 0.0
    %910 = vmatprep.subr.mxu0 0.0
    %911 = vmatpush1.msra.mxu0 0.0
    %912 = vmatprep.subr.mxu0 0.0
    %913 = vmatpush1.msra.mxu0 0.0
    %914 = vmatprep.subr.mxu0 0.0
    %915 = vmatpush1.msra.mxu0 0.0
    %916 = vmatprep.subr.mxu0 0.0
    %917 = vmatpush1.msra.mxu0 0.0
    %918 = vmatprep.subr.mxu0 0.0
    %919 = vmatpush1.msra.mxu0 0.0
    %920 = vmatprep.subr.mxu0 0.0
    %921 = vmatpush1.msra.mxu0 0.0
    %922 = vmatprep.subr.mxu0 0.0
    %923 = vmatpush1.msra.mxu0 0.0
    %924 = vmatprep.subr.mxu0 0.0
    %925 = vmatpush1.msra.mxu0 0.0
    %926 = vmatprep.subr.mxu0 0.0
    %927 = vmatpush1.msra.mxu0 0.0
    %928 = vmatprep.subr.mxu0 0.0
    %929 = vmatpush1.msra.mxu0 0.0
    %930 = vmatprep.subr.mxu0 0.0
    %931 = vmatpush1.msra.mxu0 0.0
    %932 = vmatprep.subr.mxu0 0.0
    %933 = vmatpush1.msra.mxu0 0.0
    %934 = vmatprep.subr.mxu0 0.0
    %935 = vmatpush1.msra.mxu0 0.0
    %936 = vmatprep.subr.mxu0 0.0
    %937 = vmatpush1.msra.mxu0 0.0
    %938 = vmatprep.subr.mxu0 0.0
    %939 = vmatpush1.msra.mxu0 0.0
    %940 = vmatprep.mubr.f32.mxu0 0.0
    %941 = vmatmul.mubr.f32.gmra.mrb[0].mxu0 %v465
    %v942 = vpop.f32.mrb[0].mxu0
    %v943 = vadd.f32 0.0, %v942
    %v944 = vpop.f32.mrb[0].mxu0
    %v945 = vadd.f32 0.0, %v944
    %946 = vdwg.mxu0
    %v947 = vadd.f32 %v801, %v872
    %v948 = vadd.f32 %v802, %v874
    %v949 = vadd.f32 %v803, %v943
    %v950 = vadd.f32 %v804, %v945
    %v951 = vxor.u32 %v947, 2147483648
    %v952 = vmul.f32 %v951, 1.442695
    %v953 = vpow.pop %v952
    %v954 = vadd.f32 %v953, 1.0
    %v955 = vrcp.pop %v954
    %v956 = vmul.f32 1.0, %v955
    %v957 = vxor.u32 %v948, 2147483648
    %v958 = vmul.f32 %v957, 1.442695
    %v959 = vpow.pop %v958
    %v960 = vadd.f32 %v959, 1.0
    %v961 = vrcp.pop %v960
    %v962 = vmul.f32 1.0, %v961
    %v963 = vtanh.pop %v949
    %v964 = vxor.u32 %v950, 2147483648
    %v965 = vmul.f32 %v964, 1.442695
    %v966 = vpow.pop %v965
    %v967 = vadd.f32 %v966, 1.0
    %v968 = vrcp.pop %v967
    %v969 = vmul.f32 1.0, %v968
    %v970 = vmul.f32 %v962, %v463
    %v971 = vmul.f32 %v956, %v963
    %v972 = vadd.f32 %v970, %v971
    %v973 = vtanh.pop %v972
    %v974 = vmul.f32 %v969, %v973
    %975 = vmatprep.subr.mxu0 %v224
    %976 = vmatpush1.msra.mxu0 %v223
    %977 = vmatprep.subr.mxu0 %v228
    %978 = vmatpush1.msra.mxu0 %v227
    %979 = vmatprep.subr.mxu0 %v232
    %980 = vmatpush1.msra.mxu0 %v231
    %981 = vmatprep.subr.mxu0 %v236
    %982 = vmatpush1.msra.mxu0 %v235
    %983 = vmatprep.subr.mxu0 %v240
    %984 = vmatpush1.msra.mxu0 %v239
    %985 = vmatprep.subr.mxu0 %v244
    %986 = vmatpush1.msra.mxu0 %v243
    %987 = vmatprep.subr.mxu0 %v248
    %988 = vmatpush1.msra.mxu0 %v247
    %989 = vmatprep.subr.mxu0 %v252
    %990 = vmatpush1.msra.mxu0 %v251
    %991 = vmatprep.subr.mxu0 %v256
    %992 = vmatpush1.msra.mxu0 %v255
    %993 = vmatprep.subr.mxu0 %v260
    %994 = vmatpush1.msra.mxu0 %v259
    %995 = vmatprep.subr.mxu0 %v264
    %996 = vmatpush1.msra.mxu0 %v263
    %997 = vmatprep.subr.mxu0 %v268
    %998 = vmatpush1.msra.mxu0 %v267
    %999 = vmatprep.subr.mxu0 %v272
    %1000 = vmatpush1.msra.mxu0 %v271
    %1001 = vmatprep.subr.mxu0 %v276
    %1002 = vmatpush1.msra.mxu0 %v275
    %1003 = vmatprep.subr.mxu0 %v280
    %1004 = vmatpush1.msra.mxu0 %v279
    %1005 = vmatprep.subr.mxu0 %v284
    %1006 = vmatpush1.msra.mxu0 %v283
    %1007 = vmatprep.subr.mxu0 0.0
    %1008 = vmatpush1.msra.mxu0 0.0
    %1009 = vmatprep.subr.mxu0 0.0
    %1010 = vmatpush1.msra.mxu0 0.0
    %1011 = vmatprep.subr.mxu0 0.0
    %1012 = vmatpush1.msra.mxu0 0.0
    %1013 = vmatprep.subr.mxu0 0.0
    %1014 = vmatpush1.msra.mxu0 0.0
    %1015 = vmatprep.subr.mxu0 0.0
    %1016 = vmatpush1.msra.mxu0 0.0
    %1017 = vmatprep.subr.mxu0 0.0
    %1018 = vmatpush1.msra.mxu0 0.0
    %1019 = vmatprep.subr.mxu0 0.0
    %1020 = vmatpush1.msra.mxu0 0.0
    %1021 = vmatprep.subr.mxu0 0.0
    %1022 = vmatpush1.msra.mxu0 0.0
    %1023 = vmatprep.subr.mxu0 0.0
    %1024 = vmatpush1.msra.mxu0 0.0
    %1025 = vmatprep.subr.mxu0 0.0
    %1026 = vmatpush1.msra.mxu0 0.0
    %1027 = vmatprep.subr.mxu0 0.0
    %1028 = vmatpush1.msra.mxu0 0.0
    %1029 = vmatprep.subr.mxu0 0.0
    %1030 = vmatpush1.msra.mxu0 0.0
    %1031 = vmatprep.subr.mxu0 0.0
    %1032 = vmatpush1.msra.mxu0 0.0
    %1033 = vmatprep.subr.mxu0 0.0
    %1034 = vmatpush1.msra.mxu0 0.0
    %1035 = vmatprep.subr.mxu0 0.0
    %1036 = vmatpush1.msra.mxu0 0.0
    %1037 = vmatprep.subr.mxu0 0.0
    %1038 = vmatpush1.msra.mxu0 0.0
    %1039 = vmatprep.mubr.f32.mxu0 0.0
    %1040 = vmatmul.mubr.f32.gmra.mrb[0].mxu0 %v798
    %v1041 = vpop.f32.mrb[0].mxu0
    %v1042 = vadd.f32 0.0, %v1041
    %v1043 = vpop.f32.mrb[0].mxu0
    %v1044 = vadd.f32 0.0, %v1043
    %1045 = vdwg.mxu0
    %1046 = vmatprep.subr.mxu0 %v226
    %1047 = vmatpush1.msra.mxu0 %v225
    %1048 = vmatprep.subr.mxu0 %v230
    %1049 = vmatpush1.msra.mxu0 %v229
    %1050 = vmatprep.subr.mxu0 %v234
    %1051 = vmatpush1.msra.mxu0 %v233
    %1052 = vmatprep.subr.mxu0 %v238
    %1053 = vmatpush1.msra.mxu0 %v237
    %1054 = vmatprep.subr.mxu0 %v242
    %1055 = vmatpush1.msra.mxu0 %v241
    %1056 = vmatprep.subr.mxu0 %v246
    %1057 = vmatpush1.msra.mxu0 %v245
    %1058 = vmatprep.subr.mxu0 %v250
    %1059 = vmatpush1.msra.mxu0 %v249
    %1060 = vmatprep.subr.mxu0 %v254
    %1061 = vmatpush1.msra.mxu0 %v253
    %1062 = vmatprep.subr.mxu0 %v258
    %1063 = vmatpush1.msra.mxu0 %v257
    %1064 = vmatprep.subr.mxu0 %v262
    %1065 = vmatpush1.msra.mxu0 %v261
    %1066 = vmatprep.subr.mxu0 %v266
    %1067 = vmatpush1.msra.mxu0 %v265
    %1068 = vmatprep.subr.mxu0 %v270
    %1069 = vmatpush1.msra.mxu0 %v269
    %1070 = vmatprep.subr.mxu0 %v274
    %1071 = vmatpush1.msra.mxu0 %v273
    %1072 = vmatprep.subr.mxu0 %v278
    %1073 = vmatpush1.msra.mxu0 %v277
    %1074 = vmatprep.subr.mxu0 %v282
    %1075 = vmatpush1.msra.mxu0 %v281
    %1076 = vmatprep.subr.mxu0 %v286
    %1077 = vmatpush1.msra.mxu0 %v285
    %1078 = vmatprep.subr.mxu0 0.0
    %1079 = vmatpush1.msra.mxu0 0.0
    %1080 = vmatprep.subr.mxu0 0.0
    %1081 = vmatpush1.msra.mxu0 0.0
    %1082 = vmatprep.subr.mxu0 0.0
    %1083 = vmatpush1.msra.mxu0 0.0
    %1084 = vmatprep.subr.mxu0 0.0
    %1085 = vmatpush1.msra.mxu0 0.0
    %1086 = vmatprep.subr.mxu0 0.0
    %1087 = vmatpush1.msra.mxu0 0.0
    %1088 = vmatprep.subr.mxu0 0.0
    %1089 = vmatpush1.msra.mxu0 0.0
    %1090 = vmatprep.subr.mxu0 0.0
    %1091 = vmatpush1.msra.mxu0 0.0
    %1092 = vmatprep.subr.mxu0 0.0
    %1093 = vmatpush1.msra.mxu0 0.0
    %1094 = vmatprep.subr.mxu0 0.0
    %1095 = vmatpush1.msra.mxu0 0.0
    %1096 = vmatprep.subr.mxu0 0.0
    %1097 = vmatpush1.msra.mxu0 0.0
    %1098 = vmatprep.subr.mxu0 0.0
    %1099 = vmatpush1.msra.mxu0 0.0
    %1100 = vmatprep.subr.mxu0 0.0
    %1101 = vmatpush1.msra.mxu0 0.0
    %1102 = vmatprep.subr.mxu0 0.0
    %1103 = vmatpush1.msra.mxu0 0.0
    %1104 = vmatprep.subr.mxu0 0.0
    %1105 = vmatpush1.msra.mxu0 0.0
    %1106 = vmatprep.subr.mxu0 0.0
    %1107 = vmatpush1.msra.mxu0 0.0
    %1108 = vmatprep.subr.mxu0 0.0
    %1109 = vmatpush1.msra.mxu0 0.0
    %1110 = vmatprep.mubr.f32.mxu0 0.0
    %1111 = vmatmul.mubr.f32.gmra.mrb[0].mxu0 %v798
    %v1112 = vpop.f32.mrb[0].mxu0
    %v1113 = vadd.f32 0.0, %v1112
    %v1114 = vpop.f32.mrb[0].mxu0
    %v1115 = vadd.f32 0.0, %v1114
    %1116 = vdwg.mxu0
    %1117 = vmatprep.subr.mxu0 %v160
    %1118 = vmatpush1.msra.mxu0 %v159
    %1119 = vmatprep.subr.mxu0 %v164
    %1120 = vmatpush1.msra.mxu0 %v163
    %1121 = vmatprep.subr.mxu0 %v168
    %1122 = vmatpush1.msra.mxu0 %v167
    %1123 = vmatprep.subr.mxu0 %v172
    %1124 = vmatpush1.msra.mxu0 %v171
    %1125 = vmatprep.subr.mxu0 %v176
    %1126 = vmatpush1.msra.mxu0 %v175
    %1127 = vmatprep.subr.mxu0 %v180
    %1128 = vmatpush1.msra.mxu0 %v179
    %1129 = vmatprep.subr.mxu0 %v184
    %1130 = vmatpush1.msra.mxu0 %v183
    %1131 = vmatprep.subr.mxu0 %v188
    %1132 = vmatpush1.msra.mxu0 %v187
    %1133 = vmatprep.subr.mxu0 %v192
    %1134 = vmatpush1.msra.mxu0 %v191
    %1135 = vmatprep.subr.mxu0 %v196
    %1136 = vmatpush1.msra.mxu0 %v195
    %1137 = vmatprep.subr.mxu0 %v200
    %1138 = vmatpush1.msra.mxu0 %v199
    %1139 = vmatprep.subr.mxu0 %v204
    %1140 = vmatpush1.msra.mxu0 %v203
    %1141 = vmatprep.subr.mxu0 %v208
    %1142 = vmatpush1.msra.mxu0 %v207
    %1143 = vmatprep.subr.mxu0 %v212
    %1144 = vmatpush1.msra.mxu0 %v211
    %1145 = vmatprep.subr.mxu0 %v216
    %1146 = vmatpush1.msra.mxu0 %v215
    %1147 = vmatprep.subr.mxu0 %v220
    %1148 = vmatpush1.msra.mxu0 %v219
    %1149 = vmatprep.subr.mxu0 0.0
    %1150 = vmatpush1.msra.mxu0 0.0
    %1151 = vmatprep.subr.mxu0 0.0
    %1152 = vmatpush1.msra.mxu0 0.0
    %1153 = vmatprep.subr.mxu0 0.0
    %1154 = vmatpush1.msra.mxu0 0.0
    %1155 = vmatprep.subr.mxu0 0.0
    %1156 = vmatpush1.msra.mxu0 0.0
    %1157 = vmatprep.subr.mxu0 0.0
    %1158 = vmatpush1.msra.mxu0 0.0
    %1159 = vmatprep.subr.mxu0 0.0
    %1160 = vmatpush1.msra.mxu0 0.0
    %1161 = vmatprep.subr.mxu0 0.0
    %1162 = vmatpush1.msra.mxu0 0.0
    %1163 = vmatprep.subr.mxu0 0.0
    %1164 = vmatpush1.msra.mxu0 0.0
    %1165 = vmatprep.subr.mxu0 0.0
    %1166 = vmatpush1.msra.mxu0 0.0
    %1167 = vmatprep.subr.mxu0 0.0
    %1168 = vmatpush1.msra.mxu0 0.0
    %1169 = vmatprep.subr.mxu0 0.0
    %1170 = vmatpush1.msra.mxu0 0.0
    %1171 = vmatprep.subr.mxu0 0.0
    %1172 = vmatpush1.msra.mxu0 0.0
    %1173 = vmatprep.subr.mxu0 0.0
    %1174 = vmatpush1.msra.mxu0 0.0
    %1175 = vmatprep.subr.mxu0 0.0
    %1176 = vmatpush1.msra.mxu0 0.0
    %1177 = vmatprep.subr.mxu0 0.0
    %1178 = vmatpush1.msra.mxu0 0.0
    %1179 = vmatprep.subr.mxu0 0.0
    %1180 = vmatpush1.msra.mxu0 0.0
    %1181 = vmatprep.mubr.f32.mxu0 0.0
    %1182 = vmatmul.mubr.f32.gmra.mrb[0].mxu0 %v974
    %v1183 = vpop.f32.mrb[0].mxu0
    %v1184 = vadd.f32 %v1042, %v1183
    %v1185 = vpop.f32.mrb[0].mxu0
    %v1186 = vadd.f32 %v1044, %v1185
    %1187 = vdwg.mxu0
    %1188 = vmatprep.subr.mxu0 %v162
    %1189 = vmatpush1.msra.mxu0 %v161
    %1190 = vmatprep.subr.mxu0 %v166
    %1191 = vmatpush1.msra.mxu0 %v165
    %1192 = vmatprep.subr.mxu0 %v170
    %1193 = vmatpush1.msra.mxu0 %v169
    %1194 = vmatprep.subr.mxu0 %v174
    %1195 = vmatpush1.msra.mxu0 %v173
    %1196 = vmatprep.subr.mxu0 %v178
    %1197 = vmatpush1.msra.mxu0 %v177
    %1198 = vmatprep.subr.mxu0 %v182
    %1199 = vmatpush1.msra.mxu0 %v181
    %1200 = vmatprep.subr.mxu0 %v186
    %1201 = vmatpush1.msra.mxu0 %v185
    %1202 = vmatprep.subr.mxu0 %v190
    %1203 = vmatpush1.msra.mxu0 %v189
    %1204 = vmatprep.subr.mxu0 %v194
    %1205 = vmatpush1.msra.mxu0 %v193
    %1206 = vmatprep.subr.mxu0 %v198
    %1207 = vmatpush1.msra.mxu0 %v197
    %1208 = vmatprep.subr.mxu0 %v202
    %1209 = vmatpush1.msra.mxu0 %v201
    %1210 = vmatprep.subr.mxu0 %v206
    %1211 = vmatpush1.msra.mxu0 %v205
    %1212 = vmatprep.subr.mxu0 %v210
    %1213 = vmatpush1.msra.mxu0 %v209
    %1214 = vmatprep.subr.mxu0 %v214
    %1215 = vmatpush1.msra.mxu0 %v213
    %1216 = vmatprep.subr.mxu0 %v218
    %1217 = vmatpush1.msra.mxu0 %v217
    %1218 = vmatprep.subr.mxu0 %v222
    %1219 = vmatpush1.msra.mxu0 %v221
    %1220 = vmatprep.subr.mxu0 0.0
    %1221 = vmatpush1.msra.mxu0 0.0
    %1222 = vmatprep.subr.mxu0 0.0
    %1223 = vmatpush1.msra.mxu0 0.0
    %1224 = vmatprep.subr.mxu0 0.0
    %1225 = vmatpush1.msra.mxu0 0.0
    %1226 = vmatprep.subr.mxu0 0.0
    %1227 = vmatpush1.msra.mxu0 0.0
    %1228 = vmatprep.subr.mxu0 0.0
    %1229 = vmatpush1.msra.mxu0 0.0
    %1230 = vmatprep.subr.mxu0 0.0
    %1231 = vmatpush1.msra.mxu0 0.0
    %1232 = vmatprep.subr.mxu0 0.0
    %1233 = vmatpush1.msra.mxu0 0.0
    %1234 = vmatprep.subr.mxu0 0.0
    %1235 = vmatpush1.msra.mxu0 0.0
    %1236 = vmatprep.subr.mxu0 0.0
    %1237 = vmatpush1.msra.mxu0 0.0
    %1238 = vmatprep.subr.mxu0 0.0
    %1239 = vmatpush1.msra.mxu0 0.0
    %1240 = vmatprep.subr.mxu0 0.0
    %1241 = vmatpush1.msra.mxu0 0.0
    %1242 = vmatprep.subr.mxu0 0.0
    %1243 = vmatpush1.msra.mxu0 0.0
    %1244 = vmatprep.subr.mxu0 0.0
    %1245 = vmatpush1.msra.mxu0 0.0
    %1246 = vmatprep.subr.mxu0 0.0
    %1247 = vmatpush1.msra.mxu0 0.0
    %1248 = vmatprep.subr.mxu0 0.0
    %1249 = vmatpush1.msra.mxu0 0.0
    %1250 = vmatprep.subr.mxu0 0.0
    %1251 = vmatpush1.msra.mxu0 0.0
    %1252 = vmatprep.mubr.f32.mxu0 0.0
    %1253 = vmatmul.mubr.f32.gmra.mrb[0].mxu0 %v974
    %v1254 = vpop.f32.mrb[0].mxu0
    %v1255 = vadd.f32 %v1113, %v1254
    %v1256 = vpop.f32.mrb[0].mxu0
    %v1257 = vadd.f32 %v1115, %v1256
    %1258 = vdwg.mxu0
    %v1259 = vadd.f32 %v1184, %v754
    %v1260 = vadd.f32 %v1186, %v758
    %v1261 = vadd.f32 %v1255, %v762
    %v1262 = vadd.f32 %v1257, %v766
    %v1263 = vxor.u32 %v1259, 2147483648
    %v1264 = vmul.f32 %v1263, 1.442695
    %v1265 = vpow.pop %v1264
    %v1266 = vadd.f32 %v1265, 1.0
    %v1267 = vrcp.pop %v1266
    %v1268 = vmul.f32 1.0, %v1267
    %v1269 = vxor.u32 %v1260, 2147483648
    %v1270 = vmul.f32 %v1269, 1.442695
    %v1271 = vpow.pop %v1270
    %v1272 = vadd.f32 %v1271, 1.0
    %v1273 = vrcp.pop %v1272
    %v1274 = vmul.f32 1.0, %v1273
    %v1275 = vtanh.pop %v1261
    %v1276 = vxor.u32 %v1262, 2147483648
    %v1277 = vmul.f32 %v1276, 1.442695
    %v1278 = vpow.pop %v1277
    %v1279 = vadd.f32 %v1278, 1.0
    %v1280 = vrcp.pop %v1279
    %v1281 = vmul.f32 1.0, %v1280
    %v1282 = vmul.f32 %v1274, %v796
    %v1283 = vmul.f32 %v1268, %v1275
    %v1284 = vadd.f32 %v1282, %v1283
    %v1285 = vtanh.pop %v1284
    %v1286 = vmul.f32 %v1281, %v1285
    %s1287 = scalar_lea.vmem [#allocation15], 8
    %1288 = vst [vmem:[%s1287] sm:$0xff] %v1286
    %s1289 = scalar_lea.vmem [#allocation6], 64
    %v1290 = vld [vmem:[%s1289] sm:$0xff]
    %v1291 = vld [vmem:[%s1289 + $0x8] sm:$0xff]
    %v1292 = vld [vmem:[%s1289 + $0x10] sm:$0xff]
    %v1293 = vld [vmem:[%s1289 + $0x18] sm:$0xff]
    %1294 = vmatprep.subr.mxu0 %v96
    %1295 = vmatpush1.msra.mxu0 %v95
    %1296 = vmatprep.subr.mxu0 %v100
    %1297 = vmatpush1.msra.mxu0 %v99
    %1298 = vmatprep.subr.mxu0 %v104
    %1299 = vmatpush1.msra.mxu0 %v103
    %1300 = vmatprep.subr.mxu0 %v108
    %1301 = vmatpush1.msra.mxu0 %v107
    %1302 = vmatprep.subr.mxu0 %v112
    %1303 = vmatpush1.msra.mxu0 %v111
    %1304 = vmatprep.subr.mxu0 %v116
    %1305 = vmatpush1.msra.mxu0 %v115
    %1306 = vmatprep.subr.mxu0 %v120
    %1307 = vmatpush1.msra.mxu0 %v119
    %1308 = vmatprep.subr.mxu0 %v124
    %1309 = vmatpush1.msra.mxu0 %v123
    %1310 = vmatprep.subr.mxu0 %v128
    %1311 = vmatpush1.msra.mxu0 %v127
    %1312 = vmatprep.subr.mxu0 %v132
    %1313 = vmatpush1.msra.mxu0 %v131
    %1314 = vmatprep.subr.mxu0 %v136
    %1315 = vmatpush1.msra.mxu0 %v135
    %1316 = vmatprep.subr.mxu0 %v140
    %1317 = vmatpush1.msra.mxu0 %v139
    %1318 = vmatprep.subr.mxu0 %v144
    %1319 = vmatpush1.msra.mxu0 %v143
    %1320 = vmatprep.subr.mxu0 %v148
    %1321 = vmatpush1.msra.mxu0 %v147
    %1322 = vmatprep.subr.mxu0 %v152
    %1323 = vmatpush1.msra.mxu0 %v151
    %1324 = vmatprep.subr.mxu0 %v156
    %1325 = vmatpush1.msra.mxu0 %v155
    %1326 = vmatprep.subr.mxu0 0.0
    %1327 = vmatpush1.msra.mxu0 0.0
    %1328 = vmatprep.subr.mxu0 0.0
    %1329 = vmatpush1.msra.mxu0 0.0
    %1330 = vmatprep.subr.mxu0 0.0
    %1331 = vmatpush1.msra.mxu0 0.0
    %1332 = vmatprep.subr.mxu0 0.0
    %1333 = vmatpush1.msra.mxu0 0.0
    %1334 = vmatprep.subr.mxu0 0.0
    %1335 = vmatpush1.msra.mxu0 0.0
    %1336 = vmatprep.subr.mxu0 0.0
    %1337 = vmatpush1.msra.mxu0 0.0
    %1338 = vmatprep.subr.mxu0 0.0
    %1339 = vmatpush1.msra.mxu0 0.0
    %1340 = vmatprep.subr.mxu0 0.0
    %1341 = vmatpush1.msra.mxu0 0.0
    %1342 = vmatprep.subr.mxu0 0.0
    %1343 = vmatpush1.msra.mxu0 0.0
    %1344 = vmatprep.subr.mxu0 0.0
    %1345 = vmatpush1.msra.mxu0 0.0
    %1346 = vmatprep.subr.mxu0 0.0
    %1347 = vmatpush1.msra.mxu0 0.0
    %1348 = vmatprep.subr.mxu0 0.0
    %1349 = vmatpush1.msra.mxu0 0.0
    %1350 = vmatprep.subr.mxu0 0.0
    %1351 = vmatpush1.msra.mxu0 0.0
    %1352 = vmatprep.subr.mxu0 0.0
    %1353 = vmatpush1.msra.mxu0 0.0
    %1354 = vmatprep.subr.mxu0 0.0
    %1355 = vmatpush1.msra.mxu0 0.0
    %1356 = vmatprep.subr.mxu0 0.0
    %1357 = vmatpush1.msra.mxu0 0.0
    %1358 = vmatprep.mubr.f32.mxu0 0.0
    %1359 = vmatmul.mubr.f32.gmra.mrb[0].mxu0 %v974
    %v1360 = vpop.f32.mrb[0].mxu0
    %v1361 = vadd.f32 0.0, %v1360
    %v1362 = vpop.f32.mrb[0].mxu0
    %v1363 = vadd.f32 0.0, %v1362
    %1364 = vdwg.mxu0
    %1365 = vmatprep.subr.mxu0 %v98
    %1366 = vmatpush1.msra.mxu0 %v97
    %1367 = vmatprep.subr.mxu0 %v102
    %1368 = vmatpush1.msra.mxu0 %v101
    %1369 = vmatprep.subr.mxu0 %v106
    %1370 = vmatpush1.msra.mxu0 %v105
    %1371 = vmatprep.subr.mxu0 %v110
    %1372 = vmatpush1.msra.mxu0 %v109
    %1373 = vmatprep.subr.mxu0 %v114
    %1374 = vmatpush1.msra.mxu0 %v113
    %1375 = vmatprep.subr.mxu0 %v118
    %1376 = vmatpush1.msra.mxu0 %v117
    %1377 = vmatprep.subr.mxu0 %v122
    %1378 = vmatpush1.msra.mxu0 %v121
    %1379 = vmatprep.subr.mxu0 %v126
    %1380 = vmatpush1.msra.mxu0 %v125
    %1381 = vmatprep.subr.mxu0 %v130
    %1382 = vmatpush1.msra.mxu0 %v129
    %1383 = vmatprep.subr.mxu0 %v134
    %1384 = vmatpush1.msra.mxu0 %v133
    %1385 = vmatprep.subr.mxu0 %v138
    %1386 = vmatpush1.msra.mxu0 %v137
    %1387 = vmatprep.subr.mxu0 %v142
    %1388 = vmatpush1.msra.mxu0 %v141
    %1389 = vmatprep.subr.mxu0 %v146
    %1390 = vmatpush1.msra.mxu0 %v145
    %1391 = vmatprep.subr.mxu0 %v150
    %1392 = vmatpush1.msra.mxu0 %v149
    %1393 = vmatprep.subr.mxu0 %v154
    %1394 = vmatpush1.msra.mxu0 %v153
    %1395 = vmatprep.subr.mxu0 %v158
    %1396 = vmatpush1.msra.mxu0 %v157
    %1397 = vmatprep.subr.mxu0 0.0
    %1398 = vmatpush1.msra.mxu0 0.0
    %1399 = vmatprep.subr.mxu0 0.0
    %1400 = vmatpush1.msra.mxu0 0.0
    %1401 = vmatprep.subr.mxu0 0.0
    %1402 = vmatpush1.msra.mxu0 0.0
    %1403 = vmatprep.subr.mxu0 0.0
    %1404 = vmatpush1.msra.mxu0 0.0
    %1405 = vmatprep.subr.mxu0 0.0
    %1406 = vmatpush1.msra.mxu0 0.0
    %1407 = vmatprep.subr.mxu0 0.0
    %1408 = vmatpush1.msra.mxu0 0.0
    %1409 = vmatprep.subr.mxu0 0.0
    %1410 = vmatpush1.msra.mxu0 0.0
    %1411 = vmatprep.subr.mxu0 0.0
    %1412 = vmatpush1.msra.mxu0 0.0
    %1413 = vmatprep.subr.mxu0 0.0
    %1414 = vmatpush1.msra.mxu0 0.0
    %1415 = vmatprep.subr.mxu0 0.0
    %1416 = vmatpush1.msra.mxu0 0.0
    %1417 = vmatprep.subr.mxu0 0.0
    %1418 = vmatpush1.msra.mxu0 0.0
    %1419 = vmatprep.subr.mxu0 0.0
    %1420 = vmatpush1.msra.mxu0 0.0
    %1421 = vmatprep.subr.mxu0 0.0
    %1422 = vmatpush1.msra.mxu0 0.0
    %1423 = vmatprep.subr.mxu0 0.0
    %1424 = vmatpush1.msra.mxu0 0.0
    %1425 = vmatprep.subr.mxu0 0.0
    %1426 = vmatpush1.msra.mxu0 0.0
    %1427 = vmatprep.subr.mxu0 0.0
    %1428 = vmatpush1.msra.mxu0 0.0
    %1429 = vmatprep.mubr.f32.mxu0 0.0
    %1430 = vmatmul.mubr.f32.gmra.mrb[0].mxu0 %v974
    %v1431 = vpop.f32.mrb[0].mxu0
    %v1432 = vadd.f32 0.0, %v1431
    %v1433 = vpop.f32.mrb[0].mxu0
    %v1434 = vadd.f32 0.0, %v1433
    %1435 = vdwg.mxu0
    %v1436 = vadd.f32 %v1290, %v1361
    %v1437 = vadd.f32 %v1291, %v1363
    %v1438 = vadd.f32 %v1292, %v1432
    %v1439 = vadd.f32 %v1293, %v1434
    %v1440 = vxor.u32 %v1436, 2147483648
    %v1441 = vmul.f32 %v1440, 1.442695
    %v1442 = vpow.pop %v1441
    %v1443 = vadd.f32 %v1442, 1.0
    %v1444 = vrcp.pop %v1443
    %v1445 = vmul.f32 1.0, %v1444
    %v1446 = vxor.u32 %v1437, 2147483648
    %v1447 = vmul.f32 %v1446, 1.442695
    %v1448 = vpow.pop %v1447
    %v1449 = vadd.f32 %v1448, 1.0
    %v1450 = vrcp.pop %v1449
    %v1451 = vmul.f32 1.0, %v1450
    %v1452 = vtanh.pop %v1438
    %v1453 = vxor.u32 %v1439, 2147483648
    %v1454 = vmul.f32 %v1453, 1.442695
    %v1455 = vpow.pop %v1454
    %v1456 = vadd.f32 %v1455, 1.0
    %v1457 = vrcp.pop %v1456
    %v1458 = vmul.f32 1.0, %v1457
    %v1459 = vmul.f32 %v1451, %v972
    %v1460 = vmul.f32 %v1445, %v1452
    %v1461 = vadd.f32 %v1459, %v1460
    %v1462 = vtanh.pop %v1461
    %v1463 = vmul.f32 %v1458, %v1462
    %1464 = vmatprep.subr.mxu0 %v224
    %1465 = vmatpush1.msra.mxu0 %v223
    %1466 = vmatprep.subr.mxu0 %v228
    %1467 = vmatpush1.msra.mxu0 %v227
    %1468 = vmatprep.subr.mxu0 %v232
    %1469 = vmatpush1.msra.mxu0 %v231
    %1470 = vmatprep.subr.mxu0 %v236
    %1471 = vmatpush1.msra.mxu0 %v235
    %1472 = vmatprep.subr.mxu0 %v240
    %1473 = vmatpush1.msra.mxu0 %v239
    %1474 = vmatprep.subr.mxu0 %v244
    %1475 = vmatpush1.msra.mxu0 %v243
    %1476 = vmatprep.subr.mxu0 %v248
    %1477 = vmatpush1.msra.mxu0 %v247
    %1478 = vmatprep.subr.mxu0 %v252
    %1479 = vmatpush1.msra.mxu0 %v251
    %1480 = vmatprep.subr.mxu0 %v256
    %1481 = vmatpush1.msra.mxu0 %v255
    %1482 = vmatprep.subr.mxu0 %v260
    %1483 = vmatpush1.msra.mxu0 %v259
    %1484 = vmatprep.subr.mxu0 %v264
    %1485 = vmatpush1.msra.mxu0 %v263
    %1486 = vmatprep.subr.mxu0 %v268
    %1487 = vmatpush1.msra.mxu0 %v267
    %1488 = vmatprep.subr.mxu0 %v272
    %1489 = vmatpush1.msra.mxu0 %v271
    %1490 = vmatprep.subr.mxu0 %v276
    %1491 = vmatpush1.msra.mxu0 %v275
    %1492 = vmatprep.subr.mxu0 %v280
    %1493 = vmatpush1.msra.mxu0 %v279
    %1494 = vmatprep.subr.mxu0 %v284
    %1495 = vmatpush1.msra.mxu0 %v283
    %1496 = vmatprep.subr.mxu0 0.0
    %1497 = vmatpush1.msra.mxu0 0.0
    %1498 = vmatprep.subr.mxu0 0.0
    %1499 = vmatpush1.msra.mxu0 0.0
    %1500 = vmatprep.subr.mxu0 0.0
    %1501 = vmatpush1.msra.mxu0 0.0
    %1502 = vmatprep.subr.mxu0 0.0
    %1503 = vmatpush1.msra.mxu0 0.0
    %1504 = vmatprep.subr.mxu0 0.0
    %1505 = vmatpush1.msra.mxu0 0.0
    %1506 = vmatprep.subr.mxu0 0.0
    %1507 = vmatpush1.msra.mxu0 0.0
    %1508 = vmatprep.subr.mxu0 0.0
    %1509 = vmatpush1.msra.mxu0 0.0
    %1510 = vmatprep.subr.mxu0 0.0
    %1511 = vmatpush1.msra.mxu0 0.0
    %1512 = vmatprep.subr.mxu0 0.0
    %1513 = vmatpush1.msra.mxu0 0.0
    %1514 = vmatprep.subr.mxu0 0.0
    %1515 = vmatpush1.msra.mxu0 0.0
    %1516 = vmatprep.subr.mxu0 0.0
    %1517 = vmatpush1.msra.mxu0 0.0
    %1518 = vmatprep.subr.mxu0 0.0
    %1519 = vmatpush1.msra.mxu0 0.0
    %1520 = vmatprep.subr.mxu0 0.0
    %1521 = vmatpush1.msra.mxu0 0.0
    %1522 = vmatprep.subr.mxu0 0.0
    %1523 = vmatpush1.msra.mxu0 0.0
    %1524 = vmatprep.subr.mxu0 0.0
    %1525 = vmatpush1.msra.mxu0 0.0
    %1526 = vmatprep.subr.mxu0 0.0
    %1527 = vmatpush1.msra.mxu0 0.0
    %1528 = vmatprep.mubr.f32.mxu0 0.0
    %1529 = vmatmul.mubr.f32.gmra.mrb[0].mxu0 %v1286
    %v1530 = vpop.f32.mrb[0].mxu0
    %v1531 = vadd.f32 0.0, %v1530
    %v1532 = vpop.f32.mrb[0].mxu0
    %v1533 = vadd.f32 0.0, %v1532
    %1534 = vdwg.mxu0
    %1535 = vmatprep.subr.mxu0 %v226
    %1536 = vmatpush1.msra.mxu0 %v225
    %1537 = vmatprep.subr.mxu0 %v230
    %1538 = vmatpush1.msra.mxu0 %v229
    %1539 = vmatprep.subr.mxu0 %v234
    %1540 = vmatpush1.msra.mxu0 %v233
    %1541 = vmatprep.subr.mxu0 %v238
    %1542 = vmatpush1.msra.mxu0 %v237
    %1543 = vmatprep.subr.mxu0 %v242
    %1544 = vmatpush1.msra.mxu0 %v241
    %1545 = vmatprep.subr.mxu0 %v246
    %1546 = vmatpush1.msra.mxu0 %v245
    %1547 = vmatprep.subr.mxu0 %v250
    %1548 = vmatpush1.msra.mxu0 %v249
    %1549 = vmatprep.subr.mxu0 %v254
    %1550 = vmatpush1.msra.mxu0 %v253
    %1551 = vmatprep.subr.mxu0 %v258
    %1552 = vmatpush1.msra.mxu0 %v257
    %1553 = vmatprep.subr.mxu0 %v262
    %1554 = vmatpush1.msra.mxu0 %v261
    %1555 = vmatprep.subr.mxu0 %v266
    %1556 = vmatpush1.msra.mxu0 %v265
    %1557 = vmatprep.subr.mxu0 %v270
    %1558 = vmatpush1.msra.mxu0 %v269
    %1559 = vmatprep.subr.mxu0 %v274
    %1560 = vmatpush1.msra.mxu0 %v273
    %1561 = vmatprep.subr.mxu0 %v278
    %1562 = vmatpush1.msra.mxu0 %v277
    %1563 = vmatprep.subr.mxu0 %v282
    %1564 = vmatpush1.msra.mxu0 %v281
    %1565 = vmatprep.subr.mxu0 %v286
    %1566 = vmatpush1.msra.mxu0 %v285
    %1567 = vmatprep.subr.mxu0 0.0
    %1568 = vmatpush1.msra.mxu0 0.0
    %1569 = vmatprep.subr.mxu0 0.0
    %1570 = vmatpush1.msra.mxu0 0.0
    %1571 = vmatprep.subr.mxu0 0.0
    %1572 = vmatpush1.msra.mxu0 0.0
    %1573 = vmatprep.subr.mxu0 0.0
    %1574 = vmatpush1.msra.mxu0 0.0
    %1575 = vmatprep.subr.mxu0 0.0
    %1576 = vmatpush1.msra.mxu0 0.0
    %1577 = vmatprep.subr.mxu0 0.0
    %1578 = vmatpush1.msra.mxu0 0.0
    %1579 = vmatprep.subr.mxu0 0.0
    %1580 = vmatpush1.msra.mxu0 0.0
    %1581 = vmatprep.subr.mxu0 0.0
    %1582 = vmatpush1.msra.mxu0 0.0
    %1583 = vmatprep.subr.mxu0 0.0
    %1584 = vmatpush1.msra.mxu0 0.0
    %1585 = vmatprep.subr.mxu0 0.0
    %1586 = vmatpush1.msra.mxu0 0.0
    %1587 = vmatprep.subr.mxu0 0.0
    %1588 = vmatpush1.msra.mxu0 0.0
    %1589 = vmatprep.subr.mxu0 0.0
    %1590 = vmatpush1.msra.mxu0 0.0
    %1591 = vmatprep.subr.mxu0 0.0
    %1592 = vmatpush1.msra.mxu0 0.0
    %1593 = vmatprep.subr.mxu0 0.0
    %1594 = vmatpush1.msra.mxu0 0.0
    %1595 = vmatprep.subr.mxu0 0.0
    %1596 = vmatpush1.msra.mxu0 0.0
    %1597 = vmatprep.subr.mxu0 0.0
    %1598 = vmatpush1.msra.mxu0 0.0
    %1599 = vmatprep.mubr.f32.mxu0 0.0
    %1600 = vmatmul.mubr.f32.gmra.mrb[0].mxu0 %v1286
    %v1601 = vpop.f32.mrb[0].mxu0
    %v1602 = vadd.f32 0.0, %v1601
    %v1603 = vpop.f32.mrb[0].mxu0
    %v1604 = vadd.f32 0.0, %v1603
    %1605 = vdwg.mxu0
    %1606 = vmatprep.subr.mxu0 %v160
    %1607 = vmatpush1.msra.mxu0 %v159
    %1608 = vmatprep.subr.mxu0 %v164
    %1609 = vmatpush1.msra.mxu0 %v163
    %1610 = vmatprep.subr.mxu0 %v168
    %1611 = vmatpush1.msra.mxu0 %v167
    %1612 = vmatprep.subr.mxu0 %v172
    %1613 = vmatpush1.msra.mxu0 %v171
    %1614 = vmatprep.subr.mxu0 %v176
    %1615 = vmatpush1.msra.mxu0 %v175
    %1616 = vmatprep.subr.mxu0 %v180
    %1617 = vmatpush1.msra.mxu0 %v179
    %1618 = vmatprep.subr.mxu0 %v184
    %1619 = vmatpush1.msra.mxu0 %v183
    %1620 = vmatprep.subr.mxu0 %v188
    %1621 = vmatpush1.msra.mxu0 %v187
    %1622 = vmatprep.subr.mxu0 %v192
    %1623 = vmatpush1.msra.mxu0 %v191
    %1624 = vmatprep.subr.mxu0 %v196
    %1625 = vmatpush1.msra.mxu0 %v195
    %1626 = vmatprep.subr.mxu0 %v200
    %1627 = vmatpush1.msra.mxu0 %v199
    %1628 = vmatprep.subr.mxu0 %v204
    %1629 = vmatpush1.msra.mxu0 %v203
    %1630 = vmatprep.subr.mxu0 %v208
    %1631 = vmatpush1.msra.mxu0 %v207
    %1632 = vmatprep.subr.mxu0 %v212
    %1633 = vmatpush1.msra.mxu0 %v211
    %1634 = vmatprep.subr.mxu0 %v216
    %1635 = vmatpush1.msra.mxu0 %v215
    %1636 = vmatprep.subr.mxu0 %v220
    %1637 = vmatpush1.msra.mxu0 %v219
    %1638 = vmatprep.subr.mxu0 0.0
    %1639 = vmatpush1.msra.mxu0 0.0
    %1640 = vmatprep.subr.mxu0 0.0
    %1641 = vmatpush1.msra.mxu0 0.0
    %1642 = vmatprep.subr.mxu0 0.0
    %1643 = vmatpush1.msra.mxu0 0.0
    %1644 = vmatprep.subr.mxu0 0.0
    %1645 = vmatpush1.msra.mxu0 0.0
    %1646 = vmatprep.subr.mxu0 0.0
    %1647 = vmatpush1.msra.mxu0 0.0
    %1648 = vmatprep.subr.mxu0 0.0
    %1649 = vmatpush1.msra.mxu0 0.0
    %1650 = vmatprep.subr.mxu0 0.0
    %1651 = vmatpush1.msra.mxu0 0.0
    %1652 = vmatprep.subr.mxu0 0.0
    %1653 = vmatpush1.msra.mxu0 0.0
    %1654 = vmatprep.subr.mxu0 0.0
    %1655 = vmatpush1.msra.mxu0 0.0
    %1656 = vmatprep.subr.mxu0 0.0
    %1657 = vmatpush1.msra.mxu0 0.0
    %1658 = vmatprep.subr.mxu0 0.0
    %1659 = vmatpush1.msra.mxu0 0.0
    %1660 = vmatprep.subr.mxu0 0.0
    %1661 = vmatpush1.msra.mxu0 0.0
    %1662 = vmatprep.subr.mxu0 0.0
    %1663 = vmatpush1.msra.mxu0 0.0
    %1664 = vmatprep.subr.mxu0 0.0
    %1665 = vmatpush1.msra.mxu0 0.0
    %1666 = vmatprep.subr.mxu0 0.0
    %1667 = vmatpush1.msra.mxu0 0.0
    %1668 = vmatprep.subr.mxu0 0.0
    %1669 = vmatpush1.msra.mxu0 0.0
    %1670 = vmatprep.mubr.f32.mxu0 0.0
    %1671 = vmatmul.mubr.f32.gmra.mrb[0].mxu0 %v1463
    %v1672 = vpop.f32.mrb[0].mxu0
    %v1673 = vadd.f32 %v1531, %v1672
    %v1674 = vpop.f32.mrb[0].mxu0
    %v1675 = vadd.f32 %v1533, %v1674
    %1676 = vdwg.mxu0
    %1677 = vmatprep.subr.mxu0 %v162
    %1678 = vmatpush1.msra.mxu0 %v161
    %1679 = vmatprep.subr.mxu0 %v166
    %1680 = vmatpush1.msra.mxu0 %v165
    %1681 = vmatprep.subr.mxu0 %v170
    %1682 = vmatpush1.msra.mxu0 %v169
    %1683 = vmatprep.subr.mxu0 %v174
    %1684 = vmatpush1.msra.mxu0 %v173
    %1685 = vmatprep.subr.mxu0 %v178
    %1686 = vmatpush1.msra.mxu0 %v177
    %1687 = vmatprep.subr.mxu0 %v182
    %1688 = vmatpush1.msra.mxu0 %v181
    %1689 = vmatprep.subr.mxu0 %v186
    %1690 = vmatpush1.msra.mxu0 %v185
    %1691 = vmatprep.subr.mxu0 %v190
    %1692 = vmatpush1.msra.mxu0 %v189
    %1693 = vmatprep.subr.mxu0 %v194
    %1694 = vmatpush1.msra.mxu0 %v193
    %1695 = vmatprep.subr.mxu0 %v198
    %1696 = vmatpush1.msra.mxu0 %v197
    %1697 = vmatprep.subr.mxu0 %v202
    %1698 = vmatpush1.msra.mxu0 %v201
    %1699 = vmatprep.subr.mxu0 %v206
    %1700 = vmatpush1.msra.mxu0 %v205
    %1701 = vmatprep.subr.mxu0 %v210
    %1702 = vmatpush1.msra.mxu0 %v209
    %1703 = vmatprep.subr.mxu0 %v214
    %1704 = vmatpush1.msra.mxu0 %v213
    %1705 = vmatprep.subr.mxu0 %v218
    %1706 = vmatpush1.msra.mxu0 %v217
    %1707 = vmatprep.subr.mxu0 %v222
    %1708 = vmatpush1.msra.mxu0 %v221
    %1709 = vmatprep.subr.mxu0 0.0
    %1710 = vmatpush1.msra.mxu0 0.0
    %1711 = vmatprep.subr.mxu0 0.0
    %1712 = vmatpush1.msra.mxu0 0.0
    %1713 = vmatprep.subr.mxu0 0.0
    %1714 = vmatpush1.msra.mxu0 0.0
    %1715 = vmatprep.subr.mxu0 0.0
    %1716 = vmatpush1.msra.mxu0 0.0
    %1717 = vmatprep.subr.mxu0 0.0
    %1718 = vmatpush1.msra.mxu0 0.0
    %1719 = vmatprep.subr.mxu0 0.0
    %1720 = vmatpush1.msra.mxu0 0.0
    %1721 = vmatprep.subr.mxu0 0.0
    %1722 = vmatpush1.msra.mxu0 0.0
    %1723 = vmatprep.subr.mxu0 0.0
    %1724 = vmatpush1.msra.mxu0 0.0
    %1725 = vmatprep.subr.mxu0 0.0
    %1726 = vmatpush1.msra.mxu0 0.0
    %1727 = vmatprep.subr.mxu0 0.0
    %1728 = vmatpush1.msra.mxu0 0.0
    %1729 = vmatprep.subr.mxu0 0.0
    %1730 = vmatpush1.msra.mxu0 0.0
    %1731 = vmatprep.subr.mxu0 0.0
    %1732 = vmatpush1.msra.mxu0 0.0
    %1733 = vmatprep.subr.mxu0 0.0
    %1734 = vmatpush1.msra.mxu0 0.0
    %1735 = vmatprep.subr.mxu0 0.0
    %1736 = vmatpush1.msra.mxu0 0.0
    %1737 = vmatprep.subr.mxu0 0.0
    %1738 = vmatpush1.msra.mxu0 0.0
    %1739 = vmatprep.subr.mxu0 0.0
    %1740 = vmatpush1.msra.mxu0 0.0
    %1741 = vmatprep.mubr.f32.mxu0 0.0
    %1742 = vmatmul.mubr.f32.gmra.mrb[0].mxu0 %v1463
    %v1743 = vpop.f32.mrb[0].mxu0
    %v1744 = vadd.f32 %v1602, %v1743
    %v1745 = vpop.f32.mrb[0].mxu0
    %v1746 = vadd.f32 %v1604, %v1745
    %1747 = vdwg.mxu0
    %v1748 = vadd.f32 %v1673, %v754
    %v1749 = vadd.f32 %v1675, %v758
    %v1750 = vadd.f32 %v1744, %v762
    %v1751 = vadd.f32 %v1746, %v766
    %v1752 = vxor.u32 %v1748, 2147483648
    %v1753 = vmul.f32 %v1752, 1.442695
    %v1754 = vpow.pop %v1753
    %v1755 = vadd.f32 %v1754, 1.0
    %v1756 = vrcp.pop %v1755
    %v1757 = vmul.f32 1.0, %v1756
    %v1758 = vxor.u32 %v1749, 2147483648
    %v1759 = vmul.f32 %v1758, 1.442695
    %v1760 = vpow.pop %v1759
    %v1761 = vadd.f32 %v1760, 1.0
    %v1762 = vrcp.pop %v1761
    %v1763 = vmul.f32 1.0, %v1762
    %v1764 = vtanh.pop %v1750
    %v1765 = vxor.u32 %v1751, 2147483648
    %v1766 = vmul.f32 %v1765, 1.442695
    %v1767 = vpow.pop %v1766
    %v1768 = vadd.f32 %v1767, 1.0
    %v1769 = vrcp.pop %v1768
    %v1770 = vmul.f32 1.0, %v1769
    %v1771 = vmul.f32 %v1763, %v1284
    %v1772 = vmul.f32 %v1757, %v1764
    %v1773 = vadd.f32 %v1771, %v1772
    %v1774 = vtanh.pop %v1773
    %v1775 = vmul.f32 %v1770, %v1774
    %s1776 = scalar_lea.vmem [#allocation15], 16
    %1777 = vst [vmem:[%s1776] sm:$0xff] %v1775
    %s1778 = scalar_lea.vmem [#allocation6], 96
    %v1779 = vld [vmem:[%s1778] sm:$0xff]
    %v1780 = vld [vmem:[%s1778 + $0x8] sm:$0xff]
    %v1781 = vld [vmem:[%s1778 + $0x10] sm:$0xff]
    %v1782 = vld [vmem:[%s1778 + $0x18] sm:$0xff]
    %1783 = vmatprep.subr.mxu0 %v96
    %1784 = vmatpush1.msra.mxu0 %v95
    %1785 = vmatprep.subr.mxu0 %v100
    %1786 = vmatpush1.msra.mxu0 %v99
    %1787 = vmatprep.subr.mxu0 %v104
    %1788 = vmatpush1.msra.mxu0 %v103
    %1789 = vmatprep.subr.mxu0 %v108
    %1790 = vmatpush1.msra.mxu0 %v107
    %1791 = vmatprep.subr.mxu0 %v112
    %1792 = vmatpush1.msra.mxu0 %v111
    %1793 = vmatprep.subr.mxu0 %v116
    %1794 = vmatpush1.msra.mxu0 %v115
    %1795 = vmatprep.subr.mxu0 %v120
    %1796 = vmatpush1.msra.mxu0 %v119
    %1797 = vmatprep.subr.mxu0 %v124
    %1798 = vmatpush1.msra.mxu0 %v123
    %1799 = vmatprep.subr.mxu0 %v128
    %1800 = vmatpush1.msra.mxu0 %v127
    %1801 = vmatprep.subr.mxu0 %v132
    %1802 = vmatpush1.msra.mxu0 %v131
    %1803 = vmatprep.subr.mxu0 %v136
    %1804 = vmatpush1.msra.mxu0 %v135
    %1805 = vmatprep.subr.mxu0 %v140
    %1806 = vmatpush1.msra.mxu0 %v139
    %1807 = vmatprep.subr.mxu0 %v144
    %1808 = vmatpush1.msra.mxu0 %v143
    %1809 = vmatprep.subr.mxu0 %v148
    %1810 = vmatpush1.msra.mxu0 %v147
    %1811 = vmatprep.subr.mxu0 %v152
    %1812 = vmatpush1.msra.mxu0 %v151
    %1813 = vmatprep.subr.mxu0 %v156
    %1814 = vmatpush1.msra.mxu0 %v155
    %1815 = vmatprep.subr.mxu0 0.0
    %1816 = vmatpush1.msra.mxu0 0.0
    %1817 = vmatprep.subr.mxu0 0.0
    %1818 = vmatpush1.msra.mxu0 0.0
    %1819 = vmatprep.subr.mxu0 0.0
    %1820 = vmatpush1.msra.mxu0 0.0
    %1821 = vmatprep.subr.mxu0 0.0
    %1822 = vmatpush1.msra.mxu0 0.0
    %1823 = vmatprep.subr.mxu0 0.0
    %1824 = vmatpush1.msra.mxu0 0.0
    %1825 = vmatprep.subr.mxu0 0.0
    %1826 = vmatpush1.msra.mxu0 0.0
    %1827 = vmatprep.subr.mxu0 0.0
    %1828 = vmatpush1.msra.mxu0 0.0
    %1829 = vmatprep.subr.mxu0 0.0
    %1830 = vmatpush1.msra.mxu0 0.0
    %1831 = vmatprep.subr.mxu0 0.0
    %1832 = vmatpush1.msra.mxu0 0.0
    %1833 = vmatprep.subr.mxu0 0.0
    %1834 = vmatpush1.msra.mxu0 0.0
    %1835 = vmatprep.subr.mxu0 0.0
    %1836 = vmatpush1.msra.mxu0 0.0
    %1837 = vmatprep.subr.mxu0 0.0
    %1838 = vmatpush1.msra.mxu0 0.0
    %1839 = vmatprep.subr.mxu0 0.0
    %1840 = vmatpush1.msra.mxu0 0.0
    %1841 = vmatprep.subr.mxu0 0.0
    %1842 = vmatpush1.msra.mxu0 0.0
    %1843 = vmatprep.subr.mxu0 0.0
    %1844 = vmatpush1.msra.mxu0 0.0
    %1845 = vmatprep.subr.mxu0 0.0
    %1846 = vmatpush1.msra.mxu0 0.0
    %1847 = vmatprep.mubr.f32.mxu0 0.0
    %1848 = vmatmul.mubr.f32.gmra.mrb[0].mxu0 %v1463
    %v1849 = vpop.f32.mrb[0].mxu0
    %v1850 = vadd.f32 0.0, %v1849
    %v1851 = vpop.f32.mrb[0].mxu0
    %v1852 = vadd.f32 0.0, %v1851
    %1853 = vdwg.mxu0
    %1854 = vmatprep.subr.mxu0 %v98
    %1855 = vmatpush1.msra.mxu0 %v97
    %1856 = vmatprep.subr.mxu0 %v102
    %1857 = vmatpush1.msra.mxu0 %v101
    %1858 = vmatprep.subr.mxu0 %v106
    %1859 = vmatpush1.msra.mxu0 %v105
    %1860 = vmatprep.subr.mxu0 %v110
    %1861 = vmatpush1.msra.mxu0 %v109
    %1862 = vmatprep.subr.mxu0 %v114
    %1863 = vmatpush1.msra.mxu0 %v113
    %1864 = vmatprep.subr.mxu0 %v118
    %1865 = vmatpush1.msra.mxu0 %v117
    %1866 = vmatprep.subr.mxu0 %v122
    %1867 = vmatpush1.msra.mxu0 %v121
    %1868 = vmatprep.subr.mxu0 %v126
    %1869 = vmatpush1.msra.mxu0 %v125
    %1870 = vmatprep.subr.mxu0 %v130
    %1871 = vmatpush1.msra.mxu0 %v129
    %1872 = vmatprep.subr.mxu0 %v134
    %1873 = vmatpush1.msra.mxu0 %v133
    %1874 = vmatprep.subr.mxu0 %v138
    %1875 = vmatpush1.msra.mxu0 %v137
    %1876 = vmatprep.subr.mxu0 %v142
    %1877 = vmatpush1.msra.mxu0 %v141
    %1878 = vmatprep.subr.mxu0 %v146
    %1879 = vmatpush1.msra.mxu0 %v145
    %1880 = vmatprep.subr.mxu0 %v150
    %1881 = vmatpush1.msra.mxu0 %v149
    %1882 = vmatprep.subr.mxu0 %v154
    %1883 = vmatpush1.msra.mxu0 %v153
    %1884 = vmatprep.subr.mxu0 %v158
    %1885 = vmatpush1.msra.mxu0 %v157
    %1886 = vmatprep.subr.mxu0 0.0
    %1887 = vmatpush1.msra.mxu0 0.0
    %1888 = vmatprep.subr.mxu0 0.0
    %1889 = vmatpush1.msra.mxu0 0.0
    %1890 = vmatprep.subr.mxu0 0.0
    %1891 = vmatpush1.msra.mxu0 0.0
    %1892 = vmatprep.subr.mxu0 0.0
    %1893 = vmatpush1.msra.mxu0 0.0
    %1894 = vmatprep.subr.mxu0 0.0
    %1895 = vmatpush1.msra.mxu0 0.0
    %1896 = vmatprep.subr.mxu0 0.0
    %1897 = vmatpush1.msra.mxu0 0.0
    %1898 = vmatprep.subr.mxu0 0.0
    %1899 = vmatpush1.msra.mxu0 0.0
    %1900 = vmatprep.subr.mxu0 0.0
    %1901 = vmatpush1.msra.mxu0 0.0
    %1902 = vmatprep.subr.mxu0 0.0
    %1903 = vmatpush1.msra.mxu0 0.0
    %1904 = vmatprep.subr.mxu0 0.0
    %1905 = vmatpush1.msra.mxu0 0.0
    %1906 = vmatprep.subr.mxu0 0.0
    %1907 = vmatpush1.msra.mxu0 0.0
    %1908 = vmatprep.subr.mxu0 0.0
    %1909 = vmatpush1.msra.mxu0 0.0
    %1910 = vmatprep.subr.mxu0 0.0
    %1911 = vmatpush1.msra.mxu0 0.0
    %1912 = vmatprep.subr.mxu0 0.0
    %1913 = vmatpush1.msra.mxu0 0.0
    %1914 = vmatprep.subr.mxu0 0.0
    %1915 = vmatpush1.msra.mxu0 0.0
    %1916 = vmatprep.subr.mxu0 0.0
    %1917 = vmatpush1.msra.mxu0 0.0
    %1918 = vmatprep.mubr.f32.mxu0 0.0
    %1919 = vmatmul.mubr.f32.gmra.mrb[0].mxu0 %v1463
    %v1920 = vpop.f32.mrb[0].mxu0
    %v1921 = vadd.f32 0.0, %v1920
    %v1922 = vpop.f32.mrb[0].mxu0
    %v1923 = vadd.f32 0.0, %v1922
    %1924 = vdwg.mxu0
    %v1925 = vadd.f32 %v1779, %v1850
    %v1926 = vadd.f32 %v1780, %v1852
    %v1927 = vadd.f32 %v1781, %v1921
    %v1928 = vadd.f32 %v1782, %v1923
    %v1929 = vxor.u32 %v1925, 2147483648
    %v1930 = vmul.f32 %v1929, 1.442695
    %v1931 = vpow.pop %v1930
    %v1932 = vadd.f32 %v1931, 1.0
    %v1933 = vrcp.pop %v1932
    %v1934 = vmul.f32 1.0, %v1933
    %v1935 = vxor.u32 %v1926, 2147483648
    %v1936 = vmul.f32 %v1935, 1.442695
    %v1937 = vpow.pop %v1936
    %v1938 = vadd.f32 %v1937, 1.0
    %v1939 = vrcp.pop %v1938
    %v1940 = vmul.f32 1.0, %v1939
    %v1941 = vtanh.pop %v1927
    %v1942 = vxor.u32 %v1928, 2147483648
    %v1943 = vmul.f32 %v1942, 1.442695
    %v1944 = vpow.pop %v1943
    %v1945 = vadd.f32 %v1944, 1.0
    %v1946 = vrcp.pop %v1945
    %v1947 = vmul.f32 1.0, %v1946
    %v1948 = vmul.f32 %v1940, %v1461
    %v1949 = vmul.f32 %v1934, %v1941
    %v1950 = vadd.f32 %v1948, %v1949
    %v1951 = vtanh.pop %v1950
    %v1952 = vmul.f32 %v1947, %v1951
    %1953 = vmatprep.subr.mxu0 %v224
    %1954 = vmatpush1.msra.mxu0 %v223
    %1955 = vmatprep.subr.mxu0 %v228
    %1956 = vmatpush1.msra.mxu0 %v227
    %1957 = vmatprep.subr.mxu0 %v232
    %1958 = vmatpush1.msra.mxu0 %v231
    %1959 = vmatprep.subr.mxu0 %v236
    %1960 = vmatpush1.msra.mxu0 %v235
    %1961 = vmatprep.subr.mxu0 %v240
    %1962 = vmatpush1.msra.mxu0 %v239
    %1963 = vmatprep.subr.mxu0 %v244
    %1964 = vmatpush1.msra.mxu0 %v243
    %1965 = vmatprep.subr.mxu0 %v248
    %1966 = vmatpush1.msra.mxu0 %v247
    %1967 = vmatprep.subr.mxu0 %v252
    %1968 = vmatpush1.msra.mxu0 %v251
    %1969 = vmatprep.subr.mxu0 %v256
    %1970 = vmatpush1.msra.mxu0 %v255
    %1971 = vmatprep.subr.mxu0 %v260
    %1972 = vmatpush1.msra.mxu0 %v259
    %1973 = vmatprep.subr.mxu0 %v264
    %1974 = vmatpush1.msra.mxu0 %v263
    %1975 = vmatprep.subr.mxu0 %v268
    %1976 = vmatpush1.msra.mxu0 %v267
    %1977 = vmatprep.subr.mxu0 %v272
    %1978 = vmatpush1.msra.mxu0 %v271
    %1979 = vmatprep.subr.mxu0 %v276
    %1980 = vmatpush1.msra.mxu0 %v275
    %1981 = vmatprep.subr.mxu0 %v280
    %1982 = vmatpush1.msra.mxu0 %v279
    %1983 = vmatprep.subr.mxu0 %v284
    %1984 = vmatpush1.msra.mxu0 %v283
    %1985 = vmatprep.subr.mxu0 0.0
    %1986 = vmatpush1.msra.mxu0 0.0
    %1987 = vmatprep.subr.mxu0 0.0
    %1988 = vmatpush1.msra.mxu0 0.0
    %1989 = vmatprep.subr.mxu0 0.0
    %1990 = vmatpush1.msra.mxu0 0.0
    %1991 = vmatprep.subr.mxu0 0.0
    %1992 = vmatpush1.msra.mxu0 0.0
    %1993 = vmatprep.subr.mxu0 0.0
    %1994 = vmatpush1.msra.mxu0 0.0
    %1995 = vmatprep.subr.mxu0 0.0
    %1996 = vmatpush1.msra.mxu0 0.0
    %1997 = vmatprep.subr.mxu0 0.0
    %1998 = vmatpush1.msra.mxu0 0.0
    %1999 = vmatprep.subr.mxu0 0.0
    %2000 = vmatpush1.msra.mxu0 0.0
    %2001 = vmatprep.subr.mxu0 0.0
    %2002 = vmatpush1.msra.mxu0 0.0
    %2003 = vmatprep.subr.mxu0 0.0
    %2004 = vmatpush1.msra.mxu0 0.0
    %2005 = vmatprep.subr.mxu0 0.0
    %2006 = vmatpush1.msra.mxu0 0.0
    %2007 = vmatprep.subr.mxu0 0.0
    %2008 = vmatpush1.msra.mxu0 0.0
    %2009 = vmatprep.subr.mxu0 0.0
    %2010 = vmatpush1.msra.mxu0 0.0
    %2011 = vmatprep.subr.mxu0 0.0
    %2012 = vmatpush1.msra.mxu0 0.0
    %2013 = vmatprep.subr.mxu0 0.0
    %2014 = vmatpush1.msra.mxu0 0.0
    %2015 = vmatprep.subr.mxu0 0.0
    %2016 = vmatpush1.msra.mxu0 0.0
    %2017 = vmatprep.mubr.f32.mxu0 0.0
    %2018 = vmatmul.mubr.f32.gmra.mrb[0].mxu0 %v1775
    %v2019 = vpop.f32.mrb[0].mxu0
    %v2020 = vadd.f32 0.0, %v2019
    %v2021 = vpop.f32.mrb[0].mxu0
    %v2022 = vadd.f32 0.0, %v2021
    %2023 = vdwg.mxu0
    %2024 = vmatprep.subr.mxu0 %v226
    %2025 = vmatpush1.msra.mxu0 %v225
    %2026 = vmatprep.subr.mxu0 %v230
    %2027 = vmatpush1.msra.mxu0 %v229
    %2028 = vmatprep.subr.mxu0 %v234
    %2029 = vmatpush1.msra.mxu0 %v233
    %2030 = vmatprep.subr.mxu0 %v238
    %2031 = vmatpush1.msra.mxu0 %v237
    %2032 = vmatprep.subr.mxu0 %v242
    %2033 = vmatpush1.msra.mxu0 %v241
    %2034 = vmatprep.subr.mxu0 %v246
    %2035 = vmatpush1.msra.mxu0 %v245
    %2036 = vmatprep.subr.mxu0 %v250
    %2037 = vmatpush1.msra.mxu0 %v249
    %2038 = vmatprep.subr.mxu0 %v254
    %2039 = vmatpush1.msra.mxu0 %v253
    %2040 = vmatprep.subr.mxu0 %v258
    %2041 = vmatpush1.msra.mxu0 %v257
    %2042 = vmatprep.subr.mxu0 %v262
    %2043 = vmatpush1.msra.mxu0 %v261
    %2044 = vmatprep.subr.mxu0 %v266
    %2045 = vmatpush1.msra.mxu0 %v265
    %2046 = vmatprep.subr.mxu0 %v270
    %2047 = vmatpush1.msra.mxu0 %v269
    %2048 = vmatprep.subr.mxu0 %v274
    %2049 = vmatpush1.msra.mxu0 %v273
    %2050 = vmatprep.subr.mxu0 %v278
    %2051 = vmatpush1.msra.mxu0 %v277
    %2052 = vmatprep.subr.mxu0 %v282
    %2053 = vmatpush1.msra.mxu0 %v281
    %2054 = vmatprep.subr.mxu0 %v286
    %2055 = vmatpush1.msra.mxu0 %v285
    %2056 = vmatprep.subr.mxu0 0.0
    %2057 = vmatpush1.msra.mxu0 0.0
    %2058 = vmatprep.subr.mxu0 0.0
    %2059 = vmatpush1.msra.mxu0 0.0
    %2060 = vmatprep.subr.mxu0 0.0
    %2061 = vmatpush1.msra.mxu0 0.0
    %2062 = vmatprep.subr.mxu0 0.0
    %2063 = vmatpush1.msra.mxu0 0.0
    %2064 = vmatprep.subr.mxu0 0.0
    %2065 = vmatpush1.msra.mxu0 0.0
    %2066 = vmatprep.subr.mxu0 0.0
    %2067 = vmatpush1.msra.mxu0 0.0
    %2068 = vmatprep.subr.mxu0 0.0
    %2069 = vmatpush1.msra.mxu0 0.0
    %2070 = vmatprep.subr.mxu0 0.0
    %2071 = vmatpush1.msra.mxu0 0.0
    %2072 = vmatprep.subr.mxu0 0.0
    %2073 = vmatpush1.msra.mxu0 0.0
    %2074 = vmatprep.subr.mxu0 0.0
    %2075 = vmatpush1.msra.mxu0 0.0
    %2076 = vmatprep.subr.mxu0 0.0
    %2077 = vmatpush1.msra.mxu0 0.0
    %2078 = vmatprep.subr.mxu0 0.0
    %2079 = vmatpush1.msra.mxu0 0.0
    %2080 = vmatprep.subr.mxu0 0.0
    %2081 = vmatpush1.msra.mxu0 0.0
    %2082 = vmatprep.subr.mxu0 0.0
    %2083 = vmatpush1.msra.mxu0 0.0
    %2084 = vmatprep.subr.mxu0 0.0
    %2085 = vmatpush1.msra.mxu0 0.0
    %2086 = vmatprep.subr.mxu0 0.0
    %2087 = vmatpush1.msra.mxu0 0.0
    %2088 = vmatprep.mubr.f32.mxu0 0.0
    %2089 = vmatmul.mubr.f32.gmra.mrb[0].mxu0 %v1775
    %v2090 = vpop.f32.mrb[0].mxu0
    %v2091 = vadd.f32 0.0, %v2090
    %v2092 = vpop.f32.mrb[0].mxu0
    %v2093 = vadd.f32 0.0, %v2092
    %2094 = vdwg.mxu0
    %2095 = vmatprep.subr.mxu0 %v160
    %2096 = vmatpush1.msra.mxu0 %v159
    %2097 = vmatprep.subr.mxu0 %v164
    %2098 = vmatpush1.msra.mxu0 %v163
    %2099 = vmatprep.subr.mxu0 %v168
    %2100 = vmatpush1.msra.mxu0 %v167
    %2101 = vmatprep.subr.mxu0 %v172
    %2102 = vmatpush1.msra.mxu0 %v171
    %2103 = vmatprep.subr.mxu0 %v176
    %2104 = vmatpush1.msra.mxu0 %v175
    %2105 = vmatprep.subr.mxu0 %v180
    %2106 = vmatpush1.msra.mxu0 %v179
    %2107 = vmatprep.subr.mxu0 %v184
    %2108 = vmatpush1.msra.mxu0 %v183
    %2109 = vmatprep.subr.mxu0 %v188
    %2110 = vmatpush1.msra.mxu0 %v187
    %2111 = vmatprep.subr.mxu0 %v192
    %2112 = vmatpush1.msra.mxu0 %v191
    %2113 = vmatprep.subr.mxu0 %v196
    %2114 = vmatpush1.msra.mxu0 %v195
    %2115 = vmatprep.subr.mxu0 %v200
    %2116 = vmatpush1.msra.mxu0 %v199
    %2117 = vmatprep.subr.mxu0 %v204
    %2118 = vmatpush1.msra.mxu0 %v203
    %2119 = vmatprep.subr.mxu0 %v208
    %2120 = vmatpush1.msra.mxu0 %v207
    %2121 = vmatprep.subr.mxu0 %v212
    %2122 = vmatpush1.msra.mxu0 %v211
    %2123 = vmatprep.subr.mxu0 %v216
    %2124 = vmatpush1.msra.mxu0 %v215
    %2125 = vmatprep.subr.mxu0 %v220
    %2126 = vmatpush1.msra.mxu0 %v219
    %2127 = vmatprep.subr.mxu0 0.0
    %2128 = vmatpush1.msra.mxu0 0.0
    %2129 = vmatprep.subr.mxu0 0.0
    %2130 = vmatpush1.msra.mxu0 0.0
    %2131 = vmatprep.subr.mxu0 0.0
    %2132 = vmatpush1.msra.mxu0 0.0
    %2133 = vmatprep.subr.mxu0 0.0
    %2134 = vmatpush1.msra.mxu0 0.0
    %2135 = vmatprep.subr.mxu0 0.0
    %2136 = vmatpush1.msra.mxu0 0.0
    %2137 = vmatprep.subr.mxu0 0.0
    %2138 = vmatpush1.msra.mxu0 0.0
    %2139 = vmatprep.subr.mxu0 0.0
    %2140 = vmatpush1.msra.mxu0 0.0
    %2141 = vmatprep.subr.mxu0 0.0
    %2142 = vmatpush1.msra.mxu0 0.0
    %2143 = vmatprep.subr.mxu0 0.0
    %2144 = vmatpush1.msra.mxu0 0.0
    %2145 = vmatprep.subr.mxu0 0.0
    %2146 = vmatpush1.msra.mxu0 0.0
    %2147 = vmatprep.subr.mxu0 0.0
    %2148 = vmatpush1.msra.mxu0 0.0
    %2149 = vmatprep.subr.mxu0 0.0
    %2150 = vmatpush1.msra.mxu0 0.0
    %2151 = vmatprep.subr.mxu0 0.0
    %2152 = vmatpush1.msra.mxu0 0.0
    %2153 = vmatprep.subr.mxu0 0.0
    %2154 = vmatpush1.msra.mxu0 0.0
    %2155 = vmatprep.subr.mxu0 0.0
    %2156 = vmatpush1.msra.mxu0 0.0
    %2157 = vmatprep.subr.mxu0 0.0
    %2158 = vmatpush1.msra.mxu0 0.0
    %2159 = vmatprep.mubr.f32.mxu0 0.0
    %2160 = vmatmul.mubr.f32.gmra.mrb[0].mxu0 %v1952
    %v2161 = vpop.f32.mrb[0].mxu0
    %v2162 = vadd.f32 %v2020, %v2161
    %v2163 = vpop.f32.mrb[0].mxu0
    %v2164 = vadd.f32 %v2022, %v2163
    %2165 = vdwg.mxu0
    %2166 = vmatprep.subr.mxu0 %v162
    %2167 = vmatpush1.msra.mxu0 %v161
    %2168 = vmatprep.subr.mxu0 %v166
    %2169 = vmatpush1.msra.mxu0 %v165
    %2170 = vmatprep.subr.mxu0 %v170
    %2171 = vmatpush1.msra.mxu0 %v169
    %2172 = vmatprep.subr.mxu0 %v174
    %2173 = vmatpush1.msra.mxu0 %v173
    %2174 = vmatprep.subr.mxu0 %v178
    %2175 = vmatpush1.msra.mxu0 %v177
    %2176 = vmatprep.subr.mxu0 %v182
    %2177 = vmatpush1.msra.mxu0 %v181
    %2178 = vmatprep.subr.mxu0 %v186
    %2179 = vmatpush1.msra.mxu0 %v185
    %2180 = vmatprep.subr.mxu0 %v190
    %2181 = vmatpush1.msra.mxu0 %v189
    %2182 = vmatprep.subr.mxu0 %v194
    %2183 = vmatpush1.msra.mxu0 %v193
    %2184 = vmatprep.subr.mxu0 %v198
    %2185 = vmatpush1.msra.mxu0 %v197
    %2186 = vmatprep.subr.mxu0 %v202
    %2187 = vmatpush1.msra.mxu0 %v201
    %2188 = vmatprep.subr.mxu0 %v206
    %2189 = vmatpush1.msra.mxu0 %v205
    %2190 = vmatprep.subr.mxu0 %v210
    %2191 = vmatpush1.msra.mxu0 %v209
    %2192 = vmatprep.subr.mxu0 %v214
    %2193 = vmatpush1.msra.mxu0 %v213
    %2194 = vmatprep.subr.mxu0 %v218
    %2195 = vmatpush1.msra.mxu0 %v217
    %2196 = vmatprep.subr.mxu0 %v222
    %2197 = vmatpush1.msra.mxu0 %v221
    %2198 = vmatprep.subr.mxu0 0.0
    %2199 = vmatpush1.msra.mxu0 0.0
    %2200 = vmatprep.subr.mxu0 0.0
    %2201 = vmatpush1.msra.mxu0 0.0
    %2202 = vmatprep.subr.mxu0 0.0
    %2203 = vmatpush1.msra.mxu0 0.0
    %2204 = vmatprep.subr.mxu0 0.0
    %2205 = vmatpush1.msra.mxu0 0.0
    %2206 = vmatprep.subr.mxu0 0.0
    %2207 = vmatpush1.msra.mxu0 0.0
    %2208 = vmatprep.subr.mxu0 0.0
    %2209 = vmatpush1.msra.mxu0 0.0
    %2210 = vmatprep.subr.mxu0 0.0
    %2211 = vmatpush1.msra.mxu0 0.0
    %2212 = vmatprep.subr.mxu0 0.0
    %2213 = vmatpush1.msra.mxu0 0.0
    %2214 = vmatprep.subr.mxu0 0.0
    %2215 = vmatpush1.msra.mxu0 0.0
    %2216 = vmatprep.subr.mxu0 0.0
    %2217 = vmatpush1.msra.mxu0 0.0
    %2218 = vmatprep.subr.mxu0 0.0
    %2219 = vmatpush1.msra.mxu0 0.0
    %2220 = vmatprep.subr.mxu0 0.0
    %2221 = vmatpush1.msra.mxu0 0.0
    %2222 = vmatprep.subr.mxu0 0.0
    %2223 = vmatpush1.msra.mxu0 0.0
    %2224 = vmatprep.subr.mxu0 0.0
    %2225 = vmatpush1.msra.mxu0 0.0
    %2226 = vmatprep.subr.mxu0 0.0
    %2227 = vmatpush1.msra.mxu0 0.0
    %2228 = vmatprep.subr.mxu0 0.0
    %2229 = vmatpush1.msra.mxu0 0.0
    %2230 = vmatprep.mubr.f32.mxu0 0.0
    %2231 = vmatmul.mubr.f32.gmra.mrb[0].mxu0 %v1952
    %v2232 = vpop.f32.mrb[0].mxu0
    %v2233 = vadd.f32 %v2091, %v2232
    %v2234 = vpop.f32.mrb[0].mxu0
    %v2235 = vadd.f32 %v2093, %v2234
    %2236 = vdwg.mxu0
    %v2237 = vadd.f32 %v2162, %v754
    %v2238 = vadd.f32 %v2164, %v758
    %v2239 = vadd.f32 %v2233, %v762
    %v2240 = vadd.f32 %v2235, %v766
    %v2241 = vxor.u32 %v2237, 2147483648
    %v2242 = vmul.f32 %v2241, 1.442695
    %v2243 = vpow.pop %v2242
    %v2244 = vadd.f32 %v2243, 1.0
    %v2245 = vrcp.pop %v2244
    %v2246 = vmul.f32 1.0, %v2245
    %v2247 = vxor.u32 %v2238, 2147483648
    %v2248 = vmul.f32 %v2247, 1.442695
    %v2249 = vpow.pop %v2248
    %v2250 = vadd.f32 %v2249, 1.0
    %v2251 = vrcp.pop %v2250
    %v2252 = vmul.f32 1.0, %v2251
    %v2253 = vtanh.pop %v2239
    %v2254 = vxor.u32 %v2240, 2147483648
    %v2255 = vmul.f32 %v2254, 1.442695
    %v2256 = vpow.pop %v2255
    %v2257 = vadd.f32 %v2256, 1.0
    %v2258 = vrcp.pop %v2257
    %v2259 = vmul.f32 1.0, %v2258
    %v2260 = vmul.f32 %v2252, %v1773
    %v2261 = vmul.f32 %v2246, %v2253
    %v2262 = vadd.f32 %v2260, %v2261
    %v2263 = vtanh.pop %v2262
    %v2264 = vmul.f32 %v2259, %v2263
    %s2265 = scalar_lea.vmem [#allocation15], 24
    %2266 = vst [vmem:[%s2265] sm:$0xff] %v2264
    %s2267 = scalar_lea.vmem [#allocation6], 128
    %v2268 = vld [vmem:[%s2267] sm:$0xff]
    %v2269 = vld [vmem:[%s2267 + $0x8] sm:$0xff]
    %v2270 = vld [vmem:[%s2267 + $0x10] sm:$0xff]
    %v2271 = vld [vmem:[%s2267 + $0x18] sm:$0xff]
    %2272 = vmatprep.subr.mxu0 %v96
    %2273 = vmatpush1.msra.mxu0 %v95
    %2274 = vmatprep.subr.mxu0 %v100
    %2275 = vmatpush1.msra.mxu0 %v99
    %2276 = vmatprep.subr.mxu0 %v104
    %2277 = vmatpush1.msra.mxu0 %v103
    %2278 = vmatprep.subr.mxu0 %v108
    %2279 = vmatpush1.msra.mxu0 %v107
    %2280 = vmatprep.subr.mxu0 %v112
    %2281 = vmatpush1.msra.mxu0 %v111
    %2282 = vmatprep.subr.mxu0 %v116
    %2283 = vmatpush1.msra.mxu0 %v115
    %2284 = vmatprep.subr.mxu0 %v120
    %2285 = vmatpush1.msra.mxu0 %v119
    %2286 = vmatprep.subr.mxu0 %v124
    %2287 = vmatpush1.msra.mxu0 %v123
    %2288 = vmatprep.subr.mxu0 %v128
    %2289 = vmatpush1.msra.mxu0 %v127
    %2290 = vmatprep.subr.mxu0 %v132
    %2291 = vmatpush1.msra.mxu0 %v131
    %2292 = vmatprep.subr.mxu0 %v136
    %2293 = vmatpush1.msra.mxu0 %v135
    %2294 = vmatprep.subr.mxu0 %v140
    %2295 = vmatpush1.msra.mxu0 %v139
    %2296 = vmatprep.subr.mxu0 %v144
    %2297 = vmatpush1.msra.mxu0 %v143
    %2298 = vmatprep.subr.mxu0 %v148
    %2299 = vmatpush1.msra.mxu0 %v147
    %2300 = vmatprep.subr.mxu0 %v152
    %2301 = vmatpush1.msra.mxu0 %v151
    %2302 = vmatprep.subr.mxu0 %v156
    %2303 = vmatpush1.msra.mxu0 %v155
    %2304 = vmatprep.subr.mxu0 0.0
    %2305 = vmatpush1.msra.mxu0 0.0
    %2306 = vmatprep.subr.mxu0 0.0
    %2307 = vmatpush1.msra.mxu0 0.0
    %2308 = vmatprep.subr.mxu0 0.0
    %2309 = vmatpush1.msra.mxu0 0.0
    %2310 = vmatprep.subr.mxu0 0.0
    %2311 = vmatpush1.msra.mxu0 0.0
    %2312 = vmatprep.subr.mxu0 0.0
    %2313 = vmatpush1.msra.mxu0 0.0
    %2314 = vmatprep.subr.mxu0 0.0
    %2315 = vmatpush1.msra.mxu0 0.0
    %2316 = vmatprep.subr.mxu0 0.0
    %2317 = vmatpush1.msra.mxu0 0.0
    %2318 = vmatprep.subr.mxu0 0.0
    %2319 = vmatpush1.msra.mxu0 0.0
    %2320 = vmatprep.subr.mxu0 0.0
    %2321 = vmatpush1.msra.mxu0 0.0
    %2322 = vmatprep.subr.mxu0 0.0
    %2323 = vmatpush1.msra.mxu0 0.0
    %2324 = vmatprep.subr.mxu0 0.0
    %2325 = vmatpush1.msra.mxu0 0.0
    %2326 = vmatprep.subr.mxu0 0.0
    %2327 = vmatpush1.msra.mxu0 0.0
    %2328 = vmatprep.subr.mxu0 0.0
    %2329 = vmatpush1.msra.mxu0 0.0
    %2330 = vmatprep.subr.mxu0 0.0
    %2331 = vmatpush1.msra.mxu0 0.0
    %2332 = vmatprep.subr.mxu0 0.0
    %2333 = vmatpush1.msra.mxu0 0.0
    %2334 = vmatprep.subr.mxu0 0.0
    %2335 = vmatpush1.msra.mxu0 0.0
    %2336 = vmatprep.mubr.f32.mxu0 0.0
    %2337 = vmatmul.mubr.f32.gmra.mrb[0].mxu0 %v1952
    %v2338 = vpop.f32.mrb[0].mxu0
    %v2339 = vadd.f32 0.0, %v2338
    %v2340 = vpop.f32.mrb[0].mxu0
    %v2341 = vadd.f32 0.0, %v2340
    %2342 = vdwg.mxu0
    %2343 = vmatprep.subr.mxu0 %v98
    %2344 = vmatpush1.msra.mxu0 %v97
    %2345 = vmatprep.subr.mxu0 %v102
    %2346 = vmatpush1.msra.mxu0 %v101
    %2347 = vmatprep.subr.mxu0 %v106
    %2348 = vmatpush1.msra.mxu0 %v105
    %2349 = vmatprep.subr.mxu0 %v110
    %2350 = vmatpush1.msra.mxu0 %v109
    %2351 = vmatprep.subr.mxu0 %v114
    %2352 = vmatpush1.msra.mxu0 %v113
    %2353 = vmatprep.subr.mxu0 %v118
    %2354 = vmatpush1.msra.mxu0 %v117
    %2355 = vmatprep.subr.mxu0 %v122
    %2356 = vmatpush1.msra.mxu0 %v121
    %2357 = vmatprep.subr.mxu0 %v126
    %2358 = vmatpush1.msra.mxu0 %v125
    %2359 = vmatprep.subr.mxu0 %v130
    %2360 = vmatpush1.msra.mxu0 %v129
    %2361 = vmatprep.subr.mxu0 %v134
    %2362 = vmatpush1.msra.mxu0 %v133
    %2363 = vmatprep.subr.mxu0 %v138
    %2364 = vmatpush1.msra.mxu0 %v137
    %2365 = vmatprep.subr.mxu0 %v142
    %2366 = vmatpush1.msra.mxu0 %v141
    %2367 = vmatprep.subr.mxu0 %v146
    %2368 = vmatpush1.msra.mxu0 %v145
    %2369 = vmatprep.subr.mxu0 %v150
    %2370 = vmatpush1.msra.mxu0 %v149
    %2371 = vmatprep.subr.mxu0 %v154
    %2372 = vmatpush1.msra.mxu0 %v153
    %2373 = vmatprep.subr.mxu0 %v158
    %2374 = vmatpush1.msra.mxu0 %v157
    %2375 = vmatprep.subr.mxu0 0.0
    %2376 = vmatpush1.msra.mxu0 0.0
    %2377 = vmatprep.subr.mxu0 0.0
    %2378 = vmatpush1.msra.mxu0 0.0
    %2379 = vmatprep.subr.mxu0 0.0
    %2380 = vmatpush1.msra.mxu0 0.0
    %2381 = vmatprep.subr.mxu0 0.0
    %2382 = vmatpush1.msra.mxu0 0.0
    %2383 = vmatprep.subr.mxu0 0.0
    %2384 = vmatpush1.msra.mxu0 0.0
    %2385 = vmatprep.subr.mxu0 0.0
    %2386 = vmatpush1.msra.mxu0 0.0
    %2387 = vmatprep.subr.mxu0 0.0
    %2388 = vmatpush1.msra.mxu0 0.0
    %2389 = vmatprep.subr.mxu0 0.0
    %2390 = vmatpush1.msra.mxu0 0.0
    %2391 = vmatprep.subr.mxu0 0.0
    %2392 = vmatpush1.msra.mxu0 0.0
    %2393 = vmatprep.subr.mxu0 0.0
    %2394 = vmatpush1.msra.mxu0 0.0
    %2395 = vmatprep.subr.mxu0 0.0
    %2396 = vmatpush1.msra.mxu0 0.0
    %2397 = vmatprep.subr.mxu0 0.0
    %2398 = vmatpush1.msra.mxu0 0.0
    %2399 = vmatprep.subr.mxu0 0.0
    %2400 = vmatpush1.msra.mxu0 0.0
    %2401 = vmatprep.subr.mxu0 0.0
    %2402 = vmatpush1.msra.mxu0 0.0
    %2403 = vmatprep.subr.mxu0 0.0
    %2404 = vmatpush1.msra.mxu0 0.0
    %2405 = vmatprep.subr.mxu0 0.0
    %2406 = vmatpush1.msra.mxu0 0.0
    %2407 = vmatprep.mubr.f32.mxu0 0.0
    %2408 = vmatmul.mubr.f32.gmra.mrb[0].mxu0 %v1952
    %v2409 = vpop.f32.mrb[0].mxu0
    %v2410 = vadd.f32 0.0, %v2409
    %v2411 = vpop.f32.mrb[0].mxu0
    %v2412 = vadd.f32 0.0, %v2411
    %2413 = vdwg.mxu0
    %v2414 = vadd.f32 %v2268, %v2339
    %v2415 = vadd.f32 %v2269, %v2341
    %v2416 = vadd.f32 %v2270, %v2410
    %v2417 = vadd.f32 %v2271, %v2412
    %v2418 = vxor.u32 %v2414, 2147483648
    %v2419 = vmul.f32 %v2418, 1.442695
    %v2420 = vpow.pop %v2419
    %v2421 = vadd.f32 %v2420, 1.0
    %v2422 = vrcp.pop %v2421
    %v2423 = vmul.f32 1.0, %v2422
    %v2424 = vxor.u32 %v2415, 2147483648
    %v2425 = vmul.f32 %v2424, 1.442695
    %v2426 = vpow.pop %v2425
    %v2427 = vadd.f32 %v2426, 1.0
    %v2428 = vrcp.pop %v2427
    %v2429 = vmul.f32 1.0, %v2428
    %v2430 = vtanh.pop %v2416
    %v2431 = vxor.u32 %v2417, 2147483648
    %v2432 = vmul.f32 %v2431, 1.442695
    %v2433 = vpow.pop %v2432
    %v2434 = vadd.f32 %v2433, 1.0
    %v2435 = vrcp.pop %v2434
    %v2436 = vmul.f32 1.0, %v2435
    %v2437 = vmul.f32 %v2429, %v1950
    %v2438 = vmul.f32 %v2423, %v2430
    %v2439 = vadd.f32 %v2437, %v2438
    %v2440 = vtanh.pop %v2439
    %v2441 = vmul.f32 %v2436, %v2440
    %2442 = vmatprep.subr.mxu0 %v224
    %2443 = vmatpush1.msra.mxu0 %v223
    %2444 = vmatprep.subr.mxu0 %v228
    %2445 = vmatpush1.msra.mxu0 %v227
    %2446 = vmatprep.subr.mxu0 %v232
    %2447 = vmatpush1.msra.mxu0 %v231
    %2448 = vmatprep.subr.mxu0 %v236
    %2449 = vmatpush1.msra.mxu0 %v235
    %2450 = vmatprep.subr.mxu0 %v240
    %2451 = vmatpush1.msra.mxu0 %v239
    %2452 = vmatprep.subr.mxu0 %v244
    %2453 = vmatpush1.msra.mxu0 %v243
    %2454 = vmatprep.subr.mxu0 %v248
    %2455 = vmatpush1.msra.mxu0 %v247
    %2456 = vmatprep.subr.mxu0 %v252
    %2457 = vmatpush1.msra.mxu0 %v251
    %2458 = vmatprep.subr.mxu0 %v256
    %2459 = vmatpush1.msra.mxu0 %v255
    %2460 = vmatprep.subr.mxu0 %v260
    %2461 = vmatpush1.msra.mxu0 %v259
    %2462 = vmatprep.subr.mxu0 %v264
    %2463 = vmatpush1.msra.mxu0 %v263
    %2464 = vmatprep.subr.mxu0 %v268
    %2465 = vmatpush1.msra.mxu0 %v267
    %2466 = vmatprep.subr.mxu0 %v272
    %2467 = vmatpush1.msra.mxu0 %v271
    %2468 = vmatprep.subr.mxu0 %v276
    %2469 = vmatpush1.msra.mxu0 %v275
    %2470 = vmatprep.subr.mxu0 %v280
    %2471 = vmatpush1.msra.mxu0 %v279
    %2472 = vmatprep.subr.mxu0 %v284
    %2473 = vmatpush1.msra.mxu0 %v283
    %2474 = vmatprep.subr.mxu0 0.0
    %2475 = vmatpush1.msra.mxu0 0.0
    %2476 = vmatprep.subr.mxu0 0.0
    %2477 = vmatpush1.msra.mxu0 0.0
    %2478 = vmatprep.subr.mxu0 0.0
    %2479 = vmatpush1.msra.mxu0 0.0
    %2480 = vmatprep.subr.mxu0 0.0
    %2481 = vmatpush1.msra.mxu0 0.0
    %2482 = vmatprep.subr.mxu0 0.0
    %2483 = vmatpush1.msra.mxu0 0.0
    %2484 = vmatprep.subr.mxu0 0.0
    %2485 = vmatpush1.msra.mxu0 0.0
    %2486 = vmatprep.subr.mxu0 0.0
    %2487 = vmatpush1.msra.mxu0 0.0
    %2488 = vmatprep.subr.mxu0 0.0
    %2489 = vmatpush1.msra.mxu0 0.0
    %2490 = vmatprep.subr.mxu0 0.0
    %2491 = vmatpush1.msra.mxu0 0.0
    %2492 = vmatprep.subr.mxu0 0.0
    %2493 = vmatpush1.msra.mxu0 0.0
    %2494 = vmatprep.subr.mxu0 0.0
    %2495 = vmatpush1.msra.mxu0 0.0
    %2496 = vmatprep.subr.mxu0 0.0
    %2497 = vmatpush1.msra.mxu0 0.0
    %2498 = vmatprep.subr.mxu0 0.0
    %2499 = vmatpush1.msra.mxu0 0.0
    %2500 = vmatprep.subr.mxu0 0.0
    %2501 = vmatpush1.msra.mxu0 0.0
    %2502 = vmatprep.subr.mxu0 0.0
    %2503 = vmatpush1.msra.mxu0 0.0
    %2504 = vmatprep.subr.mxu0 0.0
    %2505 = vmatpush1.msra.mxu0 0.0
    %2506 = vmatprep.mubr.f32.mxu0 0.0
    %2507 = vmatmul.mubr.f32.gmra.mrb[0].mxu0 %v2264
    %v2508 = vpop.f32.mrb[0].mxu0
    %v2509 = vadd.f32 0.0, %v2508
    %v2510 = vpop.f32.mrb[0].mxu0
    %v2511 = vadd.f32 0.0, %v2510
    %2512 = vdwg.mxu0
    %2513 = vmatprep.subr.mxu0 %v226
    %2514 = vmatpush1.msra.mxu0 %v225
    %2515 = vmatprep.subr.mxu0 %v230
    %2516 = vmatpush1.msra.mxu0 %v229
    %2517 = vmatprep.subr.mxu0 %v234
    %2518 = vmatpush1.msra.mxu0 %v233
    %2519 = vmatprep.subr.mxu0 %v238
    %2520 = vmatpush1.msra.mxu0 %v237
    %2521 = vmatprep.subr.mxu0 %v242
    %2522 = vmatpush1.msra.mxu0 %v241
    %2523 = vmatprep.subr.mxu0 %v246
    %2524 = vmatpush1.msra.mxu0 %v245
    %2525 = vmatprep.subr.mxu0 %v250
    %2526 = vmatpush1.msra.mxu0 %v249
    %2527 = vmatprep.subr.mxu0 %v254
    %2528 = vmatpush1.msra.mxu0 %v253
    %2529 = vmatprep.subr.mxu0 %v258
    %2530 = vmatpush1.msra.mxu0 %v257
    %2531 = vmatprep.subr.mxu0 %v262
    %2532 = vmatpush1.msra.mxu0 %v261
    %2533 = vmatprep.subr.mxu0 %v266
    %2534 = vmatpush1.msra.mxu0 %v265
    %2535 = vmatprep.subr.mxu0 %v270
    %2536 = vmatpush1.msra.mxu0 %v269
    %2537 = vmatprep.subr.mxu0 %v274
    %2538 = vmatpush1.msra.mxu0 %v273
    %2539 = vmatprep.subr.mxu0 %v278
    %2540 = vmatpush1.msra.mxu0 %v277
    %2541 = vmatprep.subr.mxu0 %v282
    %2542 = vmatpush1.msra.mxu0 %v281
    %2543 = vmatprep.subr.mxu0 %v286
    %2544 = vmatpush1.msra.mxu0 %v285
    %2545 = vmatprep.subr.mxu0 0.0
    %2546 = vmatpush1.msra.mxu0 0.0
    %2547 = vmatprep.subr.mxu0 0.0
    %2548 = vmatpush1.msra.mxu0 0.0
    %2549 = vmatprep.subr.mxu0 0.0
    %2550 = vmatpush1.msra.mxu0 0.0
    %2551 = vmatprep.subr.mxu0 0.0
    %2552 = vmatpush1.msra.mxu0 0.0
    %2553 = vmatprep.subr.mxu0 0.0
    %2554 = vmatpush1.msra.mxu0 0.0
    %2555 = vmatprep.subr.mxu0 0.0
    %2556 = vmatpush1.msra.mxu0 0.0
    %2557 = vmatprep.subr.mxu0 0.0
    %2558 = vmatpush1.msra.mxu0 0.0
    %2559 = vmatprep.subr.mxu0 0.0
    %2560 = vmatpush1.msra.mxu0 0.0
    %2561 = vmatprep.subr.mxu0 0.0
    %2562 = vmatpush1.msra.mxu0 0.0
    %2563 = vmatprep.subr.mxu0 0.0
    %2564 = vmatpush1.msra.mxu0 0.0
    %2565 = vmatprep.subr.mxu0 0.0
    %2566 = vmatpush1.msra.mxu0 0.0
    %2567 = vmatprep.subr.mxu0 0.0
    %2568 = vmatpush1.msra.mxu0 0.0
    %2569 = vmatprep.subr.mxu0 0.0
    %2570 = vmatpush1.msra.mxu0 0.0
    %2571 = vmatprep.subr.mxu0 0.0
    %2572 = vmatpush1.msra.mxu0 0.0
    %2573 = vmatprep.subr.mxu0 0.0
    %2574 = vmatpush1.msra.mxu0 0.0
    %2575 = vmatprep.subr.mxu0 0.0
    %2576 = vmatpush1.msra.mxu0 0.0
    %2577 = vmatprep.mubr.f32.mxu0 0.0
    %2578 = vmatmul.mubr.f32.gmra.mrb[0].mxu0 %v2264
    %v2579 = vpop.f32.mrb[0].mxu0
    %v2580 = vadd.f32 0.0, %v2579
    %v2581 = vpop.f32.mrb[0].mxu0
    %v2582 = vadd.f32 0.0, %v2581
    %2583 = vdwg.mxu0
    %2584 = vmatprep.subr.mxu0 %v160
    %2585 = vmatpush1.msra.mxu0 %v159
    %2586 = vmatprep.subr.mxu0 %v164
    %2587 = vmatpush1.msra.mxu0 %v163
    %2588 = vmatprep.subr.mxu0 %v168
    %2589 = vmatpush1.msra.mxu0 %v167
    %2590 = vmatprep.subr.mxu0 %v172
    %2591 = vmatpush1.msra.mxu0 %v171
    %2592 = vmatprep.subr.mxu0 %v176
    %2593 = vmatpush1.msra.mxu0 %v175
    %2594 = vmatprep.subr.mxu0 %v180
    %2595 = vmatpush1.msra.mxu0 %v179
    %2596 = vmatprep.subr.mxu0 %v184
    %2597 = vmatpush1.msra.mxu0 %v183
    %2598 = vmatprep.subr.mxu0 %v188
    %2599 = vmatpush1.msra.mxu0 %v187
    %2600 = vmatprep.subr.mxu0 %v192
    %2601 = vmatpush1.msra.mxu0 %v191
    %2602 = vmatprep.subr.mxu0 %v196
    %2603 = vmatpush1.msra.mxu0 %v195
    %2604 = vmatprep.subr.mxu0 %v200
    %2605 = vmatpush1.msra.mxu0 %v199
    %2606 = vmatprep.subr.mxu0 %v204
    %2607 = vmatpush1.msra.mxu0 %v203
    %2608 = vmatprep.subr.mxu0 %v208
    %2609 = vmatpush1.msra.mxu0 %v207
    %2610 = vmatprep.subr.mxu0 %v212
    %2611 = vmatpush1.msra.mxu0 %v211
    %2612 = vmatprep.subr.mxu0 %v216
    %2613 = vmatpush1.msra.mxu0 %v215
    %2614 = vmatprep.subr.mxu0 %v220
    %2615 = vmatpush1.msra.mxu0 %v219
    %2616 = vmatprep.subr.mxu0 0.0
    %2617 = vmatpush1.msra.mxu0 0.0
    %2618 = vmatprep.subr.mxu0 0.0
    %2619 = vmatpush1.msra.mxu0 0.0
    %2620 = vmatprep.subr.mxu0 0.0
    %2621 = vmatpush1.msra.mxu0 0.0
    %2622 = vmatprep.subr.mxu0 0.0
    %2623 = vmatpush1.msra.mxu0 0.0
    %2624 = vmatprep.subr.mxu0 0.0
    %2625 = vmatpush1.msra.mxu0 0.0
    %2626 = vmatprep.subr.mxu0 0.0
    %2627 = vmatpush1.msra.mxu0 0.0
    %2628 = vmatprep.subr.mxu0 0.0
    %2629 = vmatpush1.msra.mxu0 0.0
    %2630 = vmatprep.subr.mxu0 0.0
    %2631 = vmatpush1.msra.mxu0 0.0
    %2632 = vmatprep.subr.mxu0 0.0
    %2633 = vmatpush1.msra.mxu0 0.0
    %2634 = vmatprep.subr.mxu0 0.0
    %2635 = vmatpush1.msra.mxu0 0.0
    %2636 = vmatprep.subr.mxu0 0.0
    %2637 = vmatpush1.msra.mxu0 0.0
    %2638 = vmatprep.subr.mxu0 0.0
    %2639 = vmatpush1.msra.mxu0 0.0
    %2640 = vmatprep.subr.mxu0 0.0
    %2641 = vmatpush1.msra.mxu0 0.0
    %2642 = vmatprep.subr.mxu0 0.0
    %2643 = vmatpush1.msra.mxu0 0.0
    %2644 = vmatprep.subr.mxu0 0.0
    %2645 = vmatpush1.msra.mxu0 0.0
    %2646 = vmatprep.subr.mxu0 0.0
    %2647 = vmatpush1.msra.mxu0 0.0
    %2648 = vmatprep.mubr.f32.mxu0 0.0
    %2649 = vmatmul.mubr.f32.gmra.mrb[0].mxu0 %v2441
    %v2650 = vpop.f32.mrb[0].mxu0
    %v2651 = vadd.f32 %v2509, %v2650
    %v2652 = vpop.f32.mrb[0].mxu0
    %v2653 = vadd.f32 %v2511, %v2652
    %2654 = vdwg.mxu0
    %2655 = vmatprep.subr.mxu0 %v162
    %2656 = vmatpush1.msra.mxu0 %v161
    %2657 = vmatprep.subr.mxu0 %v166
    %2658 = vmatpush1.msra.mxu0 %v165
    %2659 = vmatprep.subr.mxu0 %v170
    %2660 = vmatpush1.msra.mxu0 %v169
    %2661 = vmatprep.subr.mxu0 %v174
    %2662 = vmatpush1.msra.mxu0 %v173
    %2663 = vmatprep.subr.mxu0 %v178
    %2664 = vmatpush1.msra.mxu0 %v177
    %2665 = vmatprep.subr.mxu0 %v182
    %2666 = vmatpush1.msra.mxu0 %v181
    %2667 = vmatprep.subr.mxu0 %v186
    %2668 = vmatpush1.msra.mxu0 %v185
    %2669 = vmatprep.subr.mxu0 %v190
    %2670 = vmatpush1.msra.mxu0 %v189
    %2671 = vmatprep.subr.mxu0 %v194
    %2672 = vmatpush1.msra.mxu0 %v193
    %2673 = vmatprep.subr.mxu0 %v198
    %2674 = vmatpush1.msra.mxu0 %v197
    %2675 = vmatprep.subr.mxu0 %v202
    %2676 = vmatpush1.msra.mxu0 %v201
    %2677 = vmatprep.subr.mxu0 %v206
    %2678 = vmatpush1.msra.mxu0 %v205
    %2679 = vmatprep.subr.mxu0 %v210
    %2680 = vmatpush1.msra.mxu0 %v209
    %2681 = vmatprep.subr.mxu0 %v214
    %2682 = vmatpush1.msra.mxu0 %v213
    %2683 = vmatprep.subr.mxu0 %v218
    %2684 = vmatpush1.msra.mxu0 %v217
    %2685 = vmatprep.subr.mxu0 %v222
    %2686 = vmatpush1.msra.mxu0 %v221
    %2687 = vmatprep.subr.mxu0 0.0
    %2688 = vmatpush1.msra.mxu0 0.0
    %2689 = vmatprep.subr.mxu0 0.0
    %2690 = vmatpush1.msra.mxu0 0.0
    %2691 = vmatprep.subr.mxu0 0.0
    %2692 = vmatpush1.msra.mxu0 0.0
    %2693 = vmatprep.subr.mxu0 0.0
    %2694 = vmatpush1.msra.mxu0 0.0
    %2695 = vmatprep.subr.mxu0 0.0
    %2696 = vmatpush1.msra.mxu0 0.0
    %2697 = vmatprep.subr.mxu0 0.0
    %2698 = vmatpush1.msra.mxu0 0.0
    %2699 = vmatprep.subr.mxu0 0.0
    %2700 = vmatpush1.msra.mxu0 0.0
    %2701 = vmatprep.subr.mxu0 0.0
    %2702 = vmatpush1.msra.mxu0 0.0
    %2703 = vmatprep.subr.mxu0 0.0
    %2704 = vmatpush1.msra.mxu0 0.0
    %2705 = vmatprep.subr.mxu0 0.0
    %2706 = vmatpush1.msra.mxu0 0.0
    %2707 = vmatprep.subr.mxu0 0.0
    %2708 = vmatpush1.msra.mxu0 0.0
    %2709 = vmatprep.subr.mxu0 0.0
    %2710 = vmatpush1.msra.mxu0 0.0
    %2711 = vmatprep.subr.mxu0 0.0
    %2712 = vmatpush1.msra.mxu0 0.0
    %2713 = vmatprep.subr.mxu0 0.0
    %2714 = vmatpush1.msra.mxu0 0.0
    %2715 = vmatprep.subr.mxu0 0.0
    %2716 = vmatpush1.msra.mxu0 0.0
    %2717 = vmatprep.subr.mxu0 0.0
    %2718 = vmatpush1.msra.mxu0 0.0
    %2719 = vmatprep.mubr.f32.mxu0 0.0
    %2720 = vmatmul.mubr.f32.gmra.mrb[0].mxu0 %v2441
    %v2721 = vpop.f32.mrb[0].mxu0
    %v2722 = vadd.f32 %v2580, %v2721
    %v2723 = vpop.f32.mrb[0].mxu0
    %v2724 = vadd.f32 %v2582, %v2723
    %2725 = vdwg.mxu0
    %v2726 = vadd.f32 %v2651, %v754
    %v2727 = vadd.f32 %v2653, %v758
    %v2728 = vadd.f32 %v2722, %v762
    %v2729 = vadd.f32 %v2724, %v766
    %v2730 = vxor.u32 %v2726, 2147483648
    %v2731 = vmul.f32 %v2730, 1.442695
    %v2732 = vpow.pop %v2731
    %v2733 = vadd.f32 %v2732, 1.0
    %v2734 = vrcp.pop %v2733
    %v2735 = vmul.f32 1.0, %v2734
    %v2736 = vxor.u32 %v2727, 2147483648
    %v2737 = vmul.f32 %v2736, 1.442695
    %v2738 = vpow.pop %v2737
    %v2739 = vadd.f32 %v2738, 1.0
    %v2740 = vrcp.pop %v2739
    %v2741 = vmul.f32 1.0, %v2740
    %v2742 = vtanh.pop %v2728
    %v2743 = vxor.u32 %v2729, 2147483648
    %v2744 = vmul.f32 %v2743, 1.442695
    %v2745 = vpow.pop %v2744
    %v2746 = vadd.f32 %v2745, 1.0
    %v2747 = vrcp.pop %v2746
    %v2748 = vmul.f32 1.0, %v2747
    %v2749 = vmul.f32 %v2741, %v2262
    %v2750 = vmul.f32 %v2735, %v2742
    %v2751 = vadd.f32 %v2749, %v2750
    %v2752 = vtanh.pop %v2751
    %v2753 = vmul.f32 %v2748, %v2752
    %s2754 = scalar_lea.vmem [#allocation15], 32
    %2755 = vst [vmem:[%s2754] sm:$0xff] %v2753
    %s2756 = scalar_lea.vmem [#allocation6], 160
    %v2757 = vld [vmem:[%s2756] sm:$0xff]
    %v2758 = vld [vmem:[%s2756 + $0x8] sm:$0xff]
    %v2759 = vld [vmem:[%s2756 + $0x10] sm:$0xff]
    %v2760 = vld [vmem:[%s2756 + $0x18] sm:$0xff]
    %2761 = vmatprep.subr.mxu0 %v96
    %2762 = vmatpush1.msra.mxu0 %v95
    %2763 = vmatprep.subr.mxu0 %v100
    %2764 = vmatpush1.msra.mxu0 %v99
    %2765 = vmatprep.subr.mxu0 %v104
    %2766 = vmatpush1.msra.mxu0 %v103
    %2767 = vmatprep.subr.mxu0 %v108
    %2768 = vmatpush1.msra.mxu0 %v107
    %2769 = vmatprep.subr.mxu0 %v112
    %2770 = vmatpush1.msra.mxu0 %v111
    %2771 = vmatprep.subr.mxu0 %v116
    %2772 = vmatpush1.msra.mxu0 %v115
    %2773 = vmatprep.subr.mxu0 %v120
    %2774 = vmatpush1.msra.mxu0 %v119
    %2775 = vmatprep.subr.mxu0 %v124
    %2776 = vmatpush1.msra.mxu0 %v123
    %2777 = vmatprep.subr.mxu0 %v128
    %2778 = vmatpush1.msra.mxu0 %v127
    %2779 = vmatprep.subr.mxu0 %v132
    %2780 = vmatpush1.msra.mxu0 %v131
    %2781 = vmatprep.subr.mxu0 %v136
    %2782 = vmatpush1.msra.mxu0 %v135
    %2783 = vmatprep.subr.mxu0 %v140
    %2784 = vmatpush1.msra.mxu0 %v139
    %2785 = vmatprep.subr.mxu0 %v144
    %2786 = vmatpush1.msra.mxu0 %v143
    %2787 = vmatprep.subr.mxu0 %v148
    %2788 = vmatpush1.msra.mxu0 %v147
    %2789 = vmatprep.subr.mxu0 %v152
    %2790 = vmatpush1.msra.mxu0 %v151
    %2791 = vmatprep.subr.mxu0 %v156
    %2792 = vmatpush1.msra.mxu0 %v155
    %2793 = vmatprep.subr.mxu0 0.0
    %2794 = vmatpush1.msra.mxu0 0.0
    %2795 = vmatprep.subr.mxu0 0.0
    %2796 = vmatpush1.msra.mxu0 0.0
    %2797 = vmatprep.subr.mxu0 0.0
    %2798 = vmatpush1.msra.mxu0 0.0
    %2799 = vmatprep.subr.mxu0 0.0
    %2800 = vmatpush1.msra.mxu0 0.0
    %2801 = vmatprep.subr.mxu0 0.0
    %2802 = vmatpush1.msra.mxu0 0.0
    %2803 = vmatprep.subr.mxu0 0.0
    %2804 = vmatpush1.msra.mxu0 0.0
    %2805 = vmatprep.subr.mxu0 0.0
    %2806 = vmatpush1.msra.mxu0 0.0
    %2807 = vmatprep.subr.mxu0 0.0
    %2808 = vmatpush1.msra.mxu0 0.0
    %2809 = vmatprep.subr.mxu0 0.0
    %2810 = vmatpush1.msra.mxu0 0.0
    %2811 = vmatprep.subr.mxu0 0.0
    %2812 = vmatpush1.msra.mxu0 0.0
    %2813 = vmatprep.subr.mxu0 0.0
    %2814 = vmatpush1.msra.mxu0 0.0
    %2815 = vmatprep.subr.mxu0 0.0
    %2816 = vmatpush1.msra.mxu0 0.0
    %2817 = vmatprep.subr.mxu0 0.0
    %2818 = vmatpush1.msra.mxu0 0.0
    %2819 = vmatprep.subr.mxu0 0.0
    %2820 = vmatpush1.msra.mxu0 0.0
    %2821 = vmatprep.subr.mxu0 0.0
    %2822 = vmatpush1.msra.mxu0 0.0
    %2823 = vmatprep.subr.mxu0 0.0
    %2824 = vmatpush1.msra.mxu0 0.0
    %2825 = vmatprep.mubr.f32.mxu0 0.0
    %2826 = vmatmul.mubr.f32.gmra.mrb[0].mxu0 %v2441
    %v2827 = vpop.f32.mrb[0].mxu0
    %v2828 = vadd.f32 0.0, %v2827
    %v2829 = vpop.f32.mrb[0].mxu0
    %v2830 = vadd.f32 0.0, %v2829
    %2831 = vdwg.mxu0
    %2832 = vmatprep.subr.mxu0 %v98
    %2833 = vmatpush1.msra.mxu0 %v97
    %2834 = vmatprep.subr.mxu0 %v102
    %2835 = vmatpush1.msra.mxu0 %v101
    %2836 = vmatprep.subr.mxu0 %v106
    %2837 = vmatpush1.msra.mxu0 %v105
    %2838 = vmatprep.subr.mxu0 %v110
    %2839 = vmatpush1.msra.mxu0 %v109
    %2840 = vmatprep.subr.mxu0 %v114
    %2841 = vmatpush1.msra.mxu0 %v113
    %2842 = vmatprep.subr.mxu0 %v118
    %2843 = vmatpush1.msra.mxu0 %v117
    %2844 = vmatprep.subr.mxu0 %v122
    %2845 = vmatpush1.msra.mxu0 %v121
    %2846 = vmatprep.subr.mxu0 %v126
    %2847 = vmatpush1.msra.mxu0 %v125
    %2848 = vmatprep.subr.mxu0 %v130
    %2849 = vmatpush1.msra.mxu0 %v129
    %2850 = vmatprep.subr.mxu0 %v134
    %2851 = vmatpush1.msra.mxu0 %v133
    %2852 = vmatprep.subr.mxu0 %v138
    %2853 = vmatpush1.msra.mxu0 %v137
    %2854 = vmatprep.subr.mxu0 %v142
    %2855 = vmatpush1.msra.mxu0 %v141
    %2856 = vmatprep.subr.mxu0 %v146
    %2857 = vmatpush1.msra.mxu0 %v145
    %2858 = vmatprep.subr.mxu0 %v150
    %2859 = vmatpush1.msra.mxu0 %v149
    %2860 = vmatprep.subr.mxu0 %v154
    %2861 = vmatpush1.msra.mxu0 %v153
    %2862 = vmatprep.subr.mxu0 %v158
    %2863 = vmatpush1.msra.mxu0 %v157
    %2864 = vmatprep.subr.mxu0 0.0
    %2865 = vmatpush1.msra.mxu0 0.0
    %2866 = vmatprep.subr.mxu0 0.0
    %2867 = vmatpush1.msra.mxu0 0.0
    %2868 = vmatprep.subr.mxu0 0.0
    %2869 = vmatpush1.msra.mxu0 0.0
    %2870 = vmatprep.subr.mxu0 0.0
    %2871 = vmatpush1.msra.mxu0 0.0
    %2872 = vmatprep.subr.mxu0 0.0
    %2873 = vmatpush1.msra.mxu0 0.0
    %2874 = vmatprep.subr.mxu0 0.0
    %2875 = vmatpush1.msra.mxu0 0.0
    %2876 = vmatprep.subr.mxu0 0.0
    %2877 = vmatpush1.msra.mxu0 0.0
    %2878 = vmatprep.subr.mxu0 0.0
    %2879 = vmatpush1.msra.mxu0 0.0
    %2880 = vmatprep.subr.mxu0 0.0
    %2881 = vmatpush1.msra.mxu0 0.0
    %2882 = vmatprep.subr.mxu0 0.0
    %2883 = vmatpush1.msra.mxu0 0.0
    %2884 = vmatprep.subr.mxu0 0.0
    %2885 = vmatpush1.msra.mxu0 0.0
    %2886 = vmatprep.subr.mxu0 0.0
    %2887 = vmatpush1.msra.mxu0 0.0
    %2888 = vmatprep.subr.mxu0 0.0
    %2889 = vmatpush1.msra.mxu0 0.0
    %2890 = vmatprep.subr.mxu0 0.0
    %2891 = vmatpush1.msra.mxu0 0.0
    %2892 = vmatprep.subr.mxu0 0.0
    %2893 = vmatpush1.msra.mxu0 0.0
    %2894 = vmatprep.subr.mxu0 0.0
    %2895 = vmatpush1.msra.mxu0 0.0
    %2896 = vmatprep.mubr.f32.mxu0 0.0
    %2897 = vmatmul.mubr.f32.gmra.mrb[0].mxu0 %v2441
    %v2898 = vpop.f32.mrb[0].mxu0
    %v2899 = vadd.f32 0.0, %v2898
    %v2900 = vpop.f32.mrb[0].mxu0
    %v2901 = vadd.f32 0.0, %v2900
    %2902 = vdwg.mxu0
    %v2903 = vadd.f32 %v2757, %v2828
    %v2904 = vadd.f32 %v2758, %v2830
    %v2905 = vadd.f32 %v2759, %v2899
    %v2906 = vadd.f32 %v2760, %v2901
    %v2907 = vxor.u32 %v2903, 2147483648
    %v2908 = vmul.f32 %v2907, 1.442695
    %v2909 = vpow.pop %v2908
    %v2910 = vadd.f32 %v2909, 1.0
    %v2911 = vrcp.pop %v2910
    %v2912 = vmul.f32 1.0, %v2911
    %v2913 = vxor.u32 %v2904, 2147483648
    %v2914 = vmul.f32 %v2913, 1.442695
    %v2915 = vpow.pop %v2914
    %v2916 = vadd.f32 %v2915, 1.0
    %v2917 = vrcp.pop %v2916
    %v2918 = vmul.f32 1.0, %v2917
    %v2919 = vtanh.pop %v2905
    %v2920 = vxor.u32 %v2906, 2147483648
    %v2921 = vmul.f32 %v2920, 1.442695
    %v2922 = vpow.pop %v2921
    %v2923 = vadd.f32 %v2922, 1.0
    %v2924 = vrcp.pop %v2923
    %v2925 = vmul.f32 1.0, %v2924
    %v2926 = vmul.f32 %v2918, %v2439
    %v2927 = vmul.f32 %v2912, %v2919
    %v2928 = vadd.f32 %v2926, %v2927
    %v2929 = vtanh.pop %v2928
    %v2930 = vmul.f32 %v2925, %v2929
    %2931 = vmatprep.subr.mxu0 %v224
    %2932 = vmatpush1.msra.mxu0 %v223
    %2933 = vmatprep.subr.mxu0 %v228
    %2934 = vmatpush1.msra.mxu0 %v227
    %2935 = vmatprep.subr.mxu0 %v232
    %2936 = vmatpush1.msra.mxu0 %v231
    %2937 = vmatprep.subr.mxu0 %v236
    %2938 = vmatpush1.msra.mxu0 %v235
    %2939 = vmatprep.subr.mxu0 %v240
    %2940 = vmatpush1.msra.mxu0 %v239
    %2941 = vmatprep.subr.mxu0 %v244
    %2942 = vmatpush1.msra.mxu0 %v243
    %2943 = vmatprep.subr.mxu0 %v248
    %2944 = vmatpush1.msra.mxu0 %v247
    %2945 = vmatprep.subr.mxu0 %v252
    %2946 = vmatpush1.msra.mxu0 %v251
    %2947 = vmatprep.subr.mxu0 %v256
    %2948 = vmatpush1.msra.mxu0 %v255
    %2949 = vmatprep.subr.mxu0 %v260
    %2950 = vmatpush1.msra.mxu0 %v259
    %2951 = vmatprep.subr.mxu0 %v264
    %2952 = vmatpush1.msra.mxu0 %v263
    %2953 = vmatprep.subr.mxu0 %v268
    %2954 = vmatpush1.msra.mxu0 %v267
    %2955 = vmatprep.subr.mxu0 %v272
    %2956 = vmatpush1.msra.mxu0 %v271
    %2957 = vmatprep.subr.mxu0 %v276
    %2958 = vmatpush1.msra.mxu0 %v275
    %2959 = vmatprep.subr.mxu0 %v280
    %2960 = vmatpush1.msra.mxu0 %v279
    %2961 = vmatprep.subr.mxu0 %v284
    %2962 = vmatpush1.msra.mxu0 %v283
    %2963 = vmatprep.subr.mxu0 0.0
    %2964 = vmatpush1.msra.mxu0 0.0
    %2965 = vmatprep.subr.mxu0 0.0
    %2966 = vmatpush1.msra.mxu0 0.0
    %2967 = vmatprep.subr.mxu0 0.0
    %2968 = vmatpush1.msra.mxu0 0.0
    %2969 = vmatprep.subr.mxu0 0.0
    %2970 = vmatpush1.msra.mxu0 0.0
    %2971 = vmatprep.subr.mxu0 0.0
    %2972 = vmatpush1.msra.mxu0 0.0
    %2973 = vmatprep.subr.mxu0 0.0
    %2974 = vmatpush1.msra.mxu0 0.0
    %2975 = vmatprep.subr.mxu0 0.0
    %2976 = vmatpush1.msra.mxu0 0.0
    %2977 = vmatprep.subr.mxu0 0.0
    %2978 = vmatpush1.msra.mxu0 0.0
    %2979 = vmatprep.subr.mxu0 0.0
    %2980 = vmatpush1.msra.mxu0 0.0
    %2981 = vmatprep.subr.mxu0 0.0
    %2982 = vmatpush1.msra.mxu0 0.0
    %2983 = vmatprep.subr.mxu0 0.0
    %2984 = vmatpush1.msra.mxu0 0.0
    %2985 = vmatprep.subr.mxu0 0.0
    %2986 = vmatpush1.msra.mxu0 0.0
    %2987 = vmatprep.subr.mxu0 0.0
    %2988 = vmatpush1.msra.mxu0 0.0
    %2989 = vmatprep.subr.mxu0 0.0
    %2990 = vmatpush1.msra.mxu0 0.0
    %2991 = vmatprep.subr.mxu0 0.0
    %2992 = vmatpush1.msra.mxu0 0.0
    %2993 = vmatprep.subr.mxu0 0.0
    %2994 = vmatpush1.msra.mxu0 0.0
    %2995 = vmatprep.mubr.f32.mxu0 0.0
    %2996 = vmatmul.mubr.f32.gmra.mrb[0].mxu0 %v2753
    %v2997 = vpop.f32.mrb[0].mxu0
    %v2998 = vadd.f32 0.0, %v2997
    %v2999 = vpop.f32.mrb[0].mxu0
    %v3000 = vadd.f32 0.0, %v2999
    %3001 = vdwg.mxu0
    %3002 = vmatprep.subr.mxu0 %v226
    %3003 = vmatpush1.msra.mxu0 %v225
    %3004 = vmatprep.subr.mxu0 %v230
    %3005 = vmatpush1.msra.mxu0 %v229
    %3006 = vmatprep.subr.mxu0 %v234
    %3007 = vmatpush1.msra.mxu0 %v233
    %3008 = vmatprep.subr.mxu0 %v238
    %3009 = vmatpush1.msra.mxu0 %v237
    %3010 = vmatprep.subr.mxu0 %v242
    %3011 = vmatpush1.msra.mxu0 %v241
    %3012 = vmatprep.subr.mxu0 %v246
    %3013 = vmatpush1.msra.mxu0 %v245
    %3014 = vmatprep.subr.mxu0 %v250
    %3015 = vmatpush1.msra.mxu0 %v249
    %3016 = vmatprep.subr.mxu0 %v254
    %3017 = vmatpush1.msra.mxu0 %v253
    %3018 = vmatprep.subr.mxu0 %v258
    %3019 = vmatpush1.msra.mxu0 %v257
    %3020 = vmatprep.subr.mxu0 %v262
    %3021 = vmatpush1.msra.mxu0 %v261
    %3022 = vmatprep.subr.mxu0 %v266
    %3023 = vmatpush1.msra.mxu0 %v265
    %3024 = vmatprep.subr.mxu0 %v270
    %3025 = vmatpush1.msra.mxu0 %v269
    %3026 = vmatprep.subr.mxu0 %v274
    %3027 = vmatpush1.msra.mxu0 %v273
    %3028 = vmatprep.subr.mxu0 %v278
    %3029 = vmatpush1.msra.mxu0 %v277
    %3030 = vmatprep.subr.mxu0 %v282
    %3031 = vmatpush1.msra.mxu0 %v281
    %3032 = vmatprep.subr.mxu0 %v286
    %3033 = vmatpush1.msra.mxu0 %v285
    %3034 = vmatprep.subr.mxu0 0.0
    %3035 = vmatpush1.msra.mxu0 0.0
    %3036 = vmatprep.subr.mxu0 0.0
    %3037 = vmatpush1.msra.mxu0 0.0
    %3038 = vmatprep.subr.mxu0 0.0
    %3039 = vmatpush1.msra.mxu0 0.0
    %3040 = vmatprep.subr.mxu0 0.0
    %3041 = vmatpush1.msra.mxu0 0.0
    %3042 = vmatprep.subr.mxu0 0.0
    %3043 = vmatpush1.msra.mxu0 0.0
    %3044 = vmatprep.subr.mxu0 0.0
    %3045 = vmatpush1.msra.mxu0 0.0
    %3046 = vmatprep.subr.mxu0 0.0
    %3047 = vmatpush1.msra.mxu0 0.0
    %3048 = vmatprep.subr.mxu0 0.0
    %3049 = vmatpush1.msra.mxu0 0.0
    %3050 = vmatprep.subr.mxu0 0.0
    %3051 = vmatpush1.msra.mxu0 0.0
    %3052 = vmatprep.subr.mxu0 0.0
    %3053 = vmatpush1.msra.mxu0 0.0
    %3054 = vmatprep.subr.mxu0 0.0
    %3055 = vmatpush1.msra.mxu0 0.0
    %3056 = vmatprep.subr.mxu0 0.0
    %3057 = vmatpush1.msra.mxu0 0.0
    %3058 = vmatprep.subr.mxu0 0.0
    %3059 = vmatpush1.msra.mxu0 0.0
    %3060 = vmatprep.subr.mxu0 0.0
    %3061 = vmatpush1.msra.mxu0 0.0
    %3062 = vmatprep.subr.mxu0 0.0
    %3063 = vmatpush1.msra.mxu0 0.0
    %3064 = vmatprep.subr.mxu0 0.0
    %3065 = vmatpush1.msra.mxu0 0.0
    %3066 = vmatprep.mubr.f32.mxu0 0.0
    %3067 = vmatmul.mubr.f32.gmra.mrb[0].mxu0 %v2753
    %v3068 = vpop.f32.mrb[0].mxu0
    %v3069 = vadd.f32 0.0, %v3068
    %v3070 = vpop.f32.mrb[0].mxu0
    %v3071 = vadd.f32 0.0, %v3070
    %3072 = vdwg.mxu0
    %3073 = vmatprep.subr.mxu0 %v160
    %3074 = vmatpush1.msra.mxu0 %v159
    %3075 = vmatprep.subr.mxu0 %v164
    %3076 = vmatpush1.msra.mxu0 %v163
    %3077 = vmatprep.subr.mxu0 %v168
    %3078 = vmatpush1.msra.mxu0 %v167
    %3079 = vmatprep.subr.mxu0 %v172
    %3080 = vmatpush1.msra.mxu0 %v171
    %3081 = vmatprep.subr.mxu0 %v176
    %3082 = vmatpush1.msra.mxu0 %v175
    %3083 = vmatprep.subr.mxu0 %v180
    %3084 = vmatpush1.msra.mxu0 %v179
    %3085 = vmatprep.subr.mxu0 %v184
    %3086 = vmatpush1.msra.mxu0 %v183
    %3087 = vmatprep.subr.mxu0 %v188
    %3088 = vmatpush1.msra.mxu0 %v187
    %3089 = vmatprep.subr.mxu0 %v192
    %3090 = vmatpush1.msra.mxu0 %v191
    %3091 = vmatprep.subr.mxu0 %v196
    %3092 = vmatpush1.msra.mxu0 %v195
    %3093 = vmatprep.subr.mxu0 %v200
    %3094 = vmatpush1.msra.mxu0 %v199
    %3095 = vmatprep.subr.mxu0 %v204
    %3096 = vmatpush1.msra.mxu0 %v203
    %3097 = vmatprep.subr.mxu0 %v208
    %3098 = vmatpush1.msra.mxu0 %v207
    %3099 = vmatprep.subr.mxu0 %v212
    %3100 = vmatpush1.msra.mxu0 %v211
    %3101 = vmatprep.subr.mxu0 %v216
    %3102 = vmatpush1.msra.mxu0 %v215
    %3103 = vmatprep.subr.mxu0 %v220
    %3104 = vmatpush1.msra.mxu0 %v219
    %3105 = vmatprep.subr.mxu0 0.0
    %3106 = vmatpush1.msra.mxu0 0.0
    %3107 = vmatprep.subr.mxu0 0.0
    %3108 = vmatpush1.msra.mxu0 0.0
    %3109 = vmatprep.subr.mxu0 0.0
    %3110 = vmatpush1.msra.mxu0 0.0
    %3111 = vmatprep.subr.mxu0 0.0
    %3112 = vmatpush1.msra.mxu0 0.0
    %3113 = vmatprep.subr.mxu0 0.0
    %3114 = vmatpush1.msra.mxu0 0.0
    %3115 = vmatprep.subr.mxu0 0.0
    %3116 = vmatpush1.msra.mxu0 0.0
    %3117 = vmatprep.subr.mxu0 0.0
    %3118 = vmatpush1.msra.mxu0 0.0
    %3119 = vmatprep.subr.mxu0 0.0
    %3120 = vmatpush1.msra.mxu0 0.0
    %3121 = vmatprep.subr.mxu0 0.0
    %3122 = vmatpush1.msra.mxu0 0.0
    %3123 = vmatprep.subr.mxu0 0.0
    %3124 = vmatpush1.msra.mxu0 0.0
    %3125 = vmatprep.subr.mxu0 0.0
    %3126 = vmatpush1.msra.mxu0 0.0
    %3127 = vmatprep.subr.mxu0 0.0
    %3128 = vmatpush1.msra.mxu0 0.0
    %3129 = vmatprep.subr.mxu0 0.0
    %3130 = vmatpush1.msra.mxu0 0.0
    %3131 = vmatprep.subr.mxu0 0.0
    %3132 = vmatpush1.msra.mxu0 0.0
    %3133 = vmatprep.subr.mxu0 0.0
    %3134 = vmatpush1.msra.mxu0 0.0
    %3135 = vmatprep.subr.mxu0 0.0
    %3136 = vmatpush1.msra.mxu0 0.0
    %3137 = vmatprep.mubr.f32.mxu0 0.0
    %3138 = vmatmul.mubr.f32.gmra.mrb[0].mxu0 %v2930
    %v3139 = vpop.f32.mrb[0].mxu0
    %v3140 = vadd.f32 %v2998, %v3139
    %v3141 = vpop.f32.mrb[0].mxu0
    %v3142 = vadd.f32 %v3000, %v3141
    %3143 = vdwg.mxu0
    %3144 = vmatprep.subr.mxu0 %v162
    %3145 = vmatpush1.msra.mxu0 %v161
    %3146 = vmatprep.subr.mxu0 %v166
    %3147 = vmatpush1.msra.mxu0 %v165
    %3148 = vmatprep.subr.mxu0 %v170
    %3149 = vmatpush1.msra.mxu0 %v169
    %3150 = vmatprep.subr.mxu0 %v174
    %3151 = vmatpush1.msra.mxu0 %v173
    %3152 = vmatprep.subr.mxu0 %v178
    %3153 = vmatpush1.msra.mxu0 %v177
    %3154 = vmatprep.subr.mxu0 %v182
    %3155 = vmatpush1.msra.mxu0 %v181
    %3156 = vmatprep.subr.mxu0 %v186
    %3157 = vmatpush1.msra.mxu0 %v185
    %3158 = vmatprep.subr.mxu0 %v190
    %3159 = vmatpush1.msra.mxu0 %v189
    %3160 = vmatprep.subr.mxu0 %v194
    %3161 = vmatpush1.msra.mxu0 %v193
    %3162 = vmatprep.subr.mxu0 %v198
    %3163 = vmatpush1.msra.mxu0 %v197
    %3164 = vmatprep.subr.mxu0 %v202
    %3165 = vmatpush1.msra.mxu0 %v201
    %3166 = vmatprep.subr.mxu0 %v206
    %3167 = vmatpush1.msra.mxu0 %v205
    %3168 = vmatprep.subr.mxu0 %v210
    %3169 = vmatpush1.msra.mxu0 %v209
    %3170 = vmatprep.subr.mxu0 %v214
    %3171 = vmatpush1.msra.mxu0 %v213
    %3172 = vmatprep.subr.mxu0 %v218
    %3173 = vmatpush1.msra.mxu0 %v217
    %3174 = vmatprep.subr.mxu0 %v222
    %3175 = vmatpush1.msra.mxu0 %v221
    %3176 = vmatprep.subr.mxu0 0.0
    %3177 = vmatpush1.msra.mxu0 0.0
    %3178 = vmatprep.subr.mxu0 0.0
    %3179 = vmatpush1.msra.mxu0 0.0
    %3180 = vmatprep.subr.mxu0 0.0
    %3181 = vmatpush1.msra.mxu0 0.0
    %3182 = vmatprep.subr.mxu0 0.0
    %3183 = vmatpush1.msra.mxu0 0.0
    %3184 = vmatprep.subr.mxu0 0.0
    %3185 = vmatpush1.msra.mxu0 0.0
    %3186 = vmatprep.subr.mxu0 0.0
    %3187 = vmatpush1.msra.mxu0 0.0
    %3188 = vmatprep.subr.mxu0 0.0
    %3189 = vmatpush1.msra.mxu0 0.0
    %3190 = vmatprep.subr.mxu0 0.0
    %3191 = vmatpush1.msra.mxu0 0.0
    %3192 = vmatprep.subr.mxu0 0.0
    %3193 = vmatpush1.msra.mxu0 0.0
    %3194 = vmatprep.subr.mxu0 0.0
    %3195 = vmatpush1.msra.mxu0 0.0
    %3196 = vmatprep.subr.mxu0 0.0
    %3197 = vmatpush1.msra.mxu0 0.0
    %3198 = vmatprep.subr.mxu0 0.0
    %3199 = vmatpush1.msra.mxu0 0.0
    %3200 = vmatprep.subr.mxu0 0.0
    %3201 = vmatpush1.msra.mxu0 0.0
    %3202 = vmatprep.subr.mxu0 0.0
    %3203 = vmatpush1.msra.mxu0 0.0
    %3204 = vmatprep.subr.mxu0 0.0
    %3205 = vmatpush1.msra.mxu0 0.0
    %3206 = vmatprep.subr.mxu0 0.0
    %3207 = vmatpush1.msra.mxu0 0.0
    %3208 = vmatprep.mubr.f32.mxu0 0.0
    %3209 = vmatmul.mubr.f32.gmra.mrb[0].mxu0 %v2930
    %v3210 = vpop.f32.mrb[0].mxu0
    %v3211 = vadd.f32 %v3069, %v3210
    %v3212 = vpop.f32.mrb[0].mxu0
    %v3213 = vadd.f32 %v3071, %v3212
    %3214 = vdwg.mxu0
    %v3215 = vadd.f32 %v3140, %v754
    %v3216 = vadd.f32 %v3142, %v758
    %v3217 = vadd.f32 %v3211, %v762
    %v3218 = vadd.f32 %v3213, %v766
    %v3219 = vxor.u32 %v3215, 2147483648
    %v3220 = vmul.f32 %v3219, 1.442695
    %v3221 = vpow.pop %v3220
    %v3222 = vadd.f32 %v3221, 1.0
    %v3223 = vrcp.pop %v3222
    %v3224 = vmul.f32 1.0, %v3223
    %v3225 = vxor.u32 %v3216, 2147483648
    %v3226 = vmul.f32 %v3225, 1.442695
    %v3227 = vpow.pop %v3226
    %v3228 = vadd.f32 %v3227, 1.0
    %v3229 = vrcp.pop %v3228
    %v3230 = vmul.f32 1.0, %v3229
    %v3231 = vtanh.pop %v3217
    %v3232 = vxor.u32 %v3218, 2147483648
    %v3233 = vmul.f32 %v3232, 1.442695
    %v3234 = vpow.pop %v3233
    %v3235 = vadd.f32 %v3234, 1.0
    %v3236 = vrcp.pop %v3235
    %v3237 = vmul.f32 1.0, %v3236
    %v3238 = vmul.f32 %v3230, %v2751
    %v3239 = vmul.f32 %v3224, %v3231
    %v3240 = vadd.f32 %v3238, %v3239
    %v3241 = vtanh.pop %v3240
    %v3242 = vmul.f32 %v3237, %v3241
    %s3243 = scalar_lea.vmem [#allocation15], 40
    %3244 = vst [vmem:[%s3243] sm:$0xff] %v3242
    %s3245 = scalar_lea.vmem [#allocation6], 192
    %v3246 = vld [vmem:[%s3245] sm:$0xff]
    %v3247 = vld [vmem:[%s3245 + $0x8] sm:$0xff]
    %v3248 = vld [vmem:[%s3245 + $0x10] sm:$0xff]
    %v3249 = vld [vmem:[%s3245 + $0x18] sm:$0xff]
    %3250 = vmatprep.subr.mxu0 %v96
    %3251 = vmatpush1.msra.mxu0 %v95
    %3252 = vmatprep.subr.mxu0 %v100
    %3253 = vmatpush1.msra.mxu0 %v99
    %3254 = vmatprep.subr.mxu0 %v104
    %3255 = vmatpush1.msra.mxu0 %v103
    %3256 = vmatprep.subr.mxu0 %v108
    %3257 = vmatpush1.msra.mxu0 %v107
    %3258 = vmatprep.subr.mxu0 %v112
    %3259 = vmatpush1.msra.mxu0 %v111
    %3260 = vmatprep.subr.mxu0 %v116
    %3261 = vmatpush1.msra.mxu0 %v115
    %3262 = vmatprep.subr.mxu0 %v120
    %3263 = vmatpush1.msra.mxu0 %v119
    %3264 = vmatprep.subr.mxu0 %v124
    %3265 = vmatpush1.msra.mxu0 %v123
    %3266 = vmatprep.subr.mxu0 %v128
    %3267 = vmatpush1.msra.mxu0 %v127
    %3268 = vmatprep.subr.mxu0 %v132
    %3269 = vmatpush1.msra.mxu0 %v131
    %3270 = vmatprep.subr.mxu0 %v136
    %3271 = vmatpush1.msra.mxu0 %v135
    %3272 = vmatprep.subr.mxu0 %v140
    %3273 = vmatpush1.msra.mxu0 %v139
    %3274 = vmatprep.subr.mxu0 %v144
    %3275 = vmatpush1.msra.mxu0 %v143
    %3276 = vmatprep.subr.mxu0 %v148
    %3277 = vmatpush1.msra.mxu0 %v147
    %3278 = vmatprep.subr.mxu0 %v152
    %3279 = vmatpush1.msra.mxu0 %v151
    %3280 = vmatprep.subr.mxu0 %v156
    %3281 = vmatpush1.msra.mxu0 %v155
    %3282 = vmatprep.subr.mxu0 0.0
    %3283 = vmatpush1.msra.mxu0 0.0
    %3284 = vmatprep.subr.mxu0 0.0
    %3285 = vmatpush1.msra.mxu0 0.0
    %3286 = vmatprep.subr.mxu0 0.0
    %3287 = vmatpush1.msra.mxu0 0.0
    %3288 = vmatprep.subr.mxu0 0.0
    %3289 = vmatpush1.msra.mxu0 0.0
    %3290 = vmatprep.subr.mxu0 0.0
    %3291 = vmatpush1.msra.mxu0 0.0
    %3292 = vmatprep.subr.mxu0 0.0
    %3293 = vmatpush1.msra.mxu0 0.0
    %3294 = vmatprep.subr.mxu0 0.0
    %3295 = vmatpush1.msra.mxu0 0.0
    %3296 = vmatprep.subr.mxu0 0.0
    %3297 = vmatpush1.msra.mxu0 0.0
    %3298 = vmatprep.subr.mxu0 0.0
    %3299 = vmatpush1.msra.mxu0 0.0
    %3300 = vmatprep.subr.mxu0 0.0
    %3301 = vmatpush1.msra.mxu0 0.0
    %3302 = vmatprep.subr.mxu0 0.0
    %3303 = vmatpush1.msra.mxu0 0.0
    %3304 = vmatprep.subr.mxu0 0.0
    %3305 = vmatpush1.msra.mxu0 0.0
    %3306 = vmatprep.subr.mxu0 0.0
    %3307 = vmatpush1.msra.mxu0 0.0
    %3308 = vmatprep.subr.mxu0 0.0
    %3309 = vmatpush1.msra.mxu0 0.0
    %3310 = vmatprep.subr.mxu0 0.0
    %3311 = vmatpush1.msra.mxu0 0.0
    %3312 = vmatprep.subr.mxu0 0.0
    %3313 = vmatpush1.msra.mxu0 0.0
    %3314 = vmatprep.mubr.f32.mxu0 0.0
    %3315 = vmatmul.mubr.f32.gmra.mrb[0].mxu0 %v2930
    %v3316 = vpop.f32.mrb[0].mxu0
    %v3317 = vadd.f32 0.0, %v3316
    %v3318 = vpop.f32.mrb[0].mxu0
    %v3319 = vadd.f32 0.0, %v3318
    %3320 = vdwg.mxu0
    %3321 = vmatprep.subr.mxu0 %v98
    %3322 = vmatpush1.msra.mxu0 %v97
    %3323 = vmatprep.subr.mxu0 %v102
    %3324 = vmatpush1.msra.mxu0 %v101
    %3325 = vmatprep.subr.mxu0 %v106
    %3326 = vmatpush1.msra.mxu0 %v105
    %3327 = vmatprep.subr.mxu0 %v110
    %3328 = vmatpush1.msra.mxu0 %v109
    %3329 = vmatprep.subr.mxu0 %v114
    %3330 = vmatpush1.msra.mxu0 %v113
    %3331 = vmatprep.subr.mxu0 %v118
    %3332 = vmatpush1.msra.mxu0 %v117
    %3333 = vmatprep.subr.mxu0 %v122
    %3334 = vmatpush1.msra.mxu0 %v121
    %3335 = vmatprep.subr.mxu0 %v126
    %3336 = vmatpush1.msra.mxu0 %v125
    %3337 = vmatprep.subr.mxu0 %v130
    %3338 = vmatpush1.msra.mxu0 %v129
    %3339 = vmatprep.subr.mxu0 %v134
    %3340 = vmatpush1.msra.mxu0 %v133
    %3341 = vmatprep.subr.mxu0 %v138
    %3342 = vmatpush1.msra.mxu0 %v137
    %3343 = vmatprep.subr.mxu0 %v142
    %3344 = vmatpush1.msra.mxu0 %v141
    %3345 = vmatprep.subr.mxu0 %v146
    %3346 = vmatpush1.msra.mxu0 %v145
    %3347 = vmatprep.subr.mxu0 %v150
    %3348 = vmatpush1.msra.mxu0 %v149
    %3349 = vmatprep.subr.mxu0 %v154
    %3350 = vmatpush1.msra.mxu0 %v153
    %3351 = vmatprep.subr.mxu0 %v158
    %3352 = vmatpush1.msra.mxu0 %v157
    %3353 = vmatprep.subr.mxu0 0.0
    %3354 = vmatpush1.msra.mxu0 0.0
    %3355 = vmatprep.subr.mxu0 0.0
    %3356 = vmatpush1.msra.mxu0 0.0
    %3357 = vmatprep.subr.mxu0 0.0
    %3358 = vmatpush1.msra.mxu0 0.0
    %3359 = vmatprep.subr.mxu0 0.0
    %3360 = vmatpush1.msra.mxu0 0.0
    %3361 = vmatprep.subr.mxu0 0.0
    %3362 = vmatpush1.msra.mxu0 0.0
    %3363 = vmatprep.subr.mxu0 0.0
    %3364 = vmatpush1.msra.mxu0 0.0
    %3365 = vmatprep.subr.mxu0 0.0
    %3366 = vmatpush1.msra.mxu0 0.0
    %3367 = vmatprep.subr.mxu0 0.0
    %3368 = vmatpush1.msra.mxu0 0.0
    %3369 = vmatprep.subr.mxu0 0.0
    %3370 = vmatpush1.msra.mxu0 0.0
    %3371 = vmatprep.subr.mxu0 0.0
    %3372 = vmatpush1.msra.mxu0 0.0
    %3373 = vmatprep.subr.mxu0 0.0
    %3374 = vmatpush1.msra.mxu0 0.0
    %3375 = vmatprep.subr.mxu0 0.0
    %3376 = vmatpush1.msra.mxu0 0.0
    %3377 = vmatprep.subr.mxu0 0.0
    %3378 = vmatpush1.msra.mxu0 0.0
    %3379 = vmatprep.subr.mxu0 0.0
    %3380 = vmatpush1.msra.mxu0 0.0
    %3381 = vmatprep.subr.mxu0 0.0
    %3382 = vmatpush1.msra.mxu0 0.0
    %3383 = vmatprep.subr.mxu0 0.0
    %3384 = vmatpush1.msra.mxu0 0.0
    %3385 = vmatprep.mubr.f32.mxu0 0.0
    %3386 = vmatmul.mubr.f32.gmra.mrb[0].mxu0 %v2930
    %v3387 = vpop.f32.mrb[0].mxu0
    %v3388 = vadd.f32 0.0, %v3387
    %v3389 = vpop.f32.mrb[0].mxu0
    %v3390 = vadd.f32 0.0, %v3389
    %3391 = vdwg.mxu0
    %v3392 = vadd.f32 %v3246, %v3317
    %v3393 = vadd.f32 %v3247, %v3319
    %v3394 = vadd.f32 %v3248, %v3388
    %v3395 = vadd.f32 %v3249, %v3390
    %v3396 = vxor.u32 %v3392, 2147483648
    %v3397 = vmul.f32 %v3396, 1.442695
    %v3398 = vpow.pop %v3397
    %v3399 = vadd.f32 %v3398, 1.0
    %v3400 = vrcp.pop %v3399
    %v3401 = vmul.f32 1.0, %v3400
    %v3402 = vxor.u32 %v3393, 2147483648
    %v3403 = vmul.f32 %v3402, 1.442695
    %v3404 = vpow.pop %v3403
    %v3405 = vadd.f32 %v3404, 1.0
    %v3406 = vrcp.pop %v3405
    %v3407 = vmul.f32 1.0, %v3406
    %v3408 = vtanh.pop %v3394
    %v3409 = vxor.u32 %v3395, 2147483648
    %v3410 = vmul.f32 %v3409, 1.442695
    %v3411 = vpow.pop %v3410
    %v3412 = vadd.f32 %v3411, 1.0
    %v3413 = vrcp.pop %v3412
    %v3414 = vmul.f32 1.0, %v3413
    %v3415 = vmul.f32 %v3407, %v2928
    %v3416 = vmul.f32 %v3401, %v3408
    %v3417 = vadd.f32 %v3415, %v3416
    %v3418 = vtanh.pop %v3417
    %v3419 = vmul.f32 %v3414, %v3418
    %3420 = vmatprep.subr.mxu0 %v224
    %3421 = vmatpush1.msra.mxu0 %v223
    %3422 = vmatprep.subr.mxu0 %v228
    %3423 = vmatpush1.msra.mxu0 %v227
    %3424 = vmatprep.subr.mxu0 %v232
    %3425 = vmatpush1.msra.mxu0 %v231
    %3426 = vmatprep.subr.mxu0 %v236
    %3427 = vmatpush1.msra.mxu0 %v235
    %3428 = vmatprep.subr.mxu0 %v240
    %3429 = vmatpush1.msra.mxu0 %v239
    %3430 = vmatprep.subr.mxu0 %v244
    %3431 = vmatpush1.msra.mxu0 %v243
    %3432 = vmatprep.subr.mxu0 %v248
    %3433 = vmatpush1.msra.mxu0 %v247
    %3434 = vmatprep.subr.mxu0 %v252
    %3435 = vmatpush1.msra.mxu0 %v251
    %3436 = vmatprep.subr.mxu0 %v256
    %3437 = vmatpush1.msra.mxu0 %v255
    %3438 = vmatprep.subr.mxu0 %v260
    %3439 = vmatpush1.msra.mxu0 %v259
    %3440 = vmatprep.subr.mxu0 %v264
    %3441 = vmatpush1.msra.mxu0 %v263
    %3442 = vmatprep.subr.mxu0 %v268
    %3443 = vmatpush1.msra.mxu0 %v267
    %3444 = vmatprep.subr.mxu0 %v272
    %3445 = vmatpush1.msra.mxu0 %v271
    %3446 = vmatprep.subr.mxu0 %v276
    %3447 = vmatpush1.msra.mxu0 %v275
    %3448 = vmatprep.subr.mxu0 %v280
    %3449 = vmatpush1.msra.mxu0 %v279
    %3450 = vmatprep.subr.mxu0 %v284
    %3451 = vmatpush1.msra.mxu0 %v283
    %3452 = vmatprep.subr.mxu0 0.0
    %3453 = vmatpush1.msra.mxu0 0.0
    %3454 = vmatprep.subr.mxu0 0.0
    %3455 = vmatpush1.msra.mxu0 0.0
    %3456 = vmatprep.subr.mxu0 0.0
    %3457 = vmatpush1.msra.mxu0 0.0
    %3458 = vmatprep.subr.mxu0 0.0
    %3459 = vmatpush1.msra.mxu0 0.0
    %3460 = vmatprep.subr.mxu0 0.0
    %3461 = vmatpush1.msra.mxu0 0.0
    %3462 = vmatprep.subr.mxu0 0.0
    %3463 = vmatpush1.msra.mxu0 0.0
    %3464 = vmatprep.subr.mxu0 0.0
    %3465 = vmatpush1.msra.mxu0 0.0
    %3466 = vmatprep.subr.mxu0 0.0
    %3467 = vmatpush1.msra.mxu0 0.0
    %3468 = vmatprep.subr.mxu0 0.0
    %3469 = vmatpush1.msra.mxu0 0.0
    %3470 = vmatprep.subr.mxu0 0.0
    %3471 = vmatpush1.msra.mxu0 0.0
    %3472 = vmatprep.subr.mxu0 0.0
    %3473 = vmatpush1.msra.mxu0 0.0
    %3474 = vmatprep.subr.mxu0 0.0
    %3475 = vmatpush1.msra.mxu0 0.0
    %3476 = vmatprep.subr.mxu0 0.0
    %3477 = vmatpush1.msra.mxu0 0.0
    %3478 = vmatprep.subr.mxu0 0.0
    %3479 = vmatpush1.msra.mxu0 0.0
    %3480 = vmatprep.subr.mxu0 0.0
    %3481 = vmatpush1.msra.mxu0 0.0
    %3482 = vmatprep.subr.mxu0 0.0
    %3483 = vmatpush1.msra.mxu0 0.0
    %3484 = vmatprep.mubr.f32.mxu0 0.0
    %3485 = vmatmul.mubr.f32.gmra.mrb[0].mxu0 %v3242
    %v3486 = vpop.f32.mrb[0].mxu0
    %v3487 = vadd.f32 0.0, %v3486
    %v3488 = vpop.f32.mrb[0].mxu0
    %v3489 = vadd.f32 0.0, %v3488
    %3490 = vdwg.mxu0
    %3491 = vmatprep.subr.mxu0 %v226
    %3492 = vmatpush1.msra.mxu0 %v225
    %3493 = vmatprep.subr.mxu0 %v230
    %3494 = vmatpush1.msra.mxu0 %v229
    %3495 = vmatprep.subr.mxu0 %v234
    %3496 = vmatpush1.msra.mxu0 %v233
    %3497 = vmatprep.subr.mxu0 %v238
    %3498 = vmatpush1.msra.mxu0 %v237
    %3499 = vmatprep.subr.mxu0 %v242
    %3500 = vmatpush1.msra.mxu0 %v241
    %3501 = vmatprep.subr.mxu0 %v246
    %3502 = vmatpush1.msra.mxu0 %v245
    %3503 = vmatprep.subr.mxu0 %v250
    %3504 = vmatpush1.msra.mxu0 %v249
    %3505 = vmatprep.subr.mxu0 %v254
    %3506 = vmatpush1.msra.mxu0 %v253
    %3507 = vmatprep.subr.mxu0 %v258
    %3508 = vmatpush1.msra.mxu0 %v257
    %3509 = vmatprep.subr.mxu0 %v262
    %3510 = vmatpush1.msra.mxu0 %v261
    %3511 = vmatprep.subr.mxu0 %v266
    %3512 = vmatpush1.msra.mxu0 %v265
    %3513 = vmatprep.subr.mxu0 %v270
    %3514 = vmatpush1.msra.mxu0 %v269
    %3515 = vmatprep.subr.mxu0 %v274
    %3516 = vmatpush1.msra.mxu0 %v273
    %3517 = vmatprep.subr.mxu0 %v278
    %3518 = vmatpush1.msra.mxu0 %v277
    %3519 = vmatprep.subr.mxu0 %v282
    %3520 = vmatpush1.msra.mxu0 %v281
    %3521 = vmatprep.subr.mxu0 %v286
    %3522 = vmatpush1.msra.mxu0 %v285
    %3523 = vmatprep.subr.mxu0 0.0
    %3524 = vmatpush1.msra.mxu0 0.0
    %3525 = vmatprep.subr.mxu0 0.0
    %3526 = vmatpush1.msra.mxu0 0.0
    %3527 = vmatprep.subr.mxu0 0.0
    %3528 = vmatpush1.msra.mxu0 0.0
    %3529 = vmatprep.subr.mxu0 0.0
    %3530 = vmatpush1.msra.mxu0 0.0
    %3531 = vmatprep.subr.mxu0 0.0
    %3532 = vmatpush1.msra.mxu0 0.0
    %3533 = vmatprep.subr.mxu0 0.0
    %3534 = vmatpush1.msra.mxu0 0.0
    %3535 = vmatprep.subr.mxu0 0.0
    %3536 = vmatpush1.msra.mxu0 0.0
    %3537 = vmatprep.subr.mxu0 0.0
    %3538 = vmatpush1.msra.mxu0 0.0
    %3539 = vmatprep.subr.mxu0 0.0
    %3540 = vmatpush1.msra.mxu0 0.0
    %3541 = vmatprep.subr.mxu0 0.0
    %3542 = vmatpush1.msra.mxu0 0.0
    %3543 = vmatprep.subr.mxu0 0.0
    %3544 = vmatpush1.msra.mxu0 0.0
    %3545 = vmatprep.subr.mxu0 0.0
    %3546 = vmatpush1.msra.mxu0 0.0
    %3547 = vmatprep.subr.mxu0 0.0
    %3548 = vmatpush1.msra.mxu0 0.0
    %3549 = vmatprep.subr.mxu0 0.0
    %3550 = vmatpush1.msra.mxu0 0.0
    %3551 = vmatprep.subr.mxu0 0.0
    %3552 = vmatpush1.msra.mxu0 0.0
    %3553 = vmatprep.subr.mxu0 0.0
    %3554 = vmatpush1.msra.mxu0 0.0
    %3555 = vmatprep.mubr.f32.mxu0 0.0
    %3556 = vmatmul.mubr.f32.gmra.mrb[0].mxu0 %v3242
    %v3557 = vpop.f32.mrb[0].mxu0
    %v3558 = vadd.f32 0.0, %v3557
    %v3559 = vpop.f32.mrb[0].mxu0
    %v3560 = vadd.f32 0.0, %v3559
    %3561 = vdwg.mxu0
    %3562 = vmatprep.subr.mxu0 %v160
    %3563 = vmatpush1.msra.mxu0 %v159
    %3564 = vmatprep.subr.mxu0 %v164
    %3565 = vmatpush1.msra.mxu0 %v163
    %3566 = vmatprep.subr.mxu0 %v168
    %3567 = vmatpush1.msra.mxu0 %v167
    %3568 = vmatprep.subr.mxu0 %v172
    %3569 = vmatpush1.msra.mxu0 %v171
    %3570 = vmatprep.subr.mxu0 %v176
    %3571 = vmatpush1.msra.mxu0 %v175
    %3572 = vmatprep.subr.mxu0 %v180
    %3573 = vmatpush1.msra.mxu0 %v179
    %3574 = vmatprep.subr.mxu0 %v184
    %3575 = vmatpush1.msra.mxu0 %v183
    %3576 = vmatprep.subr.mxu0 %v188
    %3577 = vmatpush1.msra.mxu0 %v187
    %3578 = vmatprep.subr.mxu0 %v192
    %3579 = vmatpush1.msra.mxu0 %v191
    %3580 = vmatprep.subr.mxu0 %v196
    %3581 = vmatpush1.msra.mxu0 %v195
    %3582 = vmatprep.subr.mxu0 %v200
    %3583 = vmatpush1.msra.mxu0 %v199
    %3584 = vmatprep.subr.mxu0 %v204
    %3585 = vmatpush1.msra.mxu0 %v203
    %3586 = vmatprep.subr.mxu0 %v208
    %3587 = vmatpush1.msra.mxu0 %v207
    %3588 = vmatprep.subr.mxu0 %v212
    %3589 = vmatpush1.msra.mxu0 %v211
    %3590 = vmatprep.subr.mxu0 %v216
    %3591 = vmatpush1.msra.mxu0 %v215
    %3592 = vmatprep.subr.mxu0 %v220
    %3593 = vmatpush1.msra.mxu0 %v219
    %3594 = vmatprep.subr.mxu0 0.0
    %3595 = vmatpush1.msra.mxu0 0.0
    %3596 = vmatprep.subr.mxu0 0.0
    %3597 = vmatpush1.msra.mxu0 0.0
    %3598 = vmatprep.subr.mxu0 0.0
    %3599 = vmatpush1.msra.mxu0 0.0
    %3600 = vmatprep.subr.mxu0 0.0
    %3601 = vmatpush1.msra.mxu0 0.0
    %3602 = vmatprep.subr.mxu0 0.0
    %3603 = vmatpush1.msra.mxu0 0.0
    %3604 = vmatprep.subr.mxu0 0.0
    %3605 = vmatpush1.msra.mxu0 0.0
    %3606 = vmatprep.subr.mxu0 0.0
    %3607 = vmatpush1.msra.mxu0 0.0
    %3608 = vmatprep.subr.mxu0 0.0
    %3609 = vmatpush1.msra.mxu0 0.0
    %3610 = vmatprep.subr.mxu0 0.0
    %3611 = vmatpush1.msra.mxu0 0.0
    %3612 = vmatprep.subr.mxu0 0.0
    %3613 = vmatpush1.msra.mxu0 0.0
    %3614 = vmatprep.subr.mxu0 0.0
    %3615 = vmatpush1.msra.mxu0 0.0
    %3616 = vmatprep.subr.mxu0 0.0
    %3617 = vmatpush1.msra.mxu0 0.0
    %3618 = vmatprep.subr.mxu0 0.0
    %3619 = vmatpush1.msra.mxu0 0.0
    %3620 = vmatprep.subr.mxu0 0.0
    %3621 = vmatpush1.msra.mxu0 0.0
    %3622 = vmatprep.subr.mxu0 0.0
    %3623 = vmatpush1.msra.mxu0 0.0
    %3624 = vmatprep.subr.mxu0 0.0
    %3625 = vmatpush1.msra.mxu0 0.0
    %3626 = vmatprep.mubr.f32.mxu0 0.0
    %3627 = vmatmul.mubr.f32.gmra.mrb[0].mxu0 %v3419
    %v3628 = vpop.f32.mrb[0].mxu0
    %v3629 = vadd.f32 %v3487, %v3628
    %v3630 = vpop.f32.mrb[0].mxu0
    %v3631 = vadd.f32 %v3489, %v3630
    %3632 = vdwg.mxu0
    %3633 = vmatprep.subr.mxu0 %v162
    %3634 = vmatpush1.msra.mxu0 %v161
    %3635 = vmatprep.subr.mxu0 %v166
    %3636 = vmatpush1.msra.mxu0 %v165
    %3637 = vmatprep.subr.mxu0 %v170
    %3638 = vmatpush1.msra.mxu0 %v169
    %3639 = vmatprep.subr.mxu0 %v174
    %3640 = vmatpush1.msra.mxu0 %v173
    %3641 = vmatprep.subr.mxu0 %v178
    %3642 = vmatpush1.msra.mxu0 %v177
    %3643 = vmatprep.subr.mxu0 %v182
    %3644 = vmatpush1.msra.mxu0 %v181
    %3645 = vmatprep.subr.mxu0 %v186
    %3646 = vmatpush1.msra.mxu0 %v185
    %3647 = vmatprep.subr.mxu0 %v190
    %3648 = vmatpush1.msra.mxu0 %v189
    %3649 = vmatprep.subr.mxu0 %v194
    %3650 = vmatpush1.msra.mxu0 %v193
    %3651 = vmatprep.subr.mxu0 %v198
    %3652 = vmatpush1.msra.mxu0 %v197
    %3653 = vmatprep.subr.mxu0 %v202
    %3654 = vmatpush1.msra.mxu0 %v201
    %3655 = vmatprep.subr.mxu0 %v206
    %3656 = vmatpush1.msra.mxu0 %v205
    %3657 = vmatprep.subr.mxu0 %v210
    %3658 = vmatpush1.msra.mxu0 %v209
    %3659 = vmatprep.subr.mxu0 %v214
    %3660 = vmatpush1.msra.mxu0 %v213
    %3661 = vmatprep.subr.mxu0 %v218
    %3662 = vmatpush1.msra.mxu0 %v217
    %3663 = vmatprep.subr.mxu0 %v222
    %3664 = vmatpush1.msra.mxu0 %v221
    %3665 = vmatprep.subr.mxu0 0.0
    %3666 = vmatpush1.msra.mxu0 0.0
    %3667 = vmatprep.subr.mxu0 0.0
    %3668 = vmatpush1.msra.mxu0 0.0
    %3669 = vmatprep.subr.mxu0 0.0
    %3670 = vmatpush1.msra.mxu0 0.0
    %3671 = vmatprep.subr.mxu0 0.0
    %3672 = vmatpush1.msra.mxu0 0.0
    %3673 = vmatprep.subr.mxu0 0.0
    %3674 = vmatpush1.msra.mxu0 0.0
    %3675 = vmatprep.subr.mxu0 0.0
    %3676 = vmatpush1.msra.mxu0 0.0
    %3677 = vmatprep.subr.mxu0 0.0
    %3678 = vmatpush1.msra.mxu0 0.0
    %3679 = vmatprep.subr.mxu0 0.0
    %3680 = vmatpush1.msra.mxu0 0.0
    %3681 = vmatprep.subr.mxu0 0.0
    %3682 = vmatpush1.msra.mxu0 0.0
    %3683 = vmatprep.subr.mxu0 0.0
    %3684 = vmatpush1.msra.mxu0 0.0
    %3685 = vmatprep.subr.mxu0 0.0
    %3686 = vmatpush1.msra.mxu0 0.0
    %3687 = vmatprep.subr.mxu0 0.0
    %3688 = vmatpush1.msra.mxu0 0.0
    %3689 = vmatprep.subr.mxu0 0.0
    %3690 = vmatpush1.msra.mxu0 0.0
    %3691 = vmatprep.subr.mxu0 0.0
    %3692 = vmatpush1.msra.mxu0 0.0
    %3693 = vmatprep.subr.mxu0 0.0
    %3694 = vmatpush1.msra.mxu0 0.0
    %3695 = vmatprep.subr.mxu0 0.0
    %3696 = vmatpush1.msra.mxu0 0.0
    %3697 = vmatprep.mubr.f32.mxu0 0.0
    %3698 = vmatmul.mubr.f32.gmra.mrb[0].mxu0 %v3419
    %v3699 = vpop.f32.mrb[0].mxu0
    %v3700 = vadd.f32 %v3558, %v3699
    %v3701 = vpop.f32.mrb[0].mxu0
    %v3702 = vadd.f32 %v3560, %v3701
    %3703 = vdwg.mxu0
    %v3704 = vadd.f32 %v3629, %v754
    %v3705 = vadd.f32 %v3631, %v758
    %v3706 = vadd.f32 %v3700, %v762
    %v3707 = vadd.f32 %v3702, %v766
    %v3708 = vxor.u32 %v3704, 2147483648
    %v3709 = vmul.f32 %v3708, 1.442695
    %v3710 = vpow.pop %v3709
    %v3711 = vadd.f32 %v3710, 1.0
    %v3712 = vrcp.pop %v3711
    %v3713 = vmul.f32 1.0, %v3712
    %v3714 = vxor.u32 %v3705, 2147483648
    %v3715 = vmul.f32 %v3714, 1.442695
    %v3716 = vpow.pop %v3715
    %v3717 = vadd.f32 %v3716, 1.0
    %v3718 = vrcp.pop %v3717
    %v3719 = vmul.f32 1.0, %v3718
    %v3720 = vtanh.pop %v3706
    %v3721 = vxor.u32 %v3707, 2147483648
    %v3722 = vmul.f32 %v3721, 1.442695
    %v3723 = vpow.pop %v3722
    %v3724 = vadd.f32 %v3723, 1.0
    %v3725 = vrcp.pop %v3724
    %v3726 = vmul.f32 1.0, %v3725
    %v3727 = vmul.f32 %v3719, %v3240
    %v3728 = vmul.f32 %v3713, %v3720
    %v3729 = vadd.f32 %v3727, %v3728
    %v3730 = vtanh.pop %v3729
    %v3731 = vmul.f32 %v3726, %v3730
    %s3732 = scalar_lea.vmem [#allocation15], 48
    %3733 = vst [vmem:[%s3732] sm:$0xff] %v3731
    %s3734 = scalar_lea.vmem [#allocation6], 224
    %v3735 = vld [vmem:[%s3734] sm:$0xff]
    %v3736 = vld [vmem:[%s3734 + $0x8] sm:$0xff]
    %v3737 = vld [vmem:[%s3734 + $0x10] sm:$0xff]
    %v3738 = vld [vmem:[%s3734 + $0x18] sm:$0xff]
    %3739 = vmatprep.subr.mxu0 %v96
    %3740 = vmatpush1.msra.mxu0 %v95
    %3741 = vmatprep.subr.mxu0 %v100
    %3742 = vmatpush1.msra.mxu0 %v99
    %3743 = vmatprep.subr.mxu0 %v104
    %3744 = vmatpush1.msra.mxu0 %v103
    %3745 = vmatprep.subr.mxu0 %v108
    %3746 = vmatpush1.msra.mxu0 %v107
    %3747 = vmatprep.subr.mxu0 %v112
    %3748 = vmatpush1.msra.mxu0 %v111
    %3749 = vmatprep.subr.mxu0 %v116
    %3750 = vmatpush1.msra.mxu0 %v115
    %3751 = vmatprep.subr.mxu0 %v120
    %3752 = vmatpush1.msra.mxu0 %v119
    %3753 = vmatprep.subr.mxu0 %v124
    %3754 = vmatpush1.msra.mxu0 %v123
    %3755 = vmatprep.subr.mxu0 %v128
    %3756 = vmatpush1.msra.mxu0 %v127
    %3757 = vmatprep.subr.mxu0 %v132
    %3758 = vmatpush1.msra.mxu0 %v131
    %3759 = vmatprep.subr.mxu0 %v136
    %3760 = vmatpush1.msra.mxu0 %v135
    %3761 = vmatprep.subr.mxu0 %v140
    %3762 = vmatpush1.msra.mxu0 %v139
    %3763 = vmatprep.subr.mxu0 %v144
    %3764 = vmatpush1.msra.mxu0 %v143
    %3765 = vmatprep.subr.mxu0 %v148
    %3766 = vmatpush1.msra.mxu0 %v147
    %3767 = vmatprep.subr.mxu0 %v152
    %3768 = vmatpush1.msra.mxu0 %v151
    %3769 = vmatprep.subr.mxu0 %v156
    %3770 = vmatpush1.msra.mxu0 %v155
    %3771 = vmatprep.subr.mxu0 0.0
    %3772 = vmatpush1.msra.mxu0 0.0
    %3773 = vmatprep.subr.mxu0 0.0
    %3774 = vmatpush1.msra.mxu0 0.0
    %3775 = vmatprep.subr.mxu0 0.0
    %3776 = vmatpush1.msra.mxu0 0.0
    %3777 = vmatprep.subr.mxu0 0.0
    %3778 = vmatpush1.msra.mxu0 0.0
    %3779 = vmatprep.subr.mxu0 0.0
    %3780 = vmatpush1.msra.mxu0 0.0
    %3781 = vmatprep.subr.mxu0 0.0
    %3782 = vmatpush1.msra.mxu0 0.0
    %3783 = vmatprep.subr.mxu0 0.0
    %3784 = vmatpush1.msra.mxu0 0.0
    %3785 = vmatprep.subr.mxu0 0.0
    %3786 = vmatpush1.msra.mxu0 0.0
    %3787 = vmatprep.subr.mxu0 0.0
    %3788 = vmatpush1.msra.mxu0 0.0
    %3789 = vmatprep.subr.mxu0 0.0
    %3790 = vmatpush1.msra.mxu0 0.0
    %3791 = vmatprep.subr.mxu0 0.0
    %3792 = vmatpush1.msra.mxu0 0.0
    %3793 = vmatprep.subr.mxu0 0.0
    %3794 = vmatpush1.msra.mxu0 0.0
    %3795 = vmatprep.subr.mxu0 0.0
    %3796 = vmatpush1.msra.mxu0 0.0
    %3797 = vmatprep.subr.mxu0 0.0
    %3798 = vmatpush1.msra.mxu0 0.0
    %3799 = vmatprep.subr.mxu0 0.0
    %3800 = vmatpush1.msra.mxu0 0.0
    %3801 = vmatprep.subr.mxu0 0.0
    %3802 = vmatpush1.msra.mxu0 0.0
    %3803 = vmatprep.mubr.f32.mxu0 0.0
    %3804 = vmatmul.mubr.f32.gmra.mrb[0].mxu0 %v3419
    %v3805 = vpop.f32.mrb[0].mxu0
    %v3806 = vadd.f32 0.0, %v3805
    %v3807 = vpop.f32.mrb[0].mxu0
    %v3808 = vadd.f32 0.0, %v3807
    %3809 = vdwg.mxu0
    %3810 = vmatprep.subr.mxu0 %v98
    %3811 = vmatpush1.msra.mxu0 %v97
    %3812 = vmatprep.subr.mxu0 %v102
    %3813 = vmatpush1.msra.mxu0 %v101
    %3814 = vmatprep.subr.mxu0 %v106
    %3815 = vmatpush1.msra.mxu0 %v105
    %3816 = vmatprep.subr.mxu0 %v110
    %3817 = vmatpush1.msra.mxu0 %v109
    %3818 = vmatprep.subr.mxu0 %v114
    %3819 = vmatpush1.msra.mxu0 %v113
    %3820 = vmatprep.subr.mxu0 %v118
    %3821 = vmatpush1.msra.mxu0 %v117
    %3822 = vmatprep.subr.mxu0 %v122
    %3823 = vmatpush1.msra.mxu0 %v121
    %3824 = vmatprep.subr.mxu0 %v126
    %3825 = vmatpush1.msra.mxu0 %v125
    %3826 = vmatprep.subr.mxu0 %v130
    %3827 = vmatpush1.msra.mxu0 %v129
    %3828 = vmatprep.subr.mxu0 %v134
    %3829 = vmatpush1.msra.mxu0 %v133
    %3830 = vmatprep.subr.mxu0 %v138
    %3831 = vmatpush1.msra.mxu0 %v137
    %3832 = vmatprep.subr.mxu0 %v142
    %3833 = vmatpush1.msra.mxu0 %v141
    %3834 = vmatprep.subr.mxu0 %v146
    %3835 = vmatpush1.msra.mxu0 %v145
    %3836 = vmatprep.subr.mxu0 %v150
    %3837 = vmatpush1.msra.mxu0 %v149
    %3838 = vmatprep.subr.mxu0 %v154
    %3839 = vmatpush1.msra.mxu0 %v153
    %3840 = vmatprep.subr.mxu0 %v158
    %3841 = vmatpush1.msra.mxu0 %v157
    %3842 = vmatprep.subr.mxu0 0.0
    %3843 = vmatpush1.msra.mxu0 0.0
    %3844 = vmatprep.subr.mxu0 0.0
    %3845 = vmatpush1.msra.mxu0 0.0
    %3846 = vmatprep.subr.mxu0 0.0
    %3847 = vmatpush1.msra.mxu0 0.0
    %3848 = vmatprep.subr.mxu0 0.0
    %3849 = vmatpush1.msra.mxu0 0.0
    %3850 = vmatprep.subr.mxu0 0.0
    %3851 = vmatpush1.msra.mxu0 0.0
    %3852 = vmatprep.subr.mxu0 0.0
    %3853 = vmatpush1.msra.mxu0 0.0
    %3854 = vmatprep.subr.mxu0 0.0
    %3855 = vmatpush1.msra.mxu0 0.0
    %3856 = vmatprep.subr.mxu0 0.0
    %3857 = vmatpush1.msra.mxu0 0.0
    %3858 = vmatprep.subr.mxu0 0.0
    %3859 = vmatpush1.msra.mxu0 0.0
    %3860 = vmatprep.subr.mxu0 0.0
    %3861 = vmatpush1.msra.mxu0 0.0
    %3862 = vmatprep.subr.mxu0 0.0
    %3863 = vmatpush1.msra.mxu0 0.0
    %3864 = vmatprep.subr.mxu0 0.0
    %3865 = vmatpush1.msra.mxu0 0.0
    %3866 = vmatprep.subr.mxu0 0.0
    %3867 = vmatpush1.msra.mxu0 0.0
    %3868 = vmatprep.subr.mxu0 0.0
    %3869 = vmatpush1.msra.mxu0 0.0
    %3870 = vmatprep.subr.mxu0 0.0
    %3871 = vmatpush1.msra.mxu0 0.0
    %3872 = vmatprep.subr.mxu0 0.0
    %3873 = vmatpush1.msra.mxu0 0.0
    %3874 = vmatprep.mubr.f32.mxu0 0.0
    %3875 = vmatmul.mubr.f32.gmra.mrb[0].mxu0 %v3419
    %v3876 = vpop.f32.mrb[0].mxu0
    %v3877 = vadd.f32 0.0, %v3876
    %v3878 = vpop.f32.mrb[0].mxu0
    %v3879 = vadd.f32 0.0, %v3878
    %3880 = vdwg.mxu0
    %v3881 = vadd.f32 %v3735, %v3806
    %v3882 = vadd.f32 %v3736, %v3808
    %v3883 = vadd.f32 %v3737, %v3877
    %v3884 = vadd.f32 %v3738, %v3879
    %v3885 = vxor.u32 %v3881, 2147483648
    %v3886 = vmul.f32 %v3885, 1.442695
    %v3887 = vpow.pop %v3886
    %v3888 = vadd.f32 %v3887, 1.0
    %v3889 = vrcp.pop %v3888
    %v3890 = vmul.f32 1.0, %v3889
    %v3891 = vxor.u32 %v3882, 2147483648
    %v3892 = vmul.f32 %v3891, 1.442695
    %v3893 = vpow.pop %v3892
    %v3894 = vadd.f32 %v3893, 1.0
    %v3895 = vrcp.pop %v3894
    %v3896 = vmul.f32 1.0, %v3895
    %v3897 = vtanh.pop %v3883
    %v3898 = vxor.u32 %v3884, 2147483648
    %v3899 = vmul.f32 %v3898, 1.442695
    %v3900 = vpow.pop %v3899
    %v3901 = vadd.f32 %v3900, 1.0
    %v3902 = vrcp.pop %v3901
    %v3903 = vmul.f32 1.0, %v3902
    %v3904 = vmul.f32 %v3896, %v3417
    %v3905 = vmul.f32 %v3890, %v3897
    %v3906 = vadd.f32 %v3904, %v3905
    %v3907 = vtanh.pop %v3906
    %v3908 = vmul.f32 %v3903, %v3907
    %3909 = vmatprep.subr.mxu0 %v224
    %3910 = vmatpush1.msra.mxu0 %v223
    %3911 = vmatprep.subr.mxu0 %v228
    %3912 = vmatpush1.msra.mxu0 %v227
    %3913 = vmatprep.subr.mxu0 %v232
    %3914 = vmatpush1.msra.mxu0 %v231
    %3915 = vmatprep.subr.mxu0 %v236
    %3916 = vmatpush1.msra.mxu0 %v235
    %3917 = vmatprep.subr.mxu0 %v240
    %3918 = vmatpush1.msra.mxu0 %v239
    %3919 = vmatprep.subr.mxu0 %v244
    %3920 = vmatpush1.msra.mxu0 %v243
    %3921 = vmatprep.subr.mxu0 %v248
    %3922 = vmatpush1.msra.mxu0 %v247
    %3923 = vmatprep.subr.mxu0 %v252
    %3924 = vmatpush1.msra.mxu0 %v251
    %3925 = vmatprep.subr.mxu0 %v256
    %3926 = vmatpush1.msra.mxu0 %v255
    %3927 = vmatprep.subr.mxu0 %v260
    %3928 = vmatpush1.msra.mxu0 %v259
    %3929 = vmatprep.subr.mxu0 %v264
    %3930 = vmatpush1.msra.mxu0 %v263
    %3931 = vmatprep.subr.mxu0 %v268
    %3932 = vmatpush1.msra.mxu0 %v267
    %3933 = vmatprep.subr.mxu0 %v272
    %3934 = vmatpush1.msra.mxu0 %v271
    %3935 = vmatprep.subr.mxu0 %v276
    %3936 = vmatpush1.msra.mxu0 %v275
    %3937 = vmatprep.subr.mxu0 %v280
    %3938 = vmatpush1.msra.mxu0 %v279
    %3939 = vmatprep.subr.mxu0 %v284
    %3940 = vmatpush1.msra.mxu0 %v283
    %3941 = vmatprep.subr.mxu0 0.0
    %3942 = vmatpush1.msra.mxu0 0.0
    %3943 = vmatprep.subr.mxu0 0.0
    %3944 = vmatpush1.msra.mxu0 0.0
    %3945 = vmatprep.subr.mxu0 0.0
    %3946 = vmatpush1.msra.mxu0 0.0
    %3947 = vmatprep.subr.mxu0 0.0
    %3948 = vmatpush1.msra.mxu0 0.0
    %3949 = vmatprep.subr.mxu0 0.0
    %3950 = vmatpush1.msra.mxu0 0.0
    %3951 = vmatprep.subr.mxu0 0.0
    %3952 = vmatpush1.msra.mxu0 0.0
    %3953 = vmatprep.subr.mxu0 0.0
    %3954 = vmatpush1.msra.mxu0 0.0
    %3955 = vmatprep.subr.mxu0 0.0
    %3956 = vmatpush1.msra.mxu0 0.0
    %3957 = vmatprep.subr.mxu0 0.0
    %3958 = vmatpush1.msra.mxu0 0.0
    %3959 = vmatprep.subr.mxu0 0.0
    %3960 = vmatpush1.msra.mxu0 0.0
    %3961 = vmatprep.subr.mxu0 0.0
    %3962 = vmatpush1.msra.mxu0 0.0
    %3963 = vmatprep.subr.mxu0 0.0
    %3964 = vmatpush1.msra.mxu0 0.0
    %3965 = vmatprep.subr.mxu0 0.0
    %3966 = vmatpush1.msra.mxu0 0.0
    %3967 = vmatprep.subr.mxu0 0.0
    %3968 = vmatpush1.msra.mxu0 0.0
    %3969 = vmatprep.subr.mxu0 0.0
    %3970 = vmatpush1.msra.mxu0 0.0
    %3971 = vmatprep.subr.mxu0 0.0
    %3972 = vmatpush1.msra.mxu0 0.0
    %3973 = vmatprep.mubr.f32.mxu0 0.0
    %3974 = vmatmul.mubr.f32.gmra.mrb[0].mxu0 %v3731
    %v3975 = vpop.f32.mrb[0].mxu0
    %v3976 = vadd.f32 0.0, %v3975
    %v3977 = vpop.f32.mrb[0].mxu0
    %v3978 = vadd.f32 0.0, %v3977
    %3979 = vdwg.mxu0
    %3980 = vmatprep.subr.mxu0 %v226
    %3981 = vmatpush1.msra.mxu0 %v225
    %3982 = vmatprep.subr.mxu0 %v230
    %3983 = vmatpush1.msra.mxu0 %v229
    %3984 = vmatprep.subr.mxu0 %v234
    %3985 = vmatpush1.msra.mxu0 %v233
    %3986 = vmatprep.subr.mxu0 %v238
    %3987 = vmatpush1.msra.mxu0 %v237
    %3988 = vmatprep.subr.mxu0 %v242
    %3989 = vmatpush1.msra.mxu0 %v241
    %3990 = vmatprep.subr.mxu0 %v246
    %3991 = vmatpush1.msra.mxu0 %v245
    %3992 = vmatprep.subr.mxu0 %v250
    %3993 = vmatpush1.msra.mxu0 %v249
    %3994 = vmatprep.subr.mxu0 %v254
    %3995 = vmatpush1.msra.mxu0 %v253
    %3996 = vmatprep.subr.mxu0 %v258
    %3997 = vmatpush1.msra.mxu0 %v257
    %3998 = vmatprep.subr.mxu0 %v262
    %3999 = vmatpush1.msra.mxu0 %v261
    %4000 = vmatprep.subr.mxu0 %v266
    %4001 = vmatpush1.msra.mxu0 %v265
    %4002 = vmatprep.subr.mxu0 %v270
    %4003 = vmatpush1.msra.mxu0 %v269
    %4004 = vmatprep.subr.mxu0 %v274
    %4005 = vmatpush1.msra.mxu0 %v273
    %4006 = vmatprep.subr.mxu0 %v278
    %4007 = vmatpush1.msra.mxu0 %v277
    %4008 = vmatprep.subr.mxu0 %v282
    %4009 = vmatpush1.msra.mxu0 %v281
    %4010 = vmatprep.subr.mxu0 %v286
    %4011 = vmatpush1.msra.mxu0 %v285
    %4012 = vmatprep.subr.mxu0 0.0
    %4013 = vmatpush1.msra.mxu0 0.0
    %4014 = vmatprep.subr.mxu0 0.0
    %4015 = vmatpush1.msra.mxu0 0.0
    %4016 = vmatprep.subr.mxu0 0.0
    %4017 = vmatpush1.msra.mxu0 0.0
    %4018 = vmatprep.subr.mxu0 0.0
    %4019 = vmatpush1.msra.mxu0 0.0
    %4020 = vmatprep.subr.mxu0 0.0
    %4021 = vmatpush1.msra.mxu0 0.0
    %4022 = vmatprep.subr.mxu0 0.0
    %4023 = vmatpush1.msra.mxu0 0.0
    %4024 = vmatprep.subr.mxu0 0.0
    %4025 = vmatpush1.msra.mxu0 0.0
    %4026 = vmatprep.subr.mxu0 0.0
    %4027 = vmatpush1.msra.mxu0 0.0
    %4028 = vmatprep.subr.mxu0 0.0
    %4029 = vmatpush1.msra.mxu0 0.0
    %4030 = vmatprep.subr.mxu0 0.0
    %4031 = vmatpush1.msra.mxu0 0.0
    %4032 = vmatprep.subr.mxu0 0.0
    %4033 = vmatpush1.msra.mxu0 0.0
    %4034 = vmatprep.subr.mxu0 0.0
    %4035 = vmatpush1.msra.mxu0 0.0
    %4036 = vmatprep.subr.mxu0 0.0
    %4037 = vmatpush1.msra.mxu0 0.0
    %4038 = vmatprep.subr.mxu0 0.0
    %4039 = vmatpush1.msra.mxu0 0.0
    %4040 = vmatprep.subr.mxu0 0.0
    %4041 = vmatpush1.msra.mxu0 0.0
    %4042 = vmatprep.subr.mxu0 0.0
    %4043 = vmatpush1.msra.mxu0 0.0
    %4044 = vmatprep.mubr.f32.mxu0 0.0
    %4045 = vmatmul.mubr.f32.gmra.mrb[0].mxu0 %v3731
    %v4046 = vpop.f32.mrb[0].mxu0
    %v4047 = vadd.f32 0.0, %v4046
    %v4048 = vpop.f32.mrb[0].mxu0
    %v4049 = vadd.f32 0.0, %v4048
    %4050 = vdwg.mxu0
    %4051 = vmatprep.subr.mxu0 %v160
    %4052 = vmatpush1.msra.mxu0 %v159
    %4053 = vmatprep.subr.mxu0 %v164
    %4054 = vmatpush1.msra.mxu0 %v163
    %4055 = vmatprep.subr.mxu0 %v168
    %4056 = vmatpush1.msra.mxu0 %v167
    %4057 = vmatprep.subr.mxu0 %v172
    %4058 = vmatpush1.msra.mxu0 %v171
    %4059 = vmatprep.subr.mxu0 %v176
    %4060 = vmatpush1.msra.mxu0 %v175
    %4061 = vmatprep.subr.mxu0 %v180
    %4062 = vmatpush1.msra.mxu0 %v179
    %4063 = vmatprep.subr.mxu0 %v184
    %4064 = vmatpush1.msra.mxu0 %v183
    %4065 = vmatprep.subr.mxu0 %v188
    %4066 = vmatpush1.msra.mxu0 %v187
    %4067 = vmatprep.subr.mxu0 %v192
    %4068 = vmatpush1.msra.mxu0 %v191
    %4069 = vmatprep.subr.mxu0 %v196
    %4070 = vmatpush1.msra.mxu0 %v195
    %4071 = vmatprep.subr.mxu0 %v200
    %4072 = vmatpush1.msra.mxu0 %v199
    %4073 = vmatprep.subr.mxu0 %v204
    %4074 = vmatpush1.msra.mxu0 %v203
    %4075 = vmatprep.subr.mxu0 %v208
    %4076 = vmatpush1.msra.mxu0 %v207
    %4077 = vmatprep.subr.mxu0 %v212
    %4078 = vmatpush1.msra.mxu0 %v211
    %4079 = vmatprep.subr.mxu0 %v216
    %4080 = vmatpush1.msra.mxu0 %v215
    %4081 = vmatprep.subr.mxu0 %v220
    %4082 = vmatpush1.msra.mxu0 %v219
    %4083 = vmatprep.subr.mxu0 0.0
    %4084 = vmatpush1.msra.mxu0 0.0
    %4085 = vmatprep.subr.mxu0 0.0
    %4086 = vmatpush1.msra.mxu0 0.0
    %4087 = vmatprep.subr.mxu0 0.0
    %4088 = vmatpush1.msra.mxu0 0.0
    %4089 = vmatprep.subr.mxu0 0.0
    %4090 = vmatpush1.msra.mxu0 0.0
    %4091 = vmatprep.subr.mxu0 0.0
    %4092 = vmatpush1.msra.mxu0 0.0
    %4093 = vmatprep.subr.mxu0 0.0
    %4094 = vmatpush1.msra.mxu0 0.0
    %4095 = vmatprep.subr.mxu0 0.0
    %4096 = vmatpush1.msra.mxu0 0.0
    %4097 = vmatprep.subr.mxu0 0.0
    %4098 = vmatpush1.msra.mxu0 0.0
    %4099 = vmatprep.subr.mxu0 0.0
    %4100 = vmatpush1.msra.mxu0 0.0
    %4101 = vmatprep.subr.mxu0 0.0
    %4102 = vmatpush1.msra.mxu0 0.0
    %4103 = vmatprep.subr.mxu0 0.0
    %4104 = vmatpush1.msra.mxu0 0.0
    %4105 = vmatprep.subr.mxu0 0.0
    %4106 = vmatpush1.msra.mxu0 0.0
    %4107 = vmatprep.subr.mxu0 0.0
    %4108 = vmatpush1.msra.mxu0 0.0
    %4109 = vmatprep.subr.mxu0 0.0
    %4110 = vmatpush1.msra.mxu0 0.0
    %4111 = vmatprep.subr.mxu0 0.0
    %4112 = vmatpush1.msra.mxu0 0.0
    %4113 = vmatprep.subr.mxu0 0.0
    %4114 = vmatpush1.msra.mxu0 0.0
    %4115 = vmatprep.mubr.f32.mxu0 0.0
    %4116 = vmatmul.mubr.f32.gmra.mrb[0].mxu0 %v3908
    %v4117 = vpop.f32.mrb[0].mxu0
    %v4118 = vadd.f32 %v3976, %v4117
    %v4119 = vpop.f32.mrb[0].mxu0
    %v4120 = vadd.f32 %v3978, %v4119
    %4121 = vdwg.mxu0
    %4122 = vmatprep.subr.mxu0 %v162
    %4123 = vmatpush1.msra.mxu0 %v161
    %4124 = vmatprep.subr.mxu0 %v166
    %4125 = vmatpush1.msra.mxu0 %v165
    %4126 = vmatprep.subr.mxu0 %v170
    %4127 = vmatpush1.msra.mxu0 %v169
    %4128 = vmatprep.subr.mxu0 %v174
    %4129 = vmatpush1.msra.mxu0 %v173
    %4130 = vmatprep.subr.mxu0 %v178
    %4131 = vmatpush1.msra.mxu0 %v177
    %4132 = vmatprep.subr.mxu0 %v182
    %4133 = vmatpush1.msra.mxu0 %v181
    %4134 = vmatprep.subr.mxu0 %v186
    %4135 = vmatpush1.msra.mxu0 %v185
    %4136 = vmatprep.subr.mxu0 %v190
    %4137 = vmatpush1.msra.mxu0 %v189
    %4138 = vmatprep.subr.mxu0 %v194
    %4139 = vmatpush1.msra.mxu0 %v193
    %4140 = vmatprep.subr.mxu0 %v198
    %4141 = vmatpush1.msra.mxu0 %v197
    %4142 = vmatprep.subr.mxu0 %v202
    %4143 = vmatpush1.msra.mxu0 %v201
    %4144 = vmatprep.subr.mxu0 %v206
    %4145 = vmatpush1.msra.mxu0 %v205
    %4146 = vmatprep.subr.mxu0 %v210
    %4147 = vmatpush1.msra.mxu0 %v209
    %4148 = vmatprep.subr.mxu0 %v214
    %4149 = vmatpush1.msra.mxu0 %v213
    %4150 = vmatprep.subr.mxu0 %v218
    %4151 = vmatpush1.msra.mxu0 %v217
    %4152 = vmatprep.subr.mxu0 %v222
    %4153 = vmatpush1.msra.mxu0 %v221
    %4154 = vmatprep.subr.mxu0 0.0
    %4155 = vmatpush1.msra.mxu0 0.0
    %4156 = vmatprep.subr.mxu0 0.0
    %4157 = vmatpush1.msra.mxu0 0.0
    %4158 = vmatprep.subr.mxu0 0.0
    %4159 = vmatpush1.msra.mxu0 0.0
    %4160 = vmatprep.subr.mxu0 0.0
    %4161 = vmatpush1.msra.mxu0 0.0
    %4162 = vmatprep.subr.mxu0 0.0
    %4163 = vmatpush1.msra.mxu0 0.0
    %4164 = vmatprep.subr.mxu0 0.0
    %4165 = vmatpush1.msra.mxu0 0.0
    %4166 = vmatprep.subr.mxu0 0.0
    %4167 = vmatpush1.msra.mxu0 0.0
    %4168 = vmatprep.subr.mxu0 0.0
    %4169 = vmatpush1.msra.mxu0 0.0
    %4170 = vmatprep.subr.mxu0 0.0
    %4171 = vmatpush1.msra.mxu0 0.0
    %4172 = vmatprep.subr.mxu0 0.0
    %4173 = vmatpush1.msra.mxu0 0.0
    %4174 = vmatprep.subr.mxu0 0.0
    %4175 = vmatpush1.msra.mxu0 0.0
    %4176 = vmatprep.subr.mxu0 0.0
    %4177 = vmatpush1.msra.mxu0 0.0
    %4178 = vmatprep.subr.mxu0 0.0
    %4179 = vmatpush1.msra.mxu0 0.0
    %4180 = vmatprep.subr.mxu0 0.0
    %4181 = vmatpush1.msra.mxu0 0.0
    %4182 = vmatprep.subr.mxu0 0.0
    %4183 = vmatpush1.msra.mxu0 0.0
    %4184 = vmatprep.subr.mxu0 0.0
    %4185 = vmatpush1.msra.mxu0 0.0
    %4186 = vmatprep.mubr.f32.mxu0 0.0
    %4187 = vmatmul.mubr.f32.gmra.mrb[0].mxu0 %v3908
    %v4188 = vpop.f32.mrb[0].mxu0
    %v4189 = vadd.f32 %v4047, %v4188
    %v4190 = vpop.f32.mrb[0].mxu0
    %v4191 = vadd.f32 %v4049, %v4190
    %4192 = vdwg.mxu0
    %v4193 = vadd.f32 %v4118, %v754
    %v4194 = vadd.f32 %v4120, %v758
    %v4195 = vadd.f32 %v4189, %v762
    %v4196 = vadd.f32 %v4191, %v766
    %v4197 = vxor.u32 %v4193, 2147483648
    %v4198 = vmul.f32 %v4197, 1.442695
    %v4199 = vpow.pop %v4198
    %v4200 = vadd.f32 %v4199, 1.0
    %v4201 = vrcp.pop %v4200
    %v4202 = vmul.f32 1.0, %v4201
    %v4203 = vxor.u32 %v4194, 2147483648
    %v4204 = vmul.f32 %v4203, 1.442695
    %v4205 = vpow.pop %v4204
    %v4206 = vadd.f32 %v4205, 1.0
    %v4207 = vrcp.pop %v4206
    %v4208 = vmul.f32 1.0, %v4207
    %v4209 = vtanh.pop %v4195
    %v4210 = vxor.u32 %v4196, 2147483648
    %v4211 = vmul.f32 %v4210, 1.442695
    %v4212 = vpow.pop %v4211
    %v4213 = vadd.f32 %v4212, 1.0
    %v4214 = vrcp.pop %v4213
    %v4215 = vmul.f32 1.0, %v4214
    %v4216 = vmul.f32 %v4208, %v3729
    %v4217 = vmul.f32 %v4202, %v4209
    %v4218 = vadd.f32 %v4216, %v4217
    %v4219 = vtanh.pop %v4218
    %v4220 = vmul.f32 %v4215, %v4219
    %s4221 = scalar_lea.vmem [#allocation15], 56
    %4222 = vst [vmem:[%s4221] sm:$0xff] %v4220
    %4223 = vst [vmem:[#allocation2] sm:$0xff] %v3908
    %4224 = vst [vmem:[#allocation3] sm:$0xff] %v3906
    %4225 = vst [vmem:[#allocation4] sm:$0xff] %v4220
    %4226 = vst [vmem:[#allocation5] sm:$0xff] %v4218
    // Predicated region
    $region46: #{tpu_custom_call.1} parent=1 // pred_check
      _
    $region47: #{tpu_custom_call.1} parent=1 // pred_check_branch
      %4228 = sbr.rel (0) target = $region49
    $region48: #{tpu_custom_call.1} parent=1 // pred_region
      %s4230 = ssub.s32 1024, 1024
      %4231 = vsyncadd [#allocation8], %s4230
      %s4232 = sshll.u32 [#allocation15], 4
      %s4233 = int_to_ptr.vmem [resolvable:$true] %s4232
      %4238 = dma.vmem_to_hbm [thread:$0]  %s4233, 1024, %s5, [#allocation8], 128, 128, 8
    $region49: #{tpu_custom_call.1} parent=1 // pred_fallthru
      _
    // Predicated region
    $region50: #{tpu_custom_call.1} parent=1 // pred_check
      _
    $region51: #{tpu_custom_call.1} parent=1 // pred_check_branch
      %4240 = sbr.rel (0) target = $region53
    $region52: #{tpu_custom_call.1} parent=1 // pred_region
      %4241 = dma.done [#allocation8], 1024
    $region53: #{tpu_custom_call.1} parent=1 // pred_fallthru
      _
    %4242 = vsyncpa [#allocation7], 1
    %4243 = vsyncpa [#allocation10], 1
    %4244 = vsyncpa [#allocation13], 1
    %4245 = vsyncpa [#allocation8], 1

</llo_original>
